<compile_context>
chip_gen: v5e
topology: v5e:2x2
jax: 0.10.0
libtpu: 0.0.40
codegen_flags: <defaults>
</compile_context>

<pallas_src>
import jax
import jax.numpy as jnp
from jax import lax
from jax.experimental import pallas as pl
from jax.experimental.pallas import tpu as pltpu


# ---------------------------------------------------------------------------
# Generation-aware knobs
# ---------------------------------------------------------------------------
_VMEM_CAP = None


def _vmem_capacity():
    global _VMEM_CAP
    if _VMEM_CAP is None:
        try:
            _VMEM_CAP = int(pltpu.get_tpu_info().vmem_capacity_bytes)
        except Exception:
            _VMEM_CAP = 64 << 20  # conservative: assume v7x-class (64 MiB / TC)
    return _VMEM_CAP


def _vmem_limit_bytes():
    # 64 MiB scoped budget on v5e/v6e (128 MiB physical), 32 MiB on v7x.
    return int(64 << 20) if _vmem_capacity() >= (100 << 20) else int(32 << 20)


def _round_up(x, m):
    return ((x + m - 1) // m) * m


def _lane_tile(c):
    # 256 matches the v6e/v7x 256-column MXU; 128 otherwise (fine for v5e).
    return 256 if (c >= 256 and c % 256 == 0) else 128


# ---------------------------------------------------------------------------
# conv1 (1x1) + bn1 + relu : tiled matmul kernel
# ---------------------------------------------------------------------------
def _mm_bias_relu_kernel(x_ref, w_ref, b_ref, o_ref):
    # o = relu(x @ w_scalefolded + b) ; bf16 inputs, f32 MXU accumulate, f32 epilogue.
    y = jnp.dot(x_ref[...], w_ref[...], preferred_element_type=jnp.float32)
    o_ref[...] = jnp.maximum(y + b_ref[...], 0.0).astype(o_ref.dtype)


def mm_bias_relu(x, w, b, out_dtype=jnp.bfloat16):
    """relu(x @ w + b); x (M,K) bf16, w (K,C) bf16 (BN scale folded), b (1,C) f32."""
    M, K = x.shape
    C = w.shape[1]
    # Bigger row tiles where VMEM allows (v5e/v6e): halves grid-step overhead and
    # lengthens DMAs toward the HBM-roofline plateau.
    max_rows = 1024 if _vmem_capacity() >= (100 << 20) else 512
    tm = max_rows if M >= max_rows else _round_up(max(M, 16), 16)
    tn = _lane_tile(C)
    Mp = _round_up(M, tm)
    if Mp != M:
        x = jnp.pad(x, ((0, Mp - M), (0, 0)))
    grid = (Mp // tm, C // tn)
    out = pl.pallas_call(
        _mm_bias_relu_kernel,
        out_shape=jax.ShapeDtypeStruct((Mp, C), out_dtype),
        grid_spec=pltpu.PrefetchScalarGridSpec(
            num_scalar_prefetch=0,
            grid=grid,
            in_specs=[
                pl.BlockSpec((tm, K), lambda i, j: (i, 0)),
                pl.BlockSpec((K, tn), lambda i, j: (0, j)),
                pl.BlockSpec((1, tn), lambda i, j: (0, j)),
            ],
            out_specs=pl.BlockSpec((tm, tn), lambda i, j: (i, j)),
        ),
        compiler_params=pltpu.CompilerParams(
            dimension_semantics=("parallel", "parallel"),
            vmem_limit_bytes=_vmem_limit_bytes()),
    )(x, w, b)
    return out[:M] if Mp != M else out


# ---------------------------------------------------------------------------
# Fused conv2 (3x3, in-kernel) + bn2 + relu + conv3 + bn3 + shortcut + relu
# ---------------------------------------------------------------------------
def _build_fused_kernel(Ho, Wo, stride, n_parts, has_proj):
    HWo = Ho * Wo

    def kernel(*refs):
        y1_refs = refs[:n_parts]
        w2_ref, b2_ref, w3_ref, b3_ref = refs[n_parts:n_parts + 4]
        if has_proj:
            xs_ref, ws_ref, o_ref, y2_ref = refs[n_parts + 4:]
        else:
            xs_ref, o_ref, y2_ref = refs[n_parts + 4:]

        # conv2 (3x3) + bn2 + relu, computed ONCE per image (j == 0).  The result
        # stays resident in an f32 VMEM scratch across the inner out-channel axis.
        # NOTE: correct only because grid axis 1 is innermost & sequential ("arbitrary").
        @pl.when(pl.program_id(1) == 0)
        def _():
            y2_ref[...] = jnp.zeros_like(y2_ref)
            for dy in range(3):
                for dx in range(3):
                    # Parity-decomposed y1: unit-stride window, static 0/1 offsets.
                    part = y1_refs[(dy % stride) * stride + (dx % stride)]
                    tap = part[0, pl.ds(dy // stride, Ho), pl.ds(dx // stride, Wo), :]
                    tap = tap.reshape(HWo, tap.shape[-1])
                    y2_ref[...] += jnp.dot(tap, w2_ref[dy * 3 + dx],
                                           preferred_element_type=jnp.float32)
            y2_ref[...] = jnp.maximum(y2_ref[...] + b2_ref[...], 0.0)

        # conv3 (+ shortcut) + final ReLU for this out-channel tile.
        y2 = y2_ref[...].astype(jnp.bfloat16)
        y3 = jnp.dot(y2, w3_ref[...], preferred_element_type=jnp.float32) + b3_ref[...]
        if has_proj:
            # projection shortcut matmul; bn3+bnS biases were folded into b3 on host.
            y3 = y3 + jnp.dot(xs_ref[0], ws_ref[...], preferred_element_type=jnp.float32)
        else:
            # identity shortcut: plain VPU add in f32 (no eye() matmul, no bf16 rounding).
            y3 = y3 + xs_ref[0].astype(jnp.float32)
        o_ref[0] = jnp.maximum(y3, 0.0).astype(o_ref.dtype)

    return kernel


def fused_conv23(y1_parts, w2, b2, w3, b3, xs, ws, Ho, Wo, stride,
                 out_dtype=jnp.bfloat16):
    """One pallas_call for conv2(3x3)+bn2+relu -> conv3+bn3 -> shortcut -> relu.

    y1_parts: stride*stride parity-split views of the spatially padded conv1 output,
              each (N, Hp, Wp, P_p) bf16.
    w2: (9, P_p, P_p) bf16 taps (dy*3+dx); w3: (P_p, C) bf16; xs: shortcut input,
    (N, Ho*Wo, Cin_p) bf16 for the projection path or (N, Ho*Wo, C) f32 identity.
    """
    n_parts = len(y1_parts)
    N = y1_parts[0].shape[0]
    P = w2.shape[1]
    C = w3.shape[1]
    tn = _lane_tile(C)
    HWo = Ho * Wo
    grid = (N, C // tn)

    part_specs = [pl.BlockSpec((1,) + tuple(p.shape[1:]),
                               lambda n, j: (n, 0, 0, 0)) for p in y1_parts]
    in_specs = part_specs + [
        pl.BlockSpec(tuple(w2.shape), lambda n, j: (0, 0, 0)),  # conv2 taps (grid-invariant)
        pl.BlockSpec((1, P), lambda n, j: (0, 0)),              # b2
        pl.BlockSpec((P, tn), lambda n, j: (0, j)),             # w3 (out-channel tile)
        pl.BlockSpec((1, tn), lambda n, j: (0, j)),             # b3 (+bs folded if proj)
    ]
    args = list(y1_parts) + [w2, b2, w3, b3]
    if ws is not None:
        Ks = xs.shape[-1]
        in_specs += [
            pl.BlockSpec((1, HWo, Ks), lambda n, j: (n, 0, 0)),  # shortcut input (bf16)
            pl.BlockSpec((Ks, tn), lambda n, j: (0, j)),         # shortcut weight
        ]
        args += [xs, ws]
    else:
        in_specs += [pl.BlockSpec((1, HWo, tn), lambda n, j: (n, 0, j))]  # identity (f32)
        args += [xs]

    kernel = _build_fused_kernel(Ho, Wo, stride, n_parts, ws is not None)

    out = pl.pallas_call(
        kernel,
        out_shape=jax.ShapeDtypeStruct((N, HWo, C), out_dtype),
        grid_spec=pltpu.PrefetchScalarGridSpec(
            num_scalar_prefetch=0,
            grid=grid,
            in_specs=in_specs,
            out_specs=pl.BlockSpec((1, HWo, tn), lambda n, j: (n, 0, j)),
            scratch_shapes=[pltpu.VMEM((HWo, P), jnp.float32)],  # conv2 result (f32)
        ),
        compiler_params=pltpu.CompilerParams(
            dimension_semantics=("parallel", "arbitrary"),
            vmem_limit_bytes=_vmem_limit_bytes()),
    )(*args)
    return out


# ---------------------------------------------------------------------------
# Host-side glue (layout, channel padding, BN folding, parity split)
# ---------------------------------------------------------------------------
def fold_bn(gamma, beta, mean, var, eps=1e-5):
    scale = gamma / jnp.sqrt(var + eps)
    bias = beta - mean * scale
    return scale.astype(jnp.float32), bias.astype(jnp.float32)


def _pad1d(a, n):
    return a if a.shape[0] == n else jnp.pad(a, (0, n - a.shape[0]))


def bottleneck_forward(x_nchw, params, stride):
    """Pallas implementation of BottleNeck.forward. Input/output are NCHW f32."""
    N, Cin, H, W = x_nchw.shape
    planes = params["w1"].shape[0]
    Cout = params["w3"].shape[0]
    has_proj = (stride != 1) or (Cin != Cout)

    P_p = _round_up(planes, 128)
    Cout_p = 128 if Cout <= 128 else _round_up(Cout, 256)   # 256-lane tiles on v6e/v7x
    Cin_p = Cout_p if not has_proj else _round_up(Cin, 128)

    # NHWC, channels zero-padded to lane multiples.
    x_nhwc = jnp.transpose(x_nchw, (0, 2, 3, 1)).astype(jnp.float32)
    x_pad = jnp.pad(x_nhwc, ((0, 0), (0, 0), (0, 0), (0, Cin_p - Cin)))
    x_bf16 = x_pad.astype(jnp.bfloat16)

    # --- conv1 (1x1) + bn1 + relu : tiled matmul kernel (bf16 out for conv2) ---
    s1, b1 = fold_bn(*params["bn1"])
    w1 = jnp.pad(params["w1"][:, :, 0, 0], ((0, P_p - planes), (0, Cin_p - Cin))).T
    w1 = (w1 * _pad1d(s1, P_p)[None, :]).astype(jnp.bfloat16)    # BN scale folded
    b1p = _pad1d(b1, P_p).reshape(1, P_p)
    y1 = mm_bias_relu(x_bf16.reshape(N * H * W, Cin_p), w1, b1p, out_dtype=jnp.bfloat16)
    y1 = y1.reshape(N, H, W, P_p)

    # Spatial zero-pad (pad=1), then parity-split so all in-kernel tap loads are
    # unit-stride (total bytes == y1p; no 9x im2col materialization).
    y1p = jnp.pad(y1, ((0, 0), (1, 1), (1, 1), (0, 0)))
    parts = tuple(y1p[:, p::stride, q::stride, :]
                  for p in range(stride) for q in range(stride))

    Ho = (H - 1) // stride + 1
    Wo = (W - 1) // stride + 1

    # --- conv2 / conv3 / shortcut parameters (BN scales folded into weights) ---
    s2, b2 = fold_bn(*params["bn2"])
    w2 = jnp.pad(params["w2"], ((0, P_p - planes), (0, P_p - planes), (0, 0), (0, 0)))
    w2 = jnp.transpose(w2, (2, 3, 1, 0)).reshape(9, P_p, P_p)    # tap t=dy*3+dx, rows=c_in
    w2 = (w2 * _pad1d(s2, P_p)[None, None, :]).astype(jnp.bfloat16)
    b2p = _pad1d(b2, P_p).reshape(1, P_p)

    s3, b3 = fold_bn(*params["bn3"])
    w3 = jnp.pad(params["w3"][:, :, 0, 0], ((0, Cout_p - Cout), (0, P_p - planes))).T
    w3 = (w3 * _pad1d(s3, Cout_p)[None, :]).astype(jnp.bfloat16)
    b3p = _pad1d(b3, Cout_p).reshape(1, Cout_p)

    if has_proj:
        ss, bs = fold_bn(*params["bns"])
        ws = jnp.pad(params["ws"][:, :, 0, 0], ((0, Cout_p - Cout), (0, Cin_p - Cin))).T
        ws = (ws * _pad1d(ss, Cout_p)[None, :]).astype(jnp.bfloat16)
        bias = b3p + _pad1d(bs, Cout_p).reshape(1, Cout_p)       # bn3+bnS biases folded
        xs = x_bf16[:, ::stride, ::stride, :].reshape(N, Ho * Wo, Cin_p)
        out = fused_conv23(parts, w2, b2p, w3, bias, xs, ws, Ho, Wo, stride)
    else:
        # Identity shortcut in f32 (VPU add only — keeps the residual un-rounded).
        xs = x_pad.reshape(N, Ho * Wo, Cout_p)
        out = fused_conv23(parts, w2, b2p, w3, b3p, xs, None, Ho, Wo, stride)

    # bf16 NHWC between kernels; convert to f32 NCHW only at the module boundary.
    out = out.reshape(N, Ho, Wo, Cout_p)[..., :Cout].astype(jnp.float32)
    return jnp.transpose(out, (0, 3, 1, 2))


# ---------------------------------------------------------------------------
# Pure-JAX reference (same inference-mode BN semantics) for validation
# ---------------------------------------------------------------------------
def _ref_bn(x, gamma, beta, mean, var, eps=1e-5):
    s = gamma / jnp.sqrt(var + eps)
    b = beta - mean * s
    return x * s[None, :, None, None] + b[None, :, None, None]


def ref_forward(x, params, stride):
    dn = ("NCHW", "OIHW", "NCHW")
    conv1 = lax.conv_general_dilated(x, params["w1"], (1, 1), "VALID", dimension_numbers=dn)
    out = jax.nn.relu(_ref_bn(conv1, *params["bn1"]))
    conv2 = lax.conv_general_dilated(out, params["w2"], (stride, stride),
                                     [(1, 1), (1, 1)], dimension_numbers=dn)
    out = jax.nn.relu(_ref_bn(conv2, *params["bn2"]))
    conv3 = lax.conv_general_dilated(out, params["w3"], (1, 1), "VALID", dimension_numbers=dn)
    out = _ref_bn(conv3, *params["bn3"])
    Cin = x.shape[1]
    Cout = params["w3"].shape[0]
    if stride != 1 or Cin != Cout:
        sc = lax.conv_general_dilated(x, params["ws"], (stride, stride), "VALID",
                                      dimension_numbers=dn)
        sc = _ref_bn(sc, *params["bns"])
    else:
        sc = x
    return jax.nn.relu(out + sc)


# ---------------------------------------------------------------------------
def make_params(key, in_planes, planes, stride):
    expansion = 4
    cout = expansion * planes
    ks = jax.random.split(key, 16)

    def bn_params(k, c):
        k1, k2, k3, k4 = jax.random.split(k, 4)
        gamma = 1.0 + 0.1 * jax.random.normal(k1, (c,), jnp.float32)
        beta = 0.1 * jax.random.normal(k2, (c,), jnp.float32)
        mean = 0.1 * jax.random.normal(k3, (c,), jnp.float32)
        var = 0.5 + jnp.abs(jax.random.normal(k4, (c,), jnp.float32)) * 0.2
        return (gamma, beta, mean, var)

    params = {
        "w1": 0.2 * jax.random.normal(ks[0], (planes, in_planes, 1, 1), jnp.float32),
        "bn1": bn_params(ks[1], planes),
        "w2": 0.2 * jax.random.normal(ks[2], (planes, planes, 3, 3), jnp.float32),
        "bn2": bn_params(ks[3], planes),
        "w3": 0.2 * jax.random.normal(ks[4], (cout, planes, 1, 1), jnp.float32),
        "bn3": bn_params(ks[5], cout),
    }
    if stride != 1 or in_planes != cout:
        params["ws"] = 0.2 * jax.random.normal(ks[6], (cout, in_planes, 1, 1), jnp.float32)
        params["bns"] = bn_params(ks[7], cout)
    return params


if __name__ == "__main__":
    key = jax.random.PRNGKey(0)
    k_x1, k_p1, k_x2, k_p2 = jax.random.split(key, 4)

    fwd = jax.jit(bottleneck_forward, static_argnums=(2,))

    # Case 1: projection shortcut — BottleNeck(in_planes=4, planes=4, stride=2)
    N, in_planes, H, W = 2, 4, 16, 16
    planes, stride = 4, 2
    x = jax.random.normal(k_x1, (N, in_planes, H, W), jnp.float32)
    params = make_params(k_p1, in_planes, planes, stride)
    out = jax.block_until_ready(fwd(x, params, stride))
    ref = jax.block_until_ready(ref_forward(x, params, stride))
    assert out.shape == ref.shape == (N, 4 * planes, H // 2, W // 2), out.shape
    # bf16 activations/weights (f32 accumulation) + bf16 kernel output -> relaxed tol.
    assert jnp.allclose(out, ref, atol=1e-1, rtol=5e-2), float(jnp.max(jnp.abs(out - ref)))

    # Case 2: identity shortcut — BottleNeck(in_planes=16, planes=4, stride=1)
    in_planes2, stride2 = 16, 1
    x2 = jax.random.normal(k_x2, (N, in_planes2, H, W), jnp.float32)
    params2 = make_params(k_p2, in_planes2, planes, stride2)
    out2 = jax.block_until_ready(fwd(x2, params2, stride2))
    ref2 = jax.block_until_ready(ref_forward(x2, params2, stride2))
    assert out2.shape == ref2.shape == (N, 4 * planes, H, W), out2.shape
    assert jnp.allclose(out2, ref2, atol=1e-1, rtol=5e-2), float(jnp.max(jnp.abs(out2 - ref2)))

    print("KERNEL_OK")
</pallas_src>

<mosaic_0001>
module attributes {stable_mosaic.version = 11 : i64} {
  func.func @_mm_bias_relu_kernel(%arg0: i32, %arg1: i32, %arg2: memref<512x128xbf16, #tpu.memory_space<vmem>>, %arg3: memref<128x128xbf16, #tpu.memory_space<vmem>>, %arg4: memref<1x128xf32, #tpu.memory_space<vmem>>, %arg5: memref<512x128xbf16, #tpu.memory_space<vmem>>) attributes {dimension_semantics = [#tpu.dimension_semantics<parallel>, #tpu.dimension_semantics<parallel>], iteration_bounds = array<i64: 1, 1>, scalar_prefetch = 0 : i64, scratch_operands = 0 : i64, tpu.core_type = #tpu.core_type<tc>, window_params = [{transform_indices = @transform_0, window_bounds = array<i64: 512, 128>}, {transform_indices = @transform_1, window_bounds = array<i64: 128, 128>}, {transform_indices = @transform_2, window_bounds = array<i64: 1, 128>}, {transform_indices = @transform_3, window_bounds = array<i64: 512, 128>}]} {
    %c0 = arith.constant 0 : index
    %c0_0 = arith.constant 0 : index
    %0 = vector.load %arg2[%c0, %c0_0] : memref<512x128xbf16, #tpu.memory_space<vmem>>, vector<512x128xbf16>
    %c0_1 = arith.constant 0 : index
    %c0_2 = arith.constant 0 : index
    %1 = vector.load %arg3[%c0_1, %c0_2] : memref<128x128xbf16, #tpu.memory_space<vmem>>, vector<128x128xbf16>
    %cst = arith.constant dense<0.000000e+00> : vector<512x128xf32>
    %2 = tpu.matmul %0, %1, %cst {dimension_numbers = #tpu.dot_dimension_numbers<[1], [0], [0], [1], [0, 0, 1, 1], [], []>} : vector<512x128xbf16>, vector<128x128xbf16>, vector<512x128xf32> -> vector<512x128xf32>
    %c0_3 = arith.constant 0 : index
    %c0_4 = arith.constant 0 : index
    %3 = vector.load %arg4[%c0_3, %c0_4] : memref<1x128xf32, #tpu.memory_space<vmem>>, vector<1x128xf32>
    %4 = vector.broadcast %3 : vector<1x128xf32> to vector<512x128xf32>
    %5 = arith.addf %2, %4 : vector<512x128xf32>
    %cst_5 = arith.constant 0.000000e+00 : f32
    %6 = vector.broadcast %cst_5 : f32 to vector<512x128xf32>
    %7 = arith.maximumf %5, %6 : vector<512x128xf32>
    %8 = arith.truncf %7 : vector<512x128xf32> to vector<512x128xbf16>
    %c0_6 = arith.constant 0 : index
    %c0_7 = arith.constant 0 : index
    %9 = vector.load %arg5[%c0_6, %c0_7] : memref<512x128xbf16, #tpu.memory_space<vmem>>, vector<512x128xbf16>
    tpu.vector_store %arg5[%c0_6, %c0_7], %8 {strides = array<i32>} : memref<512x128xbf16, #tpu.memory_space<vmem>>, vector<512x128xbf16>,
    return
  }
  func.func @transform_0(%arg0: i32, %arg1: i32) -> (i32, i32) {
    %c0_i32 = arith.constant 0 : i32
    %c0_i32_0 = arith.constant 0 : i32
    return %arg0, %c0_i32 : i32, i32
  }
  func.func @transform_1(%arg0: i32, %arg1: i32) -> (i32, i32) {
    %c0_i32 = arith.constant 0 : i32
    %c0_i32_0 = arith.constant 0 : i32
    return %c0_i32, %arg1 : i32, i32
  }
  func.func @transform_2(%arg0: i32, %arg1: i32) -> (i32, i32) {
    %c0_i32 = arith.constant 0 : i32
    %c0_i32_0 = arith.constant 0 : i32
    return %c0_i32, %arg1 : i32, i32
  }
  func.func @transform_3(%arg0: i32, %arg1: i32) -> (i32, i32) {
    %c0_i32 = arith.constant 0 : i32
    return %arg0, %arg1 : i32, i32
  }
}

module attributes {stable_mosaic.version = 11 : i64} {
  func.func @kernel(%arg0: i32, %arg1: i32, %arg2: memref<1x9x9x128xbf16, #tpu.memory_space<vmem>>, %arg3: memref<1x9x9x128xbf16, #tpu.memory_space<vmem>>, %arg4: memref<1x9x9x128xbf16, #tpu.memory_space<vmem>>, %arg5: memref<1x9x9x128xbf16, #tpu.memory_space<vmem>>, %arg6: memref<9x128x128xbf16, #tpu.memory_space<vmem>>, %arg7: memref<1x128xf32, #tpu.memory_space<vmem>>, %arg8: memref<128x128xbf16, #tpu.memory_space<vmem>>, %arg9: memref<1x128xf32, #tpu.memory_space<vmem>>, %arg10: memref<1x64x128xbf16, #tpu.memory_space<vmem>>, %arg11: memref<128x128xbf16, #tpu.memory_space<vmem>>, %arg12: memref<1x64x128xbf16, #tpu.memory_space<vmem>>, %arg13: memref<64x128xf32, #tpu.memory_space<vmem>>) attributes {dimension_semantics = [#tpu.dimension_semantics<parallel>, #tpu.dimension_semantics<arbitrary>], iteration_bounds = array<i64: 2, 1>, scalar_prefetch = 0 : i64, scratch_operands = 1 : i64, tpu.core_type = #tpu.core_type<tc>, window_params = [{transform_indices = @transform_0, window_bounds = array<i64: 1, 9, 9, 128>}, {transform_indices = @transform_1, window_bounds = array<i64: 1, 9, 9, 128>}, {transform_indices = @transform_2, window_bounds = array<i64: 1, 9, 9, 128>}, {transform_indices = @transform_3, window_bounds = array<i64: 1, 9, 9, 128>}, {pipeline_mode = #tpu.pipeline_mode<synchronous>, transform_indices = @transform_4, window_bounds = array<i64: 9, 128, 128>}, {pipeline_mode = #tpu.pipeline_mode<synchronous>, transform_indices = @transform_5, window_bounds = array<i64: 1, 128>}, {transform_indices = @transform_6, window_bounds = array<i64: 128, 128>}, {transform_indices = @transform_7, window_bounds = array<i64: 1, 128>}, {transform_indices = @transform_8, window_bounds = array<i64: 1, 64, 128>}, {transform_indices = @transform_9, window_bounds = array<i64: 128, 128>}, {transform_indices = @transform_10, window_bounds = array<i64: 1, 64, 128>}]} {
    %c0_i32 = arith.constant 0 : i32
    %0 = arith.cmpi eq, %arg1, %c0_i32 : i32
    %1 = arith.extui %0 : i1 to i32
    %c0_i32_0 = arith.constant 0 : i32
    %2 = arith.cmpi ne, %1, %c0_i32_0 : i32
    scf.if %2 {
      %cst_16 = arith.constant 0.000000e+00 : f32
      %21 = vector.broadcast %cst_16 : f32 to vector<64x128xf32>
      %c0_17 = arith.constant 0 : index
      %c0_18 = arith.constant 0 : index
      %22 = vector.load %arg13[%c0_17, %c0_18] : memref<64x128xf32, #tpu.memory_space<vmem>>, vector<64x128xf32>
      tpu.vector_store %arg13[%c0_17, %c0_18], %21 {strides = array<i32>} : memref<64x128xf32, #tpu.memory_space<vmem>>, vector<64x128xf32>,
      %c0_19 = arith.constant 0 : index
      %c0_20 = arith.constant 0 : index
      %c0_21 = arith.constant 0 : index
      %c0_22 = arith.constant 0 : index
      %23 = vector.load %arg2[%c0_19, %c0_20, %c0_21, %c0_22] : memref<1x9x9x128xbf16, #tpu.memory_space<vmem>>, vector<1x8x8x128xbf16>
      %24 = vector.shape_cast %23 : vector<1x8x8x128xbf16> to vector<8x8x128xbf16>
      %25 = vector.shape_cast %24 : vector<8x8x128xbf16> to vector<64x128xbf16>
      %c0_23 = arith.constant 0 : index
      %c0_24 = arith.constant 0 : index
      %26 = vector.load %arg13[%c0_23, %c0_24] : memref<64x128xf32, #tpu.memory_space<vmem>>, vector<64x128xf32>
      %c0_25 = arith.constant 0 : index
      %c0_26 = arith.constant 0 : index
      %c0_27 = arith.constant 0 : index
      %27 = vector.load %arg6[%c0_25, %c0_26, %c0_27] : memref<9x128x128xbf16, #tpu.memory_space<vmem>>, vector<1x128x128xbf16>
      %28 = vector.shape_cast %27 : vector<1x128x128xbf16> to vector<128x128xbf16>
      %cst_28 = arith.constant dense<0.000000e+00> : vector<64x128xf32>
      %29 = tpu.matmul %25, %28, %cst_28 {dimension_numbers = #tpu.dot_dimension_numbers<[1], [0], [0], [1], [0, 0, 1, 1], [], []>} : vector<64x128xbf16>, vector<128x128xbf16>, vector<64x128xf32> -> vector<64x128xf32>
      %30 = arith.addf %26, %29 : vector<64x128xf32>
      %c0_29 = arith.constant 0 : index
      %c0_30 = arith.constant 0 : index
      %31 = vector.load %arg13[%c0_29, %c0_30] : memref<64x128xf32, #tpu.memory_space<vmem>>, vector<64x128xf32>
      tpu.vector_store %arg13[%c0_29, %c0_30], %30 {strides = array<i32>} : memref<64x128xf32, #tpu.memory_space<vmem>>, vector<64x128xf32>,
      %c0_31 = arith.constant 0 : index
      %c0_32 = arith.constant 0 : index
      %c0_33 = arith.constant 0 : index
      %c0_34 = arith.constant 0 : index
      %32 = vector.load %arg3[%c0_31, %c0_32, %c0_33, %c0_34] : memref<1x9x9x128xbf16, #tpu.memory_space<vmem>>, vector<1x8x8x128xbf16>
      %33 = vector.shape_cast %32 : vector<1x8x8x128xbf16> to vector<8x8x128xbf16>
      %34 = vector.shape_cast %33 : vector<8x8x128xbf16> to vector<64x128xbf16>
      %c0_35 = arith.constant 0 : index
      %c0_36 = arith.constant 0 : index
      %35 = vector.load %arg13[%c0_35, %c0_36] : memref<64x128xf32, #tpu.memory_space<vmem>>, vector<64x128xf32>
      %c1 = arith.constant 1 : index
      %c0_37 = arith.constant 0 : index
      %c0_38 = arith.constant 0 : index
      %36 = vector.load %arg6[%c1, %c0_37, %c0_38] : memref<9x128x128xbf16, #tpu.memory_space<vmem>>, vector<1x128x128xbf16>
      %37 = vector.shape_cast %36 : vector<1x128x128xbf16> to vector<128x128xbf16>
      %cst_39 = arith.constant dense<0.000000e+00> : vector<64x128xf32>
      %38 = tpu.matmul %34, %37, %cst_39 {dimension_numbers = #tpu.dot_dimension_numbers<[1], [0], [0], [1], [0, 0, 1, 1], [], []>} : vector<64x128xbf16>, vector<128x128xbf16>, vector<64x128xf32> -> vector<64x128xf32>
      %39 = arith.addf %35, %38 : vector<64x128xf32>
      %c0_40 = arith.constant 0 : index
      %c0_41 = arith.constant 0 : index
      %40 = vector.load %arg13[%c0_40, %c0_41] : memref<64x128xf32, #tpu.memory_space<vmem>>, vector<64x128xf32>
      tpu.vector_store %arg13[%c0_40, %c0_41], %39 {strides = array<i32>} : memref<64x128xf32, #tpu.memory_space<vmem>>, vector<64x128xf32>,
      %c0_42 = arith.constant 0 : index
      %c0_43 = arith.constant 0 : index
      %c1_44 = arith.constant 1 : index
      %c0_45 = arith.constant 0 : index
      %41 = vector.load %arg2[%c0_42, %c0_43, %c1_44, %c0_45] : memref<1x9x9x128xbf16, #tpu.memory_space<vmem>>, vector<1x8x8x128xbf16>
      %42 = vector.shape_cast %41 : vector<1x8x8x128xbf16> to vector<8x8x128xbf16>
      %43 = vector.shape_cast %42 : vector<8x8x128xbf16> to vector<64x128xbf16>
      %c0_46 = arith.constant 0 : index
      %c0_47 = arith.constant 0 : index
      %44 = vector.load %arg13[%c0_46, %c0_47] : memref<64x128xf32, #tpu.memory_space<vmem>>, vector<64x128xf32>
      %c2 = arith.constant 2 : index
      %c0_48 = arith.constant 0 : index
      %c0_49 = arith.constant 0 : index
      %45 = vector.load %arg6[%c2, %c0_48, %c0_49] : memref<9x128x128xbf16, #tpu.memory_space<vmem>>, vector<1x128x128xbf16>
      %46 = vector.shape_cast %45 : vector<1x128x128xbf16> to vector<128x128xbf16>
      %cst_50 = arith.constant dense<0.000000e+00> : vector<64x128xf32>
      %47 = tpu.matmul %43, %46, %cst_50 {dimension_numbers = #tpu.dot_dimension_numbers<[1], [0], [0], [1], [0, 0, 1, 1], [], []>} : vector<64x128xbf16>, vector<128x128xbf16>, vector<64x128xf32> -> vector<64x128xf32>
      %48 = arith.addf %44, %47 : vector<64x128xf32>
      %c0_51 = arith.constant 0 : index
      %c0_52 = arith.constant 0 : index
      %49 = vector.load %arg13[%c0_51, %c0_52] : memref<64x128xf32, #tpu.memory_space<vmem>>, vector<64x128xf32>
      tpu.vector_store %arg13[%c0_51, %c0_52], %48 {strides = array<i32>} : memref<64x128xf32, #tpu.memory_space<vmem>>, vector<64x128xf32>,
      %c0_53 = arith.constant 0 : index
      %c0_54 = arith.constant 0 : index
      %c0_55 = arith.constant 0 : index
      %c0_56 = arith.constant 0 : index
      %50 = vector.load %arg4[%c0_53, %c0_54, %c0_55, %c0_56] : memref<1x9x9x128xbf16, #tpu.memory_space<vmem>>, vector<1x8x8x128xbf16>
      %51 = vector.shape_cast %50 : vector<1x8x8x128xbf16> to vector<8x8x128xbf16>
      %52 = vector.shape_cast %51 : vector<8x8x128xbf16> to vector<64x128xbf16>
      %c0_57 = arith.constant 0 : index
      %c0_58 = arith.constant 0 : index
      %53 = vector.load %arg13[%c0_57, %c0_58] : memref<64x128xf32, #tpu.memory_space<vmem>>, vector<64x128xf32>
      %c3 = arith.constant 3 : index
      %c0_59 = arith.constant 0 : index
      %c0_60 = arith.constant 0 : index
      %54 = vector.load %arg6[%c3, %c0_59, %c0_60] : memref<9x128x128xbf16, #tpu.memory_space<vmem>>, vector<1x128x128xbf16>
      %55 = vector.shape_cast %54 : vector<1x128x128xbf16> to vector<128x128xbf16>
      %cst_61 = arith.constant dense<0.000000e+00> : vector<64x128xf32>
      %56 = tpu.matmul %52, %55, %cst_61 {dimension_numbers = #tpu.dot_dimension_numbers<[1], [0], [0], [1], [0, 0, 1, 1], [], []>} : vector<64x128xbf16>, vector<128x128xbf16>, vector<64x128xf32> -> vector<64x128xf32>
      %57 = arith.addf %53, %56 : vector<64x128xf32>
      %c0_62 = arith.constant 0 : index
      %c0_63 = arith.constant 0 : index
      %58 = vector.load %arg13[%c0_62, %c0_63] : memref<64x128xf32, #tpu.memory_space<vmem>>, vector<64x128xf32>
      tpu.vector_store %arg13[%c0_62, %c0_63], %57 {strides = array<i32>} : memref<64x128xf32, #tpu.memory_space<vmem>>, vector<64x128xf32>,
      %c0_64 = arith.constant 0 : index
      %c0_65 = arith.constant 0 : index
      %c0_66 = arith.constant 0 : index
      %c0_67 = arith.constant 0 : index
      %59 = vector.load %arg5[%c0_64, %c0_65, %c0_66, %c0_67] : memref<1x9x9x128xbf16, #tpu.memory_space<vmem>>, vector<1x8x8x128xbf16>
      %60 = vector.shape_cast %59 : vector<1x8x8x128xbf16> to vector<8x8x128xbf16>
      %61 = vector.shape_cast %60 : vector<8x8x128xbf16> to vector<64x128xbf16>
      %c0_68 = arith.constant 0 : index
      %c0_69 = arith.constant 0 : index
      %62 = vector.load %arg13[%c0_68, %c0_69] : memref<64x128xf32, #tpu.memory_space<vmem>>, vector<64x128xf32>
      %c4 = arith.constant 4 : index
      %c0_70 = arith.constant 0 : index
      %c0_71 = arith.constant 0 : index
      %63 = vector.load %arg6[%c4, %c0_70, %c0_71] : memref<9x128x128xbf16, #tpu.memory_space<vmem>>, vector<1x128x128xbf16>
      %64 = vector.shape_cast %63 : vector<1x128x128xbf16> to vector<128x128xbf16>
      %cst_72 = arith.constant dense<0.000000e+00> : vector<64x128xf32>
      %65 = tpu.matmul %61, %64, %cst_72 {dimension_numbers = #tpu.dot_dimension_numbers<[1], [0], [0], [1], [0, 0, 1, 1], [], []>} : vector<64x128xbf16>, vector<128x128xbf16>, vector<64x128xf32> -> vector<64x128xf32>
      %66 = arith.addf %62, %65 : vector<64x128xf32>
      %c0_73 = arith.constant 0 : index
      %c0_74 = arith.constant 0 : index
      %67 = vector.load %arg13[%c0_73, %c0_74] : memref<64x128xf32, #tpu.memory_space<vmem>>, vector<64x128xf32>
      tpu.vector_store %arg13[%c0_73, %c0_74], %66 {strides = array<i32>} : memref<64x128xf32, #tpu.memory_space<vmem>>, vector<64x128xf32>,
      %c0_75 = arith.constant 0 : index
      %c0_76 = arith.constant 0 : index
      %c1_77 = arith.constant 1 : index
      %c0_78 = arith.constant 0 : index
      %68 = vector.load %arg4[%c0_75, %c0_76, %c1_77, %c0_78] : memref<1x9x9x128xbf16, #tpu.memory_space<vmem>>, vector<1x8x8x128xbf16>
      %69 = vector.shape_cast %68 : vector<1x8x8x128xbf16> to vector<8x8x128xbf16>
      %70 = vector.shape_cast %69 : vector<8x8x128xbf16> to vector<64x128xbf16>
      %c0_79 = arith.constant 0 : index
      %c0_80 = arith.constant 0 : index
      %71 = vector.load %arg13[%c0_79, %c0_80] : memref<64x128xf32, #tpu.memory_space<vmem>>, vector<64x128xf32>
      %c5 = arith.constant 5 : index
      %c0_81 = arith.constant 0 : index
      %c0_82 = arith.constant 0 : index
      %72 = vector.load %arg6[%c5, %c0_81, %c0_82] : memref<9x128x128xbf16, #tpu.memory_space<vmem>>, vector<1x128x128xbf16>
      %73 = vector.shape_cast %72 : vector<1x128x128xbf16> to vector<128x128xbf16>
      %cst_83 = arith.constant dense<0.000000e+00> : vector<64x128xf32>
      %74 = tpu.matmul %70, %73, %cst_83 {dimension_numbers = #tpu.dot_dimension_numbers<[1], [0], [0], [1], [0, 0, 1, 1], [], []>} : vector<64x128xbf16>, vector<128x128xbf16>, vector<64x128xf32> -> vector<64x128xf32>
      %75 = arith.addf %71, %74 : vector<64x128xf32>
      %c0_84 = arith.constant 0 : index
      %c0_85 = arith.constant 0 : index
      %76 = vector.load %arg13[%c0_84, %c0_85] : memref<64x128xf32, #tpu.memory_space<vmem>>, vector<64x128xf32>
      tpu.vector_store %arg13[%c0_84, %c0_85], %75 {strides = array<i32>} : memref<64x128xf32, #tpu.memory_space<vmem>>, vector<64x128xf32>,
      %c0_86 = arith.constant 0 : index
      %c1_87 = arith.constant 1 : index
      %c0_88 = arith.constant 0 : index
      %c0_89 = arith.constant 0 : index
      %77 = vector.load %arg2[%c0_86, %c1_87, %c0_88, %c0_89] : memref<1x9x9x128xbf16, #tpu.memory_space<vmem>>, vector<1x8x8x128xbf16>
      %78 = vector.shape_cast %77 : vector<1x8x8x128xbf16> to vector<8x8x128xbf16>
      %79 = vector.shape_cast %78 : vector<8x8x128xbf16> to vector<64x128xbf16>
      %c0_90 = arith.constant 0 : index
      %c0_91 = arith.constant 0 : index
      %80 = vector.load %arg13[%c0_90, %c0_91] : memref<64x128xf32, #tpu.memory_space<vmem>>, vector<64x128xf32>
      %c6 = arith.constant 6 : index
      %c0_92 = arith.constant 0 : index
      %c0_93 = arith.constant 0 : index
      %81 = vector.load %arg6[%c6, %c0_92, %c0_93] : memref<9x128x128xbf16, #tpu.memory_space<vmem>>, vector<1x128x128xbf16>
      %82 = vector.shape_cast %81 : vector<1x128x128xbf16> to vector<128x128xbf16>
      %cst_94 = arith.constant dense<0.000000e+00> : vector<64x128xf32>
      %83 = tpu.matmul %79, %82, %cst_94 {dimension_numbers = #tpu.dot_dimension_numbers<[1], [0], [0], [1], [0, 0, 1, 1], [], []>} : vector<64x128xbf16>, vector<128x128xbf16>, vector<64x128xf32> -> vector<64x128xf32>
      %84 = arith.addf %80, %83 : vector<64x128xf32>
      %c0_95 = arith.constant 0 : index
      %c0_96 = arith.constant 0 : index
      %85 = vector.load %arg13[%c0_95, %c0_96] : memref<64x128xf32, #tpu.memory_space<vmem>>, vector<64x128xf32>
      tpu.vector_store %arg13[%c0_95, %c0_96], %84 {strides = array<i32>} : memref<64x128xf32, #tpu.memory_space<vmem>>, vector<64x128xf32>,
      %c0_97 = arith.constant 0 : index
      %c1_98 = arith.constant 1 : index
      %c0_99 = arith.constant 0 : index
      %c0_100 = arith.constant 0 : index
      %86 = vector.load %arg3[%c0_97, %c1_98, %c0_99, %c0_100] : memref<1x9x9x128xbf16, #tpu.memory_space<vmem>>, vector<1x8x8x128xbf16>
      %87 = vector.shape_cast %86 : vector<1x8x8x128xbf16> to vector<8x8x128xbf16>
      %88 = vector.shape_cast %87 : vector<8x8x128xbf16> to vector<64x128xbf16>
      %c0_101 = arith.constant 0 : index
      %c0_102 = arith.constant 0 : index
      %89 = vector.load %arg13[%c0_101, %c0_102] : memref<64x128xf32, #tpu.memory_space<vmem>>, vector<64x128xf32>
      %c7 = arith.constant 7 : index
      %c0_103 = arith.constant 0 : index
      %c0_104 = arith.constant 0 : index
      %90 = vector.load %arg6[%c7, %c0_103, %c0_104] : memref<9x128x128xbf16, #tpu.memory_space<vmem>>, vector<1x128x128xbf16>
      %91 = vector.shape_cast %90 : vector<1x128x128xbf16> to vector<128x128xbf16>
      %cst_105 = arith.constant dense<0.000000e+00> : vector<64x128xf32>
      %92 = tpu.matmul %88, %91, %cst_105 {dimension_numbers = #tpu.dot_dimension_numbers<[1], [0], [0], [1], [0, 0, 1, 1], [], []>} : vector<64x128xbf16>, vector<128x128xbf16>, vector<64x128xf32> -> vector<64x128xf32>
      %93 = arith.addf %89, %92 : vector<64x128xf32>
      %c0_106 = arith.constant 0 : index
      %c0_107 = arith.constant 0 : index
      %94 = vector.load %arg13[%c0_106, %c0_107] : memref<64x128xf32, #tpu.memory_space<vmem>>, vector<64x128xf32>
      tpu.vector_store %arg13[%c0_106, %c0_107], %93 {strides = array<i32>} : memref<64x128xf32, #tpu.memory_space<vmem>>, vector<64x128xf32>,
      %c0_108 = arith.constant 0 : index
      %c1_109 = arith.constant 1 : index
      %c1_110 = arith.constant 1 : index
      %c0_111 = arith.constant 0 : index
      %95 = vector.load %arg2[%c0_108, %c1_109, %c1_110, %c0_111] : memref<1x9x9x128xbf16, #tpu.memory_space<vmem>>, vector<1x8x8x128xbf16>
      %96 = vector.shape_cast %95 : vector<1x8x8x128xbf16> to vector<8x8x128xbf16>
      %97 = vector.shape_cast %96 : vector<8x8x128xbf16> to vector<64x128xbf16>
      %c0_112 = arith.constant 0 : index
      %c0_113 = arith.constant 0 : index
      %98 = vector.load %arg13[%c0_112, %c0_113] : memref<64x128xf32, #tpu.memory_space<vmem>>, vector<64x128xf32>
      %c8 = arith.constant 8 : index
      %c0_114 = arith.constant 0 : index
      %c0_115 = arith.constant 0 : index
      %99 = vector.load %arg6[%c8, %c0_114, %c0_115] : memref<9x128x128xbf16, #tpu.memory_space<vmem>>, vector<1x128x128xbf16>
      %100 = vector.shape_cast %99 : vector<1x128x128xbf16> to vector<128x128xbf16>
      %cst_116 = arith.constant dense<0.000000e+00> : vector<64x128xf32>
      %101 = tpu.matmul %97, %100, %cst_116 {dimension_numbers = #tpu.dot_dimension_numbers<[1], [0], [0], [1], [0, 0, 1, 1], [], []>} : vector<64x128xbf16>, vector<128x128xbf16>, vector<64x128xf32> -> vector<64x128xf32>
      %102 = arith.addf %98, %101 : vector<64x128xf32>
      %c0_117 = arith.constant 0 : index
      %c0_118 = arith.constant 0 : index
      %103 = vector.load %arg13[%c0_117, %c0_118] : memref<64x128xf32, #tpu.memory_space<vmem>>, vector<64x128xf32>
      tpu.vector_store %arg13[%c0_117, %c0_118], %102 {strides = array<i32>} : memref<64x128xf32, #tpu.memory_space<vmem>>, vector<64x128xf32>,
      %c0_119 = arith.constant 0 : index
      %c0_120 = arith.constant 0 : index
      %104 = vector.load %arg13[%c0_119, %c0_120] : memref<64x128xf32, #tpu.memory_space<vmem>>, vector<64x128xf32>
      %c0_121 = arith.constant 0 : index
      %c0_122 = arith.constant 0 : index
      %105 = vector.load %arg7[%c0_121, %c0_122] : memref<1x128xf32, #tpu.memory_space<vmem>>, vector<1x128xf32>
      %106 = vector.broadcast %105 : vector<1x128xf32> to vector<64x128xf32>
      %107 = arith.addf %104, %106 : vector<64x128xf32>
      %cst_123 = arith.constant 0.000000e+00 : f32
      %108 = vector.broadcast %cst_123 : f32 to vector<64x128xf32>
      %109 = arith.maximumf %107, %108 : vector<64x128xf32>
      %c0_124 = arith.constant 0 : index
      %c0_125 = arith.constant 0 : index
      %110 = vector.load %arg13[%c0_124, %c0_125] : memref<64x128xf32, #tpu.memory_space<vmem>>, vector<64x128xf32>
      tpu.vector_store %arg13[%c0_124, %c0_125], %109 {strides = array<i32>} : memref<64x128xf32, #tpu.memory_space<vmem>>, vector<64x128xf32>,
    } else {
    }
    %c0 = arith.constant 0 : index
    %c0_1 = arith.constant 0 : index
    %3 = vector.load %arg13[%c0, %c0_1] : memref<64x128xf32, #tpu.memory_space<vmem>>, vector<64x128xf32>
    %4 = arith.truncf %3 : vector<64x128xf32> to vector<64x128xbf16>
    %c0_2 = arith.constant 0 : index
    %c0_3 = arith.constant 0 : index
    %5 = vector.load %arg8[%c0_2, %c0_3] : memref<128x128xbf16, #tpu.memory_space<vmem>>, vector<128x128xbf16>
    %cst = arith.constant dense<0.000000e+00> : vector<64x128xf32>
    %6 = tpu.matmul %4, %5, %cst {dimension_numbers = #tpu.dot_dimension_numbers<[1], [0], [0], [1], [0, 0, 1, 1], [], []>} : vector<64x128xbf16>, vector<128x128xbf16>, vector<64x128xf32> -> vector<64x128xf32>
    %c0_4 = arith.constant 0 : index
    %c0_5 = arith.constant 0 : index
    %7 = vector.load %arg9[%c0_4, %c0_5] : memref<1x128xf32, #tpu.memory_space<vmem>>, vector<1x128xf32>
    %8 = vector.broadcast %7 : vector<1x128xf32> to vector<64x128xf32>
    %9 = arith.addf %6, %8 : vector<64x128xf32>
    %c0_6 = arith.constant 0 : index
    %c0_7 = arith.constant 0 : index
    %c0_8 = arith.constant 0 : index
    %10 = vector.load %arg10[%c0_6, %c0_7, %c0_8] : memref<1x64x128xbf16, #tpu.memory_space<vmem>>, vector<1x64x128xbf16>
    %11 = vector.shape_cast %10 : vector<1x64x128xbf16> to vector<64x128xbf16>
    %c0_9 = arith.constant 0 : index
    %c0_10 = arith.constant 0 : index
    %12 = vector.load %arg11[%c0_9, %c0_10] : memref<128x128xbf16, #tpu.memory_space<vmem>>, vector<128x128xbf16>
    %cst_11 = arith.constant dense<0.000000e+00> : vector<64x128xf32>
    %13 = tpu.matmul %11, %12, %cst_11 {dimension_numbers = #tpu.dot_dimension_numbers<[1], [0], [0], [1], [0, 0, 1, 1], [], []>} : vector<64x128xbf16>, vector<128x128xbf16>, vector<64x128xf32> -> vector<64x128xf32>
    %14 = arith.addf %9, %13 : vector<64x128xf32>
    %cst_12 = arith.constant 0.000000e+00 : f32
    %15 = vector.broadcast %cst_12 : f32 to vector<64x128xf32>
    %16 = arith.maximumf %14, %15 : vector<64x128xf32>
    %17 = arith.truncf %16 : vector<64x128xf32> to vector<64x128xbf16>
    %c0_13 = arith.constant 0 : index
    %c0_14 = arith.constant 0 : index
    %c0_15 = arith.constant 0 : index
    %18 = vector.load %arg12[%c0_13, %c0_14, %c0_15] : memref<1x64x128xbf16, #tpu.memory_space<vmem>>, vector<1x64x128xbf16>
    %19 = vector.shape_cast %18 : vector<1x64x128xbf16> to vector<64x128xbf16>
    %20 = vector.shape_cast %17 : vector<64x128xbf16> to vector<1x64x128xbf16>
    tpu.vector_store %arg12[%c0_13, %c0_14, %c0_15], %20 {strides = array<i32>} : memref<1x64x128xbf16, #tpu.memory_space<vmem>>, vector<1x64x128xbf16>,
    return
  }
  func.func @transform_0(%arg0: i32, %arg1: i32) -> (i32, i32, i32, i32) {
    %c0_i32 = arith.constant 0 : i32
    %c0_i32_0 = arith.constant 0 : i32
    %c0_i32_1 = arith.constant 0 : i32
    %c0_i32_2 = arith.constant 0 : i32
    return %arg0, %c0_i32, %c0_i32_0, %c0_i32_1 : i32, i32, i32, i32
  }
  func.func @transform_1(%arg0: i32, %arg1: i32) -> (i32, i32, i32, i32) {
    %c0_i32 = arith.constant 0 : i32
    %c0_i32_0 = arith.constant 0 : i32
    %c0_i32_1 = arith.constant 0 : i32
    %c0_i32_2 = arith.constant 0 : i32
    return %arg0, %c0_i32, %c0_i32_0, %c0_i32_1 : i32, i32, i32, i32
  }
  func.func @transform_2(%arg0: i32, %arg1: i32) -> (i32, i32, i32, i32) {
    %c0_i32 = arith.constant 0 : i32
    %c0_i32_0 = arith.constant 0 : i32
    %c0_i32_1 = arith.constant 0 : i32
    %c0_i32_2 = arith.constant 0 : i32
    return %arg0, %c0_i32, %c0_i32_0, %c0_i32_1 : i32, i32, i32, i32
  }
  func.func @transform_3(%arg0: i32, %arg1: i32) -> (i32, i32, i32, i32) {
    %c0_i32 = arith.constant 0 : i32
    %c0_i32_0 = arith.constant 0 : i32
    %c0_i32_1 = arith.constant 0 : i32
    %c0_i32_2 = arith.constant 0 : i32
    return %arg0, %c0_i32, %c0_i32_0, %c0_i32_1 : i32, i32, i32, i32
  }
  func.func @transform_4(%arg0: i32, %arg1: i32) -> (i32, i32, i32) {
    %c0_i32 = arith.constant 0 : i32
    %c0_i32_0 = arith.constant 0 : i32
    %c0_i32_1 = arith.constant 0 : i32
    %c0_i32_2 = arith.constant 0 : i32
    return %c0_i32, %c0_i32_0, %c0_i32_1 : i32, i32, i32
  }
  func.func @transform_5(%arg0: i32, %arg1: i32) -> (i32, i32) {
    %c0_i32 = arith.constant 0 : i32
    %c0_i32_0 = arith.constant 0 : i32
    %c0_i32_1 = arith.constant 0 : i32
    return %c0_i32, %c0_i32_0 : i32, i32
  }
  func.func @transform_6(%arg0: i32, %arg1: i32) -> (i32, i32) {
    %c0_i32 = arith.constant 0 : i32
    %c0_i32_0 = arith.constant 0 : i32
    return %c0_i32, %arg1 : i32, i32
  }
  func.func @transform_7(%arg0: i32, %arg1: i32) -> (i32, i32) {
    %c0_i32 = arith.constant 0 : i32
    %c0_i32_0 = arith.constant 0 : i32
    return %c0_i32, %arg1 : i32, i32
  }
  func.func @transform_8(%arg0: i32, %arg1: i32) -> (i32, i32, i32) {
    %c0_i32 = arith.constant 0 : i32
    %c0_i32_0 = arith.constant 0 : i32
    %c0_i32_1 = arith.constant 0 : i32
    return %arg0, %c0_i32, %c0_i32_0 : i32, i32, i32
  }
  func.func @transform_9(%arg0: i32, %arg1: i32) -> (i32, i32) {
    %c0_i32 = arith.constant 0 : i32
    %c0_i32_0 = arith.constant 0 : i32
    return %c0_i32, %arg1 : i32, i32
  }
  func.func @transform_10(%arg0: i32, %arg1: i32) -> (i32, i32, i32) {
    %c0_i32 = arith.constant 0 : i32
    %c0_i32_0 = arith.constant 0 : i32
    return %arg0, %c0_i32, %arg1 : i32, i32, i32
  }
}

</mosaic_0001>

<llo_original>
// kernel: bottleneck_forward.2
$region0: #{bottleneck_forward.2}
  #allocation0 [shape = 'u32[]', space=smem, size = 0x4, offset = 0x4, fixed_abs, tag = 'smem constant byte address 0x4 - core index']
  #allocation1 [shape = 'u32[72,128]{1,0:T(1,128)}', space=vmem, size = 0x9000, scoped, tag = 'internal scratch']
  %s0 = inlined_call_operand.vmem [shape: bf16[512,128], index: 0, kind: input, shape index: {}]
  %s1 = inlined_call_operand.vmem [shape: bf16[128,128], index: 1, kind: input, shape index: {}]
  %s2 = inlined_call_operand.vmem [shape: f32[1,128], index: 2, kind: input, shape index: {}]
  %s3 = inlined_call_operand.vmem [shape: bf16[512,128], index: 3, kind: output, shape index: {}]
  %s4 = sld [smem:[#allocation0]]
  $region22: #{bottleneck_forward.2} parent=0
    _
  %s6 = ssub.s32 1, %s4
  %s7 = scalar_select 0, %s6, %s4
  // Predicated region
  $region2: #{bottleneck_forward.2} parent=0 // pred_check
    _
  $region3: #{bottleneck_forward.2} parent=0 // pred_check_branch
    %9 = sbr.rel (0) target = $region5
  $region4: #{bottleneck_forward.2} parent=0 // pred_region
    _
  $region5: #{bottleneck_forward.2} parent=0 // pred_fallthru
    _
  // Predicated region
  $region6: #{bottleneck_forward.2} parent=0 // pred_check
    _
  $region7: #{bottleneck_forward.2} parent=0 // pred_check_branch
    %11 = sbr.rel (0) target = $region9
  $region8: #{bottleneck_forward.2} parent=0 // pred_region
    _
  $region9: #{bottleneck_forward.2} parent=0 // pred_fallthru
    _
  // Predicated region
  $region10: #{bottleneck_forward.2} parent=0 // pred_check
    _
  $region11: #{bottleneck_forward.2} parent=0 // pred_check_branch
    %13 = sbr.rel (0) target = $region13
  $region12: #{bottleneck_forward.2} parent=0 // pred_region
    _
  $region13: #{bottleneck_forward.2} parent=0 // pred_fallthru
    _
  %v14 = vld [vmem:[%s0] sm:$0xf]
  %v15 = vld [vmem:[%s0 + $0x4] sm:$0xf]
  %v16 = vld [vmem:[%s0 + $0x8] sm:$0xf]
  %v17 = vld [vmem:[%s0 + $0xc] sm:$0xf]
  %v18 = vld [vmem:[%s0 + $0x10] sm:$0xf]
  %v19 = vld [vmem:[%s0 + $0x14] sm:$0xf]
  %v20 = vld [vmem:[%s0 + $0x18] sm:$0xf]
  %v21 = vld [vmem:[%s0 + $0x1c] sm:$0xf]
  %v22 = vld [vmem:[%s0 + $0x20] sm:$0xf]
  %v23 = vld [vmem:[%s0 + $0x24] sm:$0xf]
  %v24 = vld [vmem:[%s0 + $0x28] sm:$0xf]
  %v25 = vld [vmem:[%s0 + $0x2c] sm:$0xf]
  %v26 = vld [vmem:[%s0 + $0x30] sm:$0xf]
  %v27 = vld [vmem:[%s0 + $0x34] sm:$0xf]
  %v28 = vld [vmem:[%s0 + $0x38] sm:$0xf]
  %v29 = vld [vmem:[%s0 + $0x3c] sm:$0xf]
  %v30 = vld [vmem:[%s0 + $0x40] sm:$0xf]
  %v31 = vld [vmem:[%s0 + $0x44] sm:$0xf]
  %v32 = vld [vmem:[%s0 + $0x48] sm:$0xf]
  %v33 = vld [vmem:[%s0 + $0x4c] sm:$0xf]
  %v34 = vld [vmem:[%s0 + $0x50] sm:$0xf]
  %v35 = vld [vmem:[%s0 + $0x54] sm:$0xf]
  %v36 = vld [vmem:[%s0 + $0x58] sm:$0xf]
  %v37 = vld [vmem:[%s0 + $0x5c] sm:$0xf]
  %v38 = vld [vmem:[%s0 + $0x60] sm:$0xf]
  %v39 = vld [vmem:[%s0 + $0x64] sm:$0xf]
  %v40 = vld [vmem:[%s0 + $0x68] sm:$0xf]
  %v41 = vld [vmem:[%s0 + $0x6c] sm:$0xf]
  %v42 = vld [vmem:[%s0 + $0x70] sm:$0xf]
  %v43 = vld [vmem:[%s0 + $0x74] sm:$0xf]
  %v44 = vld [vmem:[%s0 + $0x78] sm:$0xf]
  %v45 = vld [vmem:[%s0 + $0x7c] sm:$0xf]
  %v46 = vld [vmem:[%s0 + $0x80] sm:$0xf]
  %v47 = vld [vmem:[%s0 + $0x84] sm:$0xf]
  %v48 = vld [vmem:[%s0 + $0x88] sm:$0xf]
  %v49 = vld [vmem:[%s0 + $0x8c] sm:$0xf]
  %v50 = vld [vmem:[%s0 + $0x90] sm:$0xf]
  %v51 = vld [vmem:[%s0 + $0x94] sm:$0xf]
  %v52 = vld [vmem:[%s0 + $0x98] sm:$0xf]
  %v53 = vld [vmem:[%s0 + $0x9c] sm:$0xf]
  %v54 = vld [vmem:[%s0 + $0xa0] sm:$0xf]
  %v55 = vld [vmem:[%s0 + $0xa4] sm:$0xf]
  %v56 = vld [vmem:[%s0 + $0xa8] sm:$0xf]
  %v57 = vld [vmem:[%s0 + $0xac] sm:$0xf]
  %v58 = vld [vmem:[%s0 + $0xb0] sm:$0xf]
  %v59 = vld [vmem:[%s0 + $0xb4] sm:$0xf]
  %v60 = vld [vmem:[%s0 + $0xb8] sm:$0xf]
  %v61 = vld [vmem:[%s0 + $0xbc] sm:$0xf]
  %v62 = vld [vmem:[%s0 + $0xc0] sm:$0xf]
  %v63 = vld [vmem:[%s0 + $0xc4] sm:$0xf]
  %v64 = vld [vmem:[%s0 + $0xc8] sm:$0xf]
  %v65 = vld [vmem:[%s0 + $0xcc] sm:$0xf]
  %v66 = vld [vmem:[%s0 + $0xd0] sm:$0xf]
  %v67 = vld [vmem:[%s0 + $0xd4] sm:$0xf]
  %v68 = vld [vmem:[%s0 + $0xd8] sm:$0xf]
  %v69 = vld [vmem:[%s0 + $0xdc] sm:$0xf]
  %v70 = vld [vmem:[%s0 + $0xe0] sm:$0xf]
  %v71 = vld [vmem:[%s0 + $0xe4] sm:$0xf]
  %v72 = vld [vmem:[%s0 + $0xe8] sm:$0xf]
  %v73 = vld [vmem:[%s0 + $0xec] sm:$0xf]
  %v74 = vld [vmem:[%s0 + $0xf0] sm:$0xf]
  %v75 = vld [vmem:[%s0 + $0xf4] sm:$0xf]
  %v76 = vld [vmem:[%s0 + $0xf8] sm:$0xf]
  %v77 = vld [vmem:[%s0 + $0xfc] sm:$0xf]
  %v78 = vld [vmem:[%s1] sm:$0xf]
  %v79 = vld [vmem:[%s1 + $0x4] sm:$0xf]
  %v80 = vld [vmem:[%s1 + $0x8] sm:$0xf]
  %v81 = vld [vmem:[%s1 + $0xc] sm:$0xf]
  %v82 = vld [vmem:[%s1 + $0x10] sm:$0xf]
  %v83 = vld [vmem:[%s1 + $0x14] sm:$0xf]
  %v84 = vld [vmem:[%s1 + $0x18] sm:$0xf]
  %v85 = vld [vmem:[%s1 + $0x1c] sm:$0xf]
  %v86 = vld [vmem:[%s1 + $0x20] sm:$0xf]
  %v87 = vld [vmem:[%s1 + $0x24] sm:$0xf]
  %v88 = vld [vmem:[%s1 + $0x28] sm:$0xf]
  %v89 = vld [vmem:[%s1 + $0x2c] sm:$0xf]
  %v90 = vld [vmem:[%s1 + $0x30] sm:$0xf]
  %v91 = vld [vmem:[%s1 + $0x34] sm:$0xf]
  %v92 = vld [vmem:[%s1 + $0x38] sm:$0xf]
  %v93 = vld [vmem:[%s1 + $0x3c] sm:$0xf]
  %v94 = vld [vmem:[%s2] sm:$0x1]
  %v96 = vperm.slane %v94, 0
  %v162 = vunpack.c.l.b16 %v14
  %v163 = vunpack.c.l.b16 %v15
  %v164 = vunpack.c.l.b16 %v16
  %v165 = vunpack.c.l.b16 %v17
  %v166 = vunpack.c.l.b16 %v18
  %v167 = vunpack.c.l.b16 %v19
  %v168 = vunpack.c.l.b16 %v20
  %v169 = vunpack.c.l.b16 %v21
  %v170 = vunpack.c.l.b16 %v22
  %v171 = vunpack.c.l.b16 %v23
  %v172 = vunpack.c.l.b16 %v24
  %v173 = vunpack.c.l.b16 %v25
  %v174 = vunpack.c.l.b16 %v26
  %v175 = vunpack.c.l.b16 %v27
  %v176 = vunpack.c.l.b16 %v28
  %v177 = vunpack.c.l.b16 %v29
  %v178 = vunpack.c.l.b16 %v30
  %v179 = vunpack.c.l.b16 %v31
  %v180 = vunpack.c.l.b16 %v32
  %v181 = vunpack.c.l.b16 %v33
  %v182 = vunpack.c.l.b16 %v34
  %v183 = vunpack.c.l.b16 %v35
  %v184 = vunpack.c.l.b16 %v36
  %v185 = vunpack.c.l.b16 %v37
  %v186 = vunpack.c.l.b16 %v38
  %v187 = vunpack.c.l.b16 %v39
  %v188 = vunpack.c.l.b16 %v40
  %v189 = vunpack.c.l.b16 %v41
  %v190 = vunpack.c.l.b16 %v42
  %v191 = vunpack.c.l.b16 %v43
  %v192 = vunpack.c.l.b16 %v44
  %v193 = vunpack.c.l.b16 %v45
  %v194 = vunpack.c.l.b16 %v46
  %v195 = vunpack.c.l.b16 %v47
  %v196 = vunpack.c.l.b16 %v48
  %v197 = vunpack.c.l.b16 %v49
  %v198 = vunpack.c.l.b16 %v50
  %v199 = vunpack.c.l.b16 %v51
  %v200 = vunpack.c.l.b16 %v52
  %v201 = vunpack.c.l.b16 %v53
  %v202 = vunpack.c.l.b16 %v54
  %v203 = vunpack.c.l.b16 %v55
  %v204 = vunpack.c.l.b16 %v56
  %v205 = vunpack.c.l.b16 %v57
  %v206 = vunpack.c.l.b16 %v58
  %v207 = vunpack.c.l.b16 %v59
  %v208 = vunpack.c.l.b16 %v60
  %v209 = vunpack.c.l.b16 %v61
  %v210 = vunpack.c.l.b16 %v62
  %v211 = vunpack.c.l.b16 %v63
  %v212 = vunpack.c.l.b16 %v64
  %v213 = vunpack.c.l.b16 %v65
  %v214 = vunpack.c.l.b16 %v66
  %v215 = vunpack.c.l.b16 %v67
  %v216 = vunpack.c.l.b16 %v68
  %v217 = vunpack.c.l.b16 %v69
  %v218 = vunpack.c.l.b16 %v70
  %v219 = vunpack.c.l.b16 %v71
  %v220 = vunpack.c.l.b16 %v72
  %v221 = vunpack.c.l.b16 %v73
  %v222 = vunpack.c.l.b16 %v74
  %v223 = vunpack.c.l.b16 %v75
  %v224 = vunpack.c.l.b16 %v76
  %v225 = vunpack.c.l.b16 %v77
  %v226 = vpack.c.b16 %v163, %v162
  %v227 = vpack.c.b16 %v165, %v164
  %v228 = vpack.c.b16 %v167, %v166
  %v229 = vpack.c.b16 %v169, %v168
  %v230 = vpack.c.b16 %v171, %v170
  %v231 = vpack.c.b16 %v173, %v172
  %v232 = vpack.c.b16 %v175, %v174
  %v233 = vpack.c.b16 %v177, %v176
  %v234 = vpack.c.b16 %v179, %v178
  %v235 = vpack.c.b16 %v181, %v180
  %v236 = vpack.c.b16 %v183, %v182
  %v237 = vpack.c.b16 %v185, %v184
  %v238 = vpack.c.b16 %v187, %v186
  %v239 = vpack.c.b16 %v189, %v188
  %v240 = vpack.c.b16 %v191, %v190
  %v241 = vpack.c.b16 %v193, %v192
  %v242 = vpack.c.b16 %v195, %v194
  %v243 = vpack.c.b16 %v197, %v196
  %v244 = vpack.c.b16 %v199, %v198
  %v245 = vpack.c.b16 %v201, %v200
  %v246 = vpack.c.b16 %v203, %v202
  %v247 = vpack.c.b16 %v205, %v204
  %v248 = vpack.c.b16 %v207, %v206
  %v249 = vpack.c.b16 %v209, %v208
  %v250 = vpack.c.b16 %v211, %v210
  %v251 = vpack.c.b16 %v213, %v212
  %v252 = vpack.c.b16 %v215, %v214
  %v253 = vpack.c.b16 %v217, %v216
  %v254 = vpack.c.b16 %v219, %v218
  %v255 = vpack.c.b16 %v221, %v220
  %v256 = vpack.c.b16 %v223, %v222
  %v257 = vpack.c.b16 %v225, %v224
  %v306 = vunpack.c.l.b16 %v78
  %v307 = vunpack.c.l.b16 %v79
  %v308 = vunpack.c.l.b16 %v80
  %v309 = vunpack.c.l.b16 %v81
  %v310 = vunpack.c.l.b16 %v82
  %v311 = vunpack.c.l.b16 %v83
  %v312 = vunpack.c.l.b16 %v84
  %v313 = vunpack.c.l.b16 %v85
  %v314 = vunpack.c.l.b16 %v86
  %v315 = vunpack.c.l.b16 %v87
  %v316 = vunpack.c.l.b16 %v88
  %v317 = vunpack.c.l.b16 %v89
  %v318 = vunpack.c.l.b16 %v90
  %v319 = vunpack.c.l.b16 %v91
  %v320 = vunpack.c.l.b16 %v92
  %v321 = vunpack.c.l.b16 %v93
  %v322 = vpack.c.b16 %v307, %v306
  %v323 = vpack.c.b16 %v309, %v308
  %v324 = vpack.c.b16 %v311, %v310
  %v325 = vpack.c.b16 %v313, %v312
  %v326 = vpack.c.b16 %v315, %v314
  %v327 = vpack.c.b16 %v317, %v316
  %v328 = vpack.c.b16 %v319, %v318
  %v329 = vpack.c.b16 %v321, %v320
  %338 = vmatpush.bf16.msra.mxu0 %v329
  %339 = vmatpush.bf16.msra.mxu0 %v328
  %340 = vmatpush.bf16.msra.mxu0 %v327
  %341 = vmatpush.bf16.msra.mxu0 %v326
  %342 = vmatpush.bf16.msra.mxu0 %v325
  %343 = vmatpush.bf16.msra.mxu0 %v324
  %344 = vmatpush.bf16.msra.mxu0 %v323
  %345 = vmatpush.bf16.msra.mxu0 %v322
  %346 = vmatmul.bf16.gmra.mxu0 %v226
  %v347 = vpop.f32.mrf.mxu0
  %v348 = vadd.f32 %v96, %v347
  %v349 = vpop.f32.mrf.mxu0
  %v350 = vadd.f32 %v96, %v349
  %351 = vmatmul.bf16.gmra.mxu0 %v227
  %v352 = vpop.f32.mrf.mxu0
  %v353 = vadd.f32 %v96, %v352
  %v354 = vpop.f32.mrf.mxu0
  %v355 = vadd.f32 %v96, %v354
  %356 = vmatmul.bf16.gmra.mxu0 %v228
  %v357 = vpop.f32.mrf.mxu0
  %v358 = vadd.f32 %v96, %v357
  %v359 = vpop.f32.mrf.mxu0
  %v360 = vadd.f32 %v96, %v359
  %361 = vmatmul.bf16.gmra.mxu0 %v229
  %v362 = vpop.f32.mrf.mxu0
  %v363 = vadd.f32 %v96, %v362
  %v364 = vpop.f32.mrf.mxu0
  %v365 = vadd.f32 %v96, %v364
  %366 = vmatmul.bf16.gmra.mxu0 %v230
  %v367 = vpop.f32.mrf.mxu0
  %v368 = vadd.f32 %v96, %v367
  %v369 = vpop.f32.mrf.mxu0
  %v370 = vadd.f32 %v96, %v369
  %371 = vmatmul.bf16.gmra.mxu0 %v231
  %v372 = vpop.f32.mrf.mxu0
  %v373 = vadd.f32 %v96, %v372
  %v374 = vpop.f32.mrf.mxu0
  %v375 = vadd.f32 %v96, %v374
  %376 = vmatmul.bf16.gmra.mxu0 %v232
  %v377 = vpop.f32.mrf.mxu0
  %v378 = vadd.f32 %v96, %v377
  %v379 = vpop.f32.mrf.mxu0
  %v380 = vadd.f32 %v96, %v379
  %381 = vmatmul.bf16.gmra.mxu0 %v233
  %v382 = vpop.f32.mrf.mxu0
  %v383 = vadd.f32 %v96, %v382
  %v384 = vpop.f32.mrf.mxu0
  %v385 = vadd.f32 %v96, %v384
  %386 = vmatmul.bf16.gmra.mxu0 %v234
  %v387 = vpop.f32.mrf.mxu0
  %v388 = vadd.f32 %v96, %v387
  %v389 = vpop.f32.mrf.mxu0
  %v390 = vadd.f32 %v96, %v389
  %391 = vmatmul.bf16.gmra.mxu0 %v235
  %v392 = vpop.f32.mrf.mxu0
  %v393 = vadd.f32 %v96, %v392
  %v394 = vpop.f32.mrf.mxu0
  %v395 = vadd.f32 %v96, %v394
  %396 = vmatmul.bf16.gmra.mxu0 %v236
  %v397 = vpop.f32.mrf.mxu0
  %v398 = vadd.f32 %v96, %v397
  %v399 = vpop.f32.mrf.mxu0
  %v400 = vadd.f32 %v96, %v399
  %401 = vmatmul.bf16.gmra.mxu0 %v237
  %v402 = vpop.f32.mrf.mxu0
  %v403 = vadd.f32 %v96, %v402
  %v404 = vpop.f32.mrf.mxu0
  %v405 = vadd.f32 %v96, %v404
  %406 = vmatmul.bf16.gmra.mxu0 %v238
  %v407 = vpop.f32.mrf.mxu0
  %v408 = vadd.f32 %v96, %v407
  %v409 = vpop.f32.mrf.mxu0
  %v410 = vadd.f32 %v96, %v409
  %411 = vmatmul.bf16.gmra.mxu0 %v239
  %v412 = vpop.f32.mrf.mxu0
  %v413 = vadd.f32 %v96, %v412
  %v414 = vpop.f32.mrf.mxu0
  %v415 = vadd.f32 %v96, %v414
  %416 = vmatmul.bf16.gmra.mxu0 %v240
  %v417 = vpop.f32.mrf.mxu0
  %v418 = vadd.f32 %v96, %v417
  %v419 = vpop.f32.mrf.mxu0
  %v420 = vadd.f32 %v96, %v419
  %421 = vmatmul.bf16.gmra.mxu0 %v241
  %v422 = vpop.f32.mrf.mxu0
  %v423 = vadd.f32 %v96, %v422
  %v424 = vpop.f32.mrf.mxu0
  %v425 = vadd.f32 %v96, %v424
  %426 = vmatmul.bf16.gmra.mxu0 %v242
  %v427 = vpop.f32.mrf.mxu0
  %v428 = vadd.f32 %v96, %v427
  %v429 = vpop.f32.mrf.mxu0
  %v430 = vadd.f32 %v96, %v429
  %431 = vmatmul.bf16.gmra.mxu0 %v243
  %v432 = vpop.f32.mrf.mxu0
  %v433 = vadd.f32 %v96, %v432
  %v434 = vpop.f32.mrf.mxu0
  %v435 = vadd.f32 %v96, %v434
  %436 = vmatmul.bf16.gmra.mxu0 %v244
  %v437 = vpop.f32.mrf.mxu0
  %v438 = vadd.f32 %v96, %v437
  %v439 = vpop.f32.mrf.mxu0
  %v440 = vadd.f32 %v96, %v439
  %441 = vmatmul.bf16.gmra.mxu0 %v245
  %v442 = vpop.f32.mrf.mxu0
  %v443 = vadd.f32 %v96, %v442
  %v444 = vpop.f32.mrf.mxu0
  %v445 = vadd.f32 %v96, %v444
  %446 = vmatmul.bf16.gmra.mxu0 %v246
  %v447 = vpop.f32.mrf.mxu0
  %v448 = vadd.f32 %v96, %v447
  %v449 = vpop.f32.mrf.mxu0
  %v450 = vadd.f32 %v96, %v449
  %451 = vmatmul.bf16.gmra.mxu0 %v247
  %v452 = vpop.f32.mrf.mxu0
  %v453 = vadd.f32 %v96, %v452
  %v454 = vpop.f32.mrf.mxu0
  %v455 = vadd.f32 %v96, %v454
  %456 = vmatmul.bf16.gmra.mxu0 %v248
  %v457 = vpop.f32.mrf.mxu0
  %v458 = vadd.f32 %v96, %v457
  %v459 = vpop.f32.mrf.mxu0
  %v460 = vadd.f32 %v96, %v459
  %461 = vmatmul.bf16.gmra.mxu0 %v249
  %v462 = vpop.f32.mrf.mxu0
  %v463 = vadd.f32 %v96, %v462
  %v464 = vpop.f32.mrf.mxu0
  %v465 = vadd.f32 %v96, %v464
  %466 = vmatmul.bf16.gmra.mxu0 %v250
  %v467 = vpop.f32.mrf.mxu0
  %v468 = vadd.f32 %v96, %v467
  %v469 = vpop.f32.mrf.mxu0
  %v470 = vadd.f32 %v96, %v469
  %471 = vmatmul.bf16.gmra.mxu0 %v251
  %v472 = vpop.f32.mrf.mxu0
  %v473 = vadd.f32 %v96, %v472
  %v474 = vpop.f32.mrf.mxu0
  %v475 = vadd.f32 %v96, %v474
  %476 = vmatmul.bf16.gmra.mxu0 %v252
  %v477 = vpop.f32.mrf.mxu0
  %v478 = vadd.f32 %v96, %v477
  %v479 = vpop.f32.mrf.mxu0
  %v480 = vadd.f32 %v96, %v479
  %481 = vmatmul.bf16.gmra.mxu0 %v253
  %v482 = vpop.f32.mrf.mxu0
  %v483 = vadd.f32 %v96, %v482
  %v484 = vpop.f32.mrf.mxu0
  %v485 = vadd.f32 %v96, %v484
  %486 = vmatmul.bf16.gmra.mxu0 %v254
  %v487 = vpop.f32.mrf.mxu0
  %v488 = vadd.f32 %v96, %v487
  %v489 = vpop.f32.mrf.mxu0
  %v490 = vadd.f32 %v96, %v489
  %491 = vmatmul.bf16.gmra.mxu0 %v255
  %v492 = vpop.f32.mrf.mxu0
  %v493 = vadd.f32 %v96, %v492
  %v494 = vpop.f32.mrf.mxu0
  %v495 = vadd.f32 %v96, %v494
  %496 = vmatmul.bf16.gmra.mxu0 %v256
  %v497 = vpop.f32.mrf.mxu0
  %v498 = vadd.f32 %v96, %v497
  %v499 = vpop.f32.mrf.mxu0
  %v500 = vadd.f32 %v96, %v499
  %501 = vmatmul.bf16.gmra.mxu0 %v257
  %v502 = vpop.f32.mrf.mxu0
  %v503 = vadd.f32 %v96, %v502
  %v504 = vpop.f32.mrf.mxu0
  %v505 = vadd.f32 %v96, %v504
  %506 = vdwg.mxu0
  %v507 = vmax.f32 %v348, 0.0
  %v508 = vmax.f32 %v350, 0.0
  %v509 = vmax.f32 %v353, 0.0
  %v510 = vmax.f32 %v355, 0.0
  %v511 = vmax.f32 %v358, 0.0
  %v512 = vmax.f32 %v360, 0.0
  %v513 = vmax.f32 %v363, 0.0
  %v514 = vmax.f32 %v365, 0.0
  %v515 = vmax.f32 %v368, 0.0
  %v516 = vmax.f32 %v370, 0.0
  %v517 = vmax.f32 %v373, 0.0
  %v518 = vmax.f32 %v375, 0.0
  %v519 = vmax.f32 %v378, 0.0
  %v520 = vmax.f32 %v380, 0.0
  %v521 = vmax.f32 %v383, 0.0
  %v522 = vmax.f32 %v385, 0.0
  %v523 = vmax.f32 %v388, 0.0
  %v524 = vmax.f32 %v390, 0.0
  %v525 = vmax.f32 %v393, 0.0
  %v526 = vmax.f32 %v395, 0.0
  %v527 = vmax.f32 %v398, 0.0
  %v528 = vmax.f32 %v400, 0.0
  %v529 = vmax.f32 %v403, 0.0
  %v530 = vmax.f32 %v405, 0.0
  %v531 = vmax.f32 %v408, 0.0
  %v532 = vmax.f32 %v410, 0.0
  %v533 = vmax.f32 %v413, 0.0
  %v534 = vmax.f32 %v415, 0.0
  %v535 = vmax.f32 %v418, 0.0
  %v536 = vmax.f32 %v420, 0.0
  %v537 = vmax.f32 %v423, 0.0
  %v538 = vmax.f32 %v425, 0.0
  %v539 = vmax.f32 %v428, 0.0
  %v540 = vmax.f32 %v430, 0.0
  %v541 = vmax.f32 %v433, 0.0
  %v542 = vmax.f32 %v435, 0.0
  %v543 = vmax.f32 %v438, 0.0
  %v544 = vmax.f32 %v440, 0.0
  %v545 = vmax.f32 %v443, 0.0
  %v546 = vmax.f32 %v445, 0.0
  %v547 = vmax.f32 %v448, 0.0
  %v548 = vmax.f32 %v450, 0.0
  %v549 = vmax.f32 %v453, 0.0
  %v550 = vmax.f32 %v455, 0.0
  %v551 = vmax.f32 %v458, 0.0
  %v552 = vmax.f32 %v460, 0.0
  %v553 = vmax.f32 %v463, 0.0
  %v554 = vmax.f32 %v465, 0.0
  %v555 = vmax.f32 %v468, 0.0
  %v556 = vmax.f32 %v470, 0.0
  %v557 = vmax.f32 %v473, 0.0
  %v558 = vmax.f32 %v475, 0.0
  %v559 = vmax.f32 %v478, 0.0
  %v560 = vmax.f32 %v480, 0.0
  %v561 = vmax.f32 %v483, 0.0
  %v562 = vmax.f32 %v485, 0.0
  %v563 = vmax.f32 %v488, 0.0
  %v564 = vmax.f32 %v490, 0.0
  %v565 = vmax.f32 %v493, 0.0
  %v566 = vmax.f32 %v495, 0.0
  %v567 = vmax.f32 %v498, 0.0
  %v568 = vmax.f32 %v500, 0.0
  %v569 = vmax.f32 %v503, 0.0
  %v570 = vmax.f32 %v505, 0.0
  %v571 = vpack.c.bf16 %v507, %v507
  %v572 = vpack.c.bf16 %v508, %v508
  %v573 = vpack.c.bf16 %v509, %v509
  %v574 = vpack.c.bf16 %v510, %v510
  %v575 = vpack.c.bf16 %v511, %v511
  %v576 = vpack.c.bf16 %v512, %v512
  %v577 = vpack.c.bf16 %v513, %v513
  %v578 = vpack.c.bf16 %v514, %v514
  %v579 = vpack.c.bf16 %v515, %v515
  %v580 = vpack.c.bf16 %v516, %v516
  %v581 = vpack.c.bf16 %v517, %v517
  %v582 = vpack.c.bf16 %v518, %v518
  %v583 = vpack.c.bf16 %v519, %v519
  %v584 = vpack.c.bf16 %v520, %v520
  %v585 = vpack.c.bf16 %v521, %v521
  %v586 = vpack.c.bf16 %v522, %v522
  %v587 = vpack.c.bf16 %v523, %v523
  %v588 = vpack.c.bf16 %v524, %v524
  %v589 = vpack.c.bf16 %v525, %v525
  %v590 = vpack.c.bf16 %v526, %v526
  %v591 = vpack.c.bf16 %v527, %v527
  %v592 = vpack.c.bf16 %v528, %v528
  %v593 = vpack.c.bf16 %v529, %v529
  %v594 = vpack.c.bf16 %v530, %v530
  %v595 = vpack.c.bf16 %v531, %v531
  %v596 = vpack.c.bf16 %v532, %v532
  %v597 = vpack.c.bf16 %v533, %v533
  %v598 = vpack.c.bf16 %v534, %v534
  %v599 = vpack.c.bf16 %v535, %v535
  %v600 = vpack.c.bf16 %v536, %v536
  %v601 = vpack.c.bf16 %v537, %v537
  %v602 = vpack.c.bf16 %v538, %v538
  %v603 = vpack.c.bf16 %v539, %v539
  %v604 = vpack.c.bf16 %v540, %v540
  %v605 = vpack.c.bf16 %v541, %v541
  %v606 = vpack.c.bf16 %v542, %v542
  %v607 = vpack.c.bf16 %v543, %v543
  %v608 = vpack.c.bf16 %v544, %v544
  %v609 = vpack.c.bf16 %v545, %v545
  %v610 = vpack.c.bf16 %v546, %v546
  %v611 = vpack.c.bf16 %v547, %v547
  %v612 = vpack.c.bf16 %v548, %v548
  %v613 = vpack.c.bf16 %v549, %v549
  %v614 = vpack.c.bf16 %v550, %v550
  %v615 = vpack.c.bf16 %v551, %v551
  %v616 = vpack.c.bf16 %v552, %v552
  %v617 = vpack.c.bf16 %v553, %v553
  %v618 = vpack.c.bf16 %v554, %v554
  %v619 = vpack.c.bf16 %v555, %v555
  %v620 = vpack.c.bf16 %v556, %v556
  %v621 = vpack.c.bf16 %v557, %v557
  %v622 = vpack.c.bf16 %v558, %v558
  %v623 = vpack.c.bf16 %v559, %v559
  %v624 = vpack.c.bf16 %v560, %v560
  %v625 = vpack.c.bf16 %v561, %v561
  %v626 = vpack.c.bf16 %v562, %v562
  %v627 = vpack.c.bf16 %v563, %v563
  %v628 = vpack.c.bf16 %v564, %v564
  %v629 = vpack.c.bf16 %v565, %v565
  %v630 = vpack.c.bf16 %v566, %v566
  %v631 = vpack.c.bf16 %v567, %v567
  %v632 = vpack.c.bf16 %v568, %v568
  %v633 = vpack.c.bf16 %v569, %v569
  %v634 = vpack.c.bf16 %v570, %v570
  %635 = vst [vmem:[%s3] sm:$0xf] %v571
  %636 = vst [vmem:[%s3 + $0x4] sm:$0xf] %v572
  %637 = vst [vmem:[%s3 + $0x8] sm:$0xf] %v573
  %638 = vst [vmem:[%s3 + $0xc] sm:$0xf] %v574
  %639 = vst [vmem:[%s3 + $0x10] sm:$0xf] %v575
  %640 = vst [vmem:[%s3 + $0x14] sm:$0xf] %v576
  %641 = vst [vmem:[%s3 + $0x18] sm:$0xf] %v577
  %642 = vst [vmem:[%s3 + $0x1c] sm:$0xf] %v578
  %643 = vst [vmem:[%s3 + $0x20] sm:$0xf] %v579
  %644 = vst [vmem:[%s3 + $0x24] sm:$0xf] %v580
  %645 = vst [vmem:[%s3 + $0x28] sm:$0xf] %v581
  %646 = vst [vmem:[%s3 + $0x2c] sm:$0xf] %v582
  %647 = vst [vmem:[%s3 + $0x30] sm:$0xf] %v583
  %648 = vst [vmem:[%s3 + $0x34] sm:$0xf] %v584
  %649 = vst [vmem:[%s3 + $0x38] sm:$0xf] %v585
  %650 = vst [vmem:[%s3 + $0x3c] sm:$0xf] %v586
  %651 = vst [vmem:[%s3 + $0x40] sm:$0xf] %v587
  %652 = vst [vmem:[%s3 + $0x44] sm:$0xf] %v588
  %653 = vst [vmem:[%s3 + $0x48] sm:$0xf] %v589
  %654 = vst [vmem:[%s3 + $0x4c] sm:$0xf] %v590
  %655 = vst [vmem:[%s3 + $0x50] sm:$0xf] %v591
  %656 = vst [vmem:[%s3 + $0x54] sm:$0xf] %v592
  %657 = vst [vmem:[%s3 + $0x58] sm:$0xf] %v593
  %658 = vst [vmem:[%s3 + $0x5c] sm:$0xf] %v594
  %659 = vst [vmem:[%s3 + $0x60] sm:$0xf] %v595
  %660 = vst [vmem:[%s3 + $0x64] sm:$0xf] %v596
  %661 = vst [vmem:[%s3 + $0x68] sm:$0xf] %v597
  %662 = vst [vmem:[%s3 + $0x6c] sm:$0xf] %v598
  %663 = vst [vmem:[%s3 + $0x70] sm:$0xf] %v599
  %664 = vst [vmem:[%s3 + $0x74] sm:$0xf] %v600
  %665 = vst [vmem:[%s3 + $0x78] sm:$0xf] %v601
  %666 = vst [vmem:[%s3 + $0x7c] sm:$0xf] %v602
  %667 = vst [vmem:[%s3 + $0x80] sm:$0xf] %v603
  %668 = vst [vmem:[%s3 + $0x84] sm:$0xf] %v604
  %669 = vst [vmem:[%s3 + $0x88] sm:$0xf] %v605
  %670 = vst [vmem:[%s3 + $0x8c] sm:$0xf] %v606
  %671 = vst [vmem:[%s3 + $0x90] sm:$0xf] %v607
  %672 = vst [vmem:[%s3 + $0x94] sm:$0xf] %v608
  %673 = vst [vmem:[%s3 + $0x98] sm:$0xf] %v609
  %674 = vst [vmem:[%s3 + $0x9c] sm:$0xf] %v610
  %675 = vst [vmem:[%s3 + $0xa0] sm:$0xf] %v611
  %676 = vst [vmem:[%s3 + $0xa4] sm:$0xf] %v612
  %677 = vst [vmem:[%s3 + $0xa8] sm:$0xf] %v613
  %678 = vst [vmem:[%s3 + $0xac] sm:$0xf] %v614
  %679 = vst [vmem:[%s3 + $0xb0] sm:$0xf] %v615
  %680 = vst [vmem:[%s3 + $0xb4] sm:$0xf] %v616
  %681 = vst [vmem:[%s3 + $0xb8] sm:$0xf] %v617
  %682 = vst [vmem:[%s3 + $0xbc] sm:$0xf] %v618
  %683 = vst [vmem:[%s3 + $0xc0] sm:$0xf] %v619
  %684 = vst [vmem:[%s3 + $0xc4] sm:$0xf] %v620
  %685 = vst [vmem:[%s3 + $0xc8] sm:$0xf] %v621
  %686 = vst [vmem:[%s3 + $0xcc] sm:$0xf] %v622
  %687 = vst [vmem:[%s3 + $0xd0] sm:$0xf] %v623
  %688 = vst [vmem:[%s3 + $0xd4] sm:$0xf] %v624
  %689 = vst [vmem:[%s3 + $0xd8] sm:$0xf] %v625
  %690 = vst [vmem:[%s3 + $0xdc] sm:$0xf] %v626
  %691 = vst [vmem:[%s3 + $0xe0] sm:$0xf] %v627
  %692 = vst [vmem:[%s3 + $0xe4] sm:$0xf] %v628
  %693 = vst [vmem:[%s3 + $0xe8] sm:$0xf] %v629
  %694 = vst [vmem:[%s3 + $0xec] sm:$0xf] %v630
  %695 = vst [vmem:[%s3 + $0xf0] sm:$0xf] %v631
  %696 = vst [vmem:[%s3 + $0xf4] sm:$0xf] %v632
  %697 = vst [vmem:[%s3 + $0xf8] sm:$0xf] %v633
  %698 = vst [vmem:[%s3 + $0xfc] sm:$0xf] %v634
  // Predicated region
  $region14: #{bottleneck_forward.2} parent=0 // pred_check
    _
  $region15: #{bottleneck_forward.2} parent=0 // pred_check_branch
    %700 = sbr.rel (0) target = $region17
  $region16: #{bottleneck_forward.2} parent=0 // pred_region
    _
  $region17: #{bottleneck_forward.2} parent=0 // pred_fallthru
    _
  // Predicated region
  $region18: #{bottleneck_forward.2} parent=0 // pred_check
    _
  $region19: #{bottleneck_forward.2} parent=0 // pred_check_branch
    %702 = sbr.rel (0) target = $region21
  $region20: #{bottleneck_forward.2} parent=0 // pred_region
    _
  $region21: #{bottleneck_forward.2} parent=0 // pred_fallthru
    _

// kernel: bottleneck_forward.3
$region0: #{bottleneck_forward.3}
  #allocation0 [shape = 'u32[]', space=smem, size = 0x4, offset = 0x4, fixed_abs, tag = 'smem constant byte address 0x4 - core index']
  #allocation1 [shape = 'u32[72,128]{1,0:T(1,128)}', space=vmem, size = 0x9000, scoped, tag = 'internal scratch']
  #allocation2 [shape = 'f32[64,128]{1,0:T(8,128)}', space=vmem, size = 0x8000, scoped, tag = 'scratch operand']
  %s0 = inlined_call_operand.vmem [shape: bf16[2,9,9,128], index: 0, kind: input, shape index: {}]
  %s1 = inlined_call_operand.vmem [shape: bf16[2,9,9,128], index: 1, kind: input, shape index: {}]
  %s2 = inlined_call_operand.vmem [shape: bf16[2,9,9,128], index: 2, kind: input, shape index: {}]
  %s3 = inlined_call_operand.vmem [shape: bf16[2,9,9,128], index: 3, kind: input, shape index: {}]
  %s4 = inlined_call_operand.vmem [shape: bf16[9,128,128], index: 4, kind: input, shape index: {}]
  %s5 = inlined_call_operand.vmem [shape: f32[1,128], index: 5, kind: input, shape index: {}]
  %s6 = inlined_call_operand.vmem [shape: bf16[128,128], index: 6, kind: input, shape index: {}]
  %s7 = inlined_call_operand.vmem [shape: f32[1,128], index: 7, kind: input, shape index: {}]
  %s8 = inlined_call_operand.vmem [shape: bf16[2,64,128], index: 8, kind: input, shape index: {}]
  %s9 = inlined_call_operand.vmem [shape: bf16[128,128], index: 9, kind: input, shape index: {}]
  %s10 = inlined_call_operand.vmem [shape: bf16[2,64,128], index: 10, kind: output, shape index: {}]
  %s11 = sld [smem:[#allocation0]]
  $region77: #{bottleneck_forward.3} parent=0
    _
  %s13 = ssub.s32 1, %s11
  %s14 = scalar_select 0, %s13, %s11
  loop: start=0, step=1, limit=4
  $region2: #{bottleneck_forward.3} parent=0 // loop_pre_header
    _
  $region3: #{bottleneck_forward.3} parent=0 // loop_header
    %s16 = sphi 0, %s20
    %p17 = scmp.ge.s32.totalorder %s16, 4
    %s23 = sphi 0, %s35
    %s24 = sphi 0, %s31
    %s25 = sphi 0, %s23
    %s26 = sphi 0, %s24
    %s27 = sphi 0, %s25
    %s28 = sphi 0, %s26
    %s38 = sphi 0, %s40
    %s41 = sphi 0, %s38
    %s42 = sphi 0, %s41
    %s58 = sphi 0, %s42
    %s64 = sphi 0, %s66
    %s67 = sphi 0, %s64
    %s68 = sphi 0, %s67
    %s84 = sphi 0, %s68
    %s90 = sphi 0, %s92
    %s93 = sphi 0, %s90
    %s94 = sphi 0, %s93
    %s110 = sphi 0, %s94
    %s116 = sphi 0, %s118
    %s119 = sphi 0, %s116
    %s120 = sphi 0, %s119
    %s136 = sphi 0, %s120
    %s140 = sphi 0, %s140
    %s142 = sphi 0, %s140
    %s143 = sphi 0, %s142
    %s157 = sphi 0, %s143
    %s161 = sphi 0, %s161
    %s163 = sphi 0, %s161
    %s164 = sphi 0, %s163
    %s178 = sphi 0, %s164
    %s184 = sphi 0, %s186
    %s187 = sphi 0, %s184
    %s188 = sphi 0, %s187
    %s204 = sphi 0, %s188
    %s210 = sphi 0, %s212
    %s213 = sphi 0, %s210
    %s214 = sphi 0, %s213
    %s230 = sphi 0, %s214
    %s236 = sphi 0, %s238
    %s239 = sphi 0, %s236
    %s240 = sphi 0, %s239
    %s256 = sphi 0, %s240
    %s262 = sphi 0, %s264
    %s265 = sphi 0, %s262
    %s266 = sphi 0, %s265
    %s282 = sphi 0, %s266
    %s290 = sphi 0, %s292
    %s293 = sphi 0, %s290
    %s294 = sphi 0, %s293
    %s310 = sphi 0, %s294
  $region4: #{bottleneck_forward.3} parent=0 // loop_header_branch
    %19 = sbr.rel (%p17) target = $region8
  $region5: #{bottleneck_forward.3} parent=0 // loop_body
    %s21 = ssub.s32 %s16, 1
    %s22 = ssub.s32 %s16, 2
    %s29 = sadd.s32 1, %s24
    %p30 = scmp.ge.s32.totalorder %s29, 1
    %s31 = scalar_select %p30, 0, %s29
    %s32 = sadd.s32 1, %s23
    %s33 = scalar_select %p30, %s32, %s23
    %p34 = scmp.ge.s32.totalorder %s33, 2
    %s35 = scalar_select %p34, 0, %s33
    %s36 = ssub.s32 %s23, %s35
    %p37 = scmp.eq.s32.totalorder %s36, 0
    %s39 = sadd.s32 %s38, 1
    %s40 = scalar_select %p37, %s38, %s39
    %p43 = pneg %p37
    %p44 = scmp.eq.s32.totalorder %s16, 1
    %p45 = por %p43, %p44
    %p46 = scmp.ne.s32.totalorder %s38, %s41
    %p47 = scmp.eq.s32.totalorder %s16, 0
    %p48 = por %p46, %p47
    %p49 = scmp.ne.s32.totalorder %s38, %s41
    %p50 = scmp.eq.s32.totalorder %s21, 1
    %p51 = por %p49, %p50
    %p52 = scmp.ne.s32.totalorder %s41, %s42
    %p53 = scmp.eq.s32.totalorder %s21, 0
    %p54 = por %p52, %p53
    %p55 = scmp.ne.s32.totalorder %s41, %s42
    %p56 = scmp.eq.s32.totalorder %s22, 1
    %p57 = por %p55, %p56
    %p59 = scmp.ne.s32.totalorder %s42, %s58
    %p60 = scmp.eq.s32.totalorder %s22, 0
    %p61 = por %p59, %p60
    %s62 = ssub.s32 %s23, %s35
    %p63 = scmp.eq.s32.totalorder %s62, 0
    %s65 = sadd.s32 %s64, 1
    %s66 = scalar_select %p63, %s64, %s65
    %p69 = pneg %p63
    %p70 = scmp.eq.s32.totalorder %s16, 1
    %p71 = por %p69, %p70
    %p72 = scmp.ne.s32.totalorder %s64, %s67
    %p73 = scmp.eq.s32.totalorder %s16, 0
    %p74 = por %p72, %p73
    %p75 = scmp.ne.s32.totalorder %s64, %s67
    %p76 = scmp.eq.s32.totalorder %s21, 1
    %p77 = por %p75, %p76
    %p78 = scmp.ne.s32.totalorder %s67, %s68
    %p79 = scmp.eq.s32.totalorder %s21, 0
    %p80 = por %p78, %p79
    %p81 = scmp.ne.s32.totalorder %s67, %s68
    %p82 = scmp.eq.s32.totalorder %s22, 1
    %p83 = por %p81, %p82
    %p85 = scmp.ne.s32.totalorder %s68, %s84
    %p86 = scmp.eq.s32.totalorder %s22, 0
    %p87 = por %p85, %p86
    %s88 = ssub.s32 %s23, %s35
    %p89 = scmp.eq.s32.totalorder %s88, 0
    %s91 = sadd.s32 %s90, 1
    %s92 = scalar_select %p89, %s90, %s91
    %p95 = pneg %p89
    %p96 = scmp.eq.s32.totalorder %s16, 1
    %p97 = por %p95, %p96
    %p98 = scmp.ne.s32.totalorder %s90, %s93
    %p99 = scmp.eq.s32.totalorder %s16, 0
    %p100 = por %p98, %p99
    %p101 = scmp.ne.s32.totalorder %s90, %s93
    %p102 = scmp.eq.s32.totalorder %s21, 1
    %p103 = por %p101, %p102
    %p104 = scmp.ne.s32.totalorder %s93, %s94
    %p105 = scmp.eq.s32.totalorder %s21, 0
    %p106 = por %p104, %p105
    %p107 = scmp.ne.s32.totalorder %s93, %s94
    %p108 = scmp.eq.s32.totalorder %s22, 1
    %p109 = por %p107, %p108
    %p111 = scmp.ne.s32.totalorder %s94, %s110
    %p112 = scmp.eq.s32.totalorder %s22, 0
    %p113 = por %p111, %p112
    %s114 = ssub.s32 %s23, %s35
    %p115 = scmp.eq.s32.totalorder %s114, 0
    %s117 = sadd.s32 %s116, 1
    %s118 = scalar_select %p115, %s116, %s117
    %p121 = pneg %p115
    %p122 = scmp.eq.s32.totalorder %s16, 1
    %p123 = por %p121, %p122
    %p124 = scmp.ne.s32.totalorder %s116, %s119
    %p125 = scmp.eq.s32.totalorder %s16, 0
    %p126 = por %p124, %p125
    %p127 = scmp.ne.s32.totalorder %s116, %s119
    %p128 = scmp.eq.s32.totalorder %s21, 1
    %p129 = por %p127, %p128
    %p130 = scmp.ne.s32.totalorder %s119, %s120
    %p131 = scmp.eq.s32.totalorder %s21, 0
    %p132 = por %p130, %p131
    %p133 = scmp.ne.s32.totalorder %s119, %s120
    %p134 = scmp.eq.s32.totalorder %s22, 1
    %p135 = por %p133, %p134
    %p137 = scmp.ne.s32.totalorder %s120, %s136
    %p138 = scmp.eq.s32.totalorder %s22, 0
    %p139 = por %p137, %p138
    %s141 = sadd.s32 %s140, 1
    %p144 = scmp.eq.s32.totalorder %s16, 1
    %p145 = scmp.ne.s32.totalorder %s140, %s142
    %p146 = scmp.eq.s32.totalorder %s16, 0
    %p147 = por %p145, %p146
    %p148 = scmp.ne.s32.totalorder %s140, %s142
    %p149 = scmp.eq.s32.totalorder %s21, 1
    %p150 = por %p148, %p149
    %p151 = scmp.ne.s32.totalorder %s142, %s143
    %p152 = scmp.eq.s32.totalorder %s21, 0
    %p153 = por %p151, %p152
    %p154 = scmp.ne.s32.totalorder %s142, %s143
    %p155 = scmp.eq.s32.totalorder %s22, 1
    %p156 = por %p154, %p155
    %p158 = scmp.ne.s32.totalorder %s143, %s157
    %p159 = scmp.eq.s32.totalorder %s22, 0
    %p160 = por %p158, %p159
    %s162 = sadd.s32 %s161, 1
    %p165 = scmp.eq.s32.totalorder %s16, 1
    %p166 = scmp.ne.s32.totalorder %s161, %s163
    %p167 = scmp.eq.s32.totalorder %s16, 0
    %p168 = por %p166, %p167
    %p169 = scmp.ne.s32.totalorder %s161, %s163
    %p170 = scmp.eq.s32.totalorder %s21, 1
    %p171 = por %p169, %p170
    %p172 = scmp.ne.s32.totalorder %s163, %s164
    %p173 = scmp.eq.s32.totalorder %s21, 0
    %p174 = por %p172, %p173
    %p175 = scmp.ne.s32.totalorder %s163, %s164
    %p176 = scmp.eq.s32.totalorder %s22, 1
    %p177 = por %p175, %p176
    %p179 = scmp.ne.s32.totalorder %s164, %s178
    %p180 = scmp.eq.s32.totalorder %s22, 0
    %p181 = por %p179, %p180
    %s182 = ssub.s32 %s24, %s31
    %p183 = scmp.eq.s32.totalorder %s182, 0
    %s185 = sadd.s32 %s184, 1
    %s186 = scalar_select %p183, %s184, %s185
    %p189 = pneg %p183
    %p190 = scmp.eq.s32.totalorder %s16, 1
    %p191 = por %p189, %p190
    %p192 = scmp.ne.s32.totalorder %s184, %s187
    %p193 = scmp.eq.s32.totalorder %s16, 0
    %p194 = por %p192, %p193
    %p195 = scmp.ne.s32.totalorder %s184, %s187
    %p196 = scmp.eq.s32.totalorder %s21, 1
    %p197 = por %p195, %p196
    %p198 = scmp.ne.s32.totalorder %s187, %s188
    %p199 = scmp.eq.s32.totalorder %s21, 0
    %p200 = por %p198, %p199
    %p201 = scmp.ne.s32.totalorder %s187, %s188
    %p202 = scmp.eq.s32.totalorder %s22, 1
    %p203 = por %p201, %p202
    %p205 = scmp.ne.s32.totalorder %s188, %s204
    %p206 = scmp.eq.s32.totalorder %s22, 0
    %p207 = por %p205, %p206
    %s208 = ssub.s32 %s24, %s31
    %p209 = scmp.eq.s32.totalorder %s208, 0
    %s211 = sadd.s32 %s210, 1
    %s212 = scalar_select %p209, %s210, %s211
    %p215 = pneg %p209
    %p216 = scmp.eq.s32.totalorder %s16, 1
    %p217 = por %p215, %p216
    %p218 = scmp.ne.s32.totalorder %s210, %s213
    %p219 = scmp.eq.s32.totalorder %s16, 0
    %p220 = por %p218, %p219
    %p221 = scmp.ne.s32.totalorder %s210, %s213
    %p222 = scmp.eq.s32.totalorder %s21, 1
    %p223 = por %p221, %p222
    %p224 = scmp.ne.s32.totalorder %s213, %s214
    %p225 = scmp.eq.s32.totalorder %s21, 0
    %p226 = por %p224, %p225
    %p227 = scmp.ne.s32.totalorder %s213, %s214
    %p228 = scmp.eq.s32.totalorder %s22, 1
    %p229 = por %p227, %p228
    %p231 = scmp.ne.s32.totalorder %s214, %s230
    %p232 = scmp.eq.s32.totalorder %s22, 0
    %p233 = por %p231, %p232
    %s234 = ssub.s32 %s23, %s35
    %p235 = scmp.eq.s32.totalorder %s234, 0
    %s237 = sadd.s32 %s236, 1
    %s238 = scalar_select %p235, %s236, %s237
    %p241 = pneg %p235
    %p242 = scmp.eq.s32.totalorder %s16, 1
    %p243 = por %p241, %p242
    %p244 = scmp.ne.s32.totalorder %s236, %s239
    %p245 = scmp.eq.s32.totalorder %s16, 0
    %p246 = por %p244, %p245
    %p247 = scmp.ne.s32.totalorder %s236, %s239
    %p248 = scmp.eq.s32.totalorder %s21, 1
    %p249 = por %p247, %p248
    %p250 = scmp.ne.s32.totalorder %s239, %s240
    %p251 = scmp.eq.s32.totalorder %s21, 0
    %p252 = por %p250, %p251
    %p253 = scmp.ne.s32.totalorder %s239, %s240
    %p254 = scmp.eq.s32.totalorder %s22, 1
    %p255 = por %p253, %p254
    %p257 = scmp.ne.s32.totalorder %s240, %s256
    %p258 = scmp.eq.s32.totalorder %s22, 0
    %p259 = por %p257, %p258
    %s260 = ssub.s32 %s24, %s31
    %p261 = scmp.eq.s32.totalorder %s260, 0
    %s263 = sadd.s32 %s262, 1
    %s264 = scalar_select %p261, %s262, %s263
    %p267 = pneg %p261
    %p268 = scmp.eq.s32.totalorder %s16, 1
    %p269 = por %p267, %p268
    %p270 = scmp.ne.s32.totalorder %s262, %s265
    %p271 = scmp.eq.s32.totalorder %s16, 0
    %p272 = por %p270, %p271
    %p273 = scmp.ne.s32.totalorder %s262, %s265
    %p274 = scmp.eq.s32.totalorder %s21, 1
    %p275 = por %p273, %p274
    %p276 = scmp.ne.s32.totalorder %s265, %s266
    %p277 = scmp.eq.s32.totalorder %s21, 0
    %p278 = por %p276, %p277
    %p279 = scmp.ne.s32.totalorder %s265, %s266
    %p280 = scmp.eq.s32.totalorder %s22, 1
    %p281 = por %p279, %p280
    %p283 = scmp.ne.s32.totalorder %s266, %s282
    %p284 = scmp.eq.s32.totalorder %s22, 0
    %p285 = por %p283, %p284
    %s286 = ssub.s32 %s23, %s35
    %s287 = ssub.s32 %s24, %s31
    %s288 = sor.u32 %s286, %s287
    %p289 = scmp.eq.s32.totalorder %s288, 0
    %s291 = sadd.s32 %s290, 1
    %s292 = scalar_select %p289, %s290, %s291
    %p295 = pneg %p289
    %p296 = scmp.eq.s32.totalorder %s16, 1
    %p297 = por %p295, %p296
    %p298 = scmp.ne.s32.totalorder %s290, %s293
    %p299 = scmp.eq.s32.totalorder %s16, 0
    %p300 = por %p298, %p299
    %p301 = scmp.ne.s32.totalorder %s290, %s293
    %p302 = scmp.eq.s32.totalorder %s21, 1
    %p303 = por %p301, %p302
    %p304 = scmp.ne.s32.totalorder %s293, %s294
    %p305 = scmp.eq.s32.totalorder %s21, 0
    %p306 = por %p304, %p305
    %p307 = scmp.ne.s32.totalorder %s293, %s294
    %p308 = scmp.eq.s32.totalorder %s22, 1
    %p309 = por %p307, %p308
    %p311 = scmp.ne.s32.totalorder %s294, %s310
    %p312 = scmp.eq.s32.totalorder %s22, 0
    %p313 = por %p311, %p312
    %p314 = scmp.le.s32.totalorder 1, %s16
    %p315 = scmp.lt.s32.totalorder %s16, 3
    %p316 = pnand %p314, %p315
    %p317 = pneg %p316
    // Predicated region
    $region9: #{bottleneck_forward.3} parent=5 // pred_check
      _
    $region10: #{bottleneck_forward.3} parent=5 // pred_check_branch
      %319 = sbr.rel (%p316) target = $region12
    $region11: #{bottleneck_forward.3} parent=5 // pred_region
      %s320 = ssub.s32 %s16, 1
      // Predicated region
      $region13: #{bottleneck_forward.3} parent=11 // pred_check
        %p321 = pneg %p153
      $region14: #{bottleneck_forward.3} parent=11 // pred_check_branch
        %323 = sbr.rel (%p321) target = $region16
      $region15: #{bottleneck_forward.3} parent=11 // pred_region
        _
      $region16: #{bottleneck_forward.3} parent=11 // pred_fallthru
        _
      // Predicated region
      $region17: #{bottleneck_forward.3} parent=11 // pred_check
        %p324 = pneg %p174
      $region18: #{bottleneck_forward.3} parent=11 // pred_check_branch
        %326 = sbr.rel (%p324) target = $region20
      $region19: #{bottleneck_forward.3} parent=11 // pred_region
        _
      $region20: #{bottleneck_forward.3} parent=11 // pred_fallthru
        _
      // Predicated region
      $region21: #{bottleneck_forward.3} parent=11 // pred_check
        %p327 = pneg %p200
      $region22: #{bottleneck_forward.3} parent=11 // pred_check_branch
        %329 = sbr.rel (%p327) target = $region24
      $region23: #{bottleneck_forward.3} parent=11 // pred_region
        %p330 = scmp.lt.s32.totalorder %s26, 0
        %s331 = scalar_select %p330, %s26, 0
        %s332 = smul.addr %s331, 4
        %s333 = scalar_lea.vmem %s6, %s332
      $region24: #{bottleneck_forward.3} parent=11 // pred_fallthru
        _
      // Predicated region
      $region25: #{bottleneck_forward.3} parent=11 // pred_check
        %p334 = pneg %p226
      $region26: #{bottleneck_forward.3} parent=11 // pred_check_branch
        %336 = sbr.rel (%p334) target = $region28
      $region27: #{bottleneck_forward.3} parent=11 // pred_region
        %p337 = scmp.lt.s32.totalorder %s26, 0
        %s338 = scalar_select %p337, %s26, 0
        %s339 = scalar_lea.vmem %s7, %s338
      $region28: #{bottleneck_forward.3} parent=11 // pred_fallthru
        _
      // Predicated region
      $region29: #{bottleneck_forward.3} parent=11 // pred_check
        %p340 = pneg %p278
      $region30: #{bottleneck_forward.3} parent=11 // pred_check_branch
        %342 = sbr.rel (%p340) target = $region32
      $region31: #{bottleneck_forward.3} parent=11 // pred_region
        %p343 = scmp.lt.s32.totalorder %s26, 0
        %s344 = scalar_select %p343, %s26, 0
        %s345 = smul.addr %s344, 4
        %s346 = scalar_lea.vmem %s9, %s345
      $region32: #{bottleneck_forward.3} parent=11 // pred_fallthru
        _
    $region12: #{bottleneck_forward.3} parent=5 // pred_fallthru
      _
    %p347 = scmp.lt.s32.totalorder %s16, 2
    // Predicated region
    $region33: #{bottleneck_forward.3} parent=5 // pred_check
      %p348 = pneg %p347
    $region34: #{bottleneck_forward.3} parent=5 // pred_check_branch
      %350 = sbr.rel (%p348) target = $region36
    $region35: #{bottleneck_forward.3} parent=5 // pred_region
      // Predicated region
      $region37: #{bottleneck_forward.3} parent=35 // pred_check
        %p351 = pneg %p48
      $region38: #{bottleneck_forward.3} parent=35 // pred_check_branch
        %353 = sbr.rel (%p351) target = $region40
      $region39: #{bottleneck_forward.3} parent=35 // pred_region
        %p354 = scmp.lt.s32.totalorder %s23, 1
        %s355 = scalar_select %p354, %s23, 1
        %s356 = smul.addr %s355, 18
        %s357 = smul.addr %s356, 4
        %s358 = scalar_lea.vmem %s0, %s357
      $region40: #{bottleneck_forward.3} parent=35 // pred_fallthru
        _
      // Predicated region
      $region41: #{bottleneck_forward.3} parent=35 // pred_check
        %p359 = pneg %p74
      $region42: #{bottleneck_forward.3} parent=35 // pred_check_branch
        %361 = sbr.rel (%p359) target = $region44
      $region43: #{bottleneck_forward.3} parent=35 // pred_region
        %p362 = scmp.lt.s32.totalorder %s23, 1
        %s363 = scalar_select %p362, %s23, 1
        %s364 = smul.addr %s363, 18
        %s365 = smul.addr %s364, 4
        %s366 = scalar_lea.vmem %s1, %s365
      $region44: #{bottleneck_forward.3} parent=35 // pred_fallthru
        _
      // Predicated region
      $region45: #{bottleneck_forward.3} parent=35 // pred_check
        %p367 = pneg %p100
      $region46: #{bottleneck_forward.3} parent=35 // pred_check_branch
        %369 = sbr.rel (%p367) target = $region48
      $region47: #{bottleneck_forward.3} parent=35 // pred_region
        %p370 = scmp.lt.s32.totalorder %s23, 1
        %s371 = scalar_select %p370, %s23, 1
        %s372 = smul.addr %s371, 18
        %s373 = smul.addr %s372, 4
        %s374 = scalar_lea.vmem %s2, %s373
      $region48: #{bottleneck_forward.3} parent=35 // pred_fallthru
        _
      // Predicated region
      $region49: #{bottleneck_forward.3} parent=35 // pred_check
        %p375 = pneg %p126
      $region50: #{bottleneck_forward.3} parent=35 // pred_check_branch
        %377 = sbr.rel (%p375) target = $region52
      $region51: #{bottleneck_forward.3} parent=35 // pred_region
        %p378 = scmp.lt.s32.totalorder %s23, 1
        %s379 = scalar_select %p378, %s23, 1
        %s380 = smul.addr %s379, 18
        %s381 = smul.addr %s380, 4
        %s382 = scalar_lea.vmem %s3, %s381
      $region52: #{bottleneck_forward.3} parent=35 // pred_fallthru
        _
      // Predicated region
      $region53: #{bottleneck_forward.3} parent=35 // pred_check
        %p383 = pneg %p246
      $region54: #{bottleneck_forward.3} parent=35 // pred_check_branch
        %385 = sbr.rel (%p383) target = $region56
      $region55: #{bottleneck_forward.3} parent=35 // pred_region
        %p386 = scmp.lt.s32.totalorder %s23, 1
        %s387 = scalar_select %p386, %s23, 1
        %s388 = smul.addr %s387, 8
        %s389 = smul.addr %s388, 4
        %s390 = scalar_lea.vmem %s8, %s389
      $region56: #{bottleneck_forward.3} parent=35 // pred_fallthru
        _
    $region36: #{bottleneck_forward.3} parent=5 // pred_fallthru
      _
    %p391 = scmp.le.s32.totalorder 1, %s16
    %p392 = scmp.lt.s32.totalorder %s16, 3
    %p393 = pnand %p391, %p392
    %p394 = pneg %p393
    // Predicated region
    $region57: #{bottleneck_forward.3} parent=5 // pred_check
      _
    $region58: #{bottleneck_forward.3} parent=5 // pred_check_branch
      %396 = sbr.rel (%p393) target = $region60
    $region59: #{bottleneck_forward.3} parent=5 // pred_region
      %s397 = ssub.s32 %s16, 1
      %p398 = scmp.lt.s32.totalorder %s25, 1
      %s399 = scalar_select %p398, %s25, 1
      %s400 = smul.addr %s399, 18
      %s401 = smul.addr %s400, 4
      %s402 = scalar_lea.vmem %s0, %s401
      %p403 = pneg %p54
      %p404 = pneg %p51
      %p405 = scmp.lt.s32.totalorder %s25, 1
      %s406 = scalar_select %p405, %s25, 1
      %s407 = smul.addr %s406, 18
      %s408 = smul.addr %s407, 4
      %s409 = scalar_lea.vmem %s1, %s408
      %p410 = pneg %p80
      %p411 = pneg %p77
      %p412 = scmp.lt.s32.totalorder %s25, 1
      %s413 = scalar_select %p412, %s25, 1
      %s414 = smul.addr %s413, 18
      %s415 = smul.addr %s414, 4
      %s416 = scalar_lea.vmem %s2, %s415
      %p417 = pneg %p106
      %p418 = pneg %p103
      %p419 = scmp.lt.s32.totalorder %s25, 1
      %s420 = scalar_select %p419, %s25, 1
      %s421 = smul.addr %s420, 18
      %s422 = smul.addr %s421, 4
      %s423 = scalar_lea.vmem %s3, %s422
      %p424 = pneg %p132
      %p425 = pneg %p129
      %p426 = pneg %p153
      %p427 = pneg %p150
      %p428 = pneg %p174
      %p429 = pneg %p171
      %p430 = scmp.lt.s32.totalorder %s26, 0
      %s431 = scalar_select %p430, %s26, 0
      %s432 = smul.addr %s431, 4
      %s433 = scalar_lea.vmem %s6, %s432
      %p434 = pneg %p200
      %p435 = pneg %p197
      %p436 = scmp.lt.s32.totalorder %s26, 0
      %s437 = scalar_select %p436, %s26, 0
      %s438 = scalar_lea.vmem %s7, %s437
      %p439 = pneg %p226
      %p440 = pneg %p223
      %p441 = scmp.lt.s32.totalorder %s25, 1
      %s442 = scalar_select %p441, %s25, 1
      %s443 = smul.addr %s442, 8
      %s444 = smul.addr %s443, 4
      %s445 = scalar_lea.vmem %s8, %s444
      %p446 = pneg %p252
      %p447 = pneg %p249
      %p448 = scmp.lt.s32.totalorder %s26, 0
      %s449 = scalar_select %p448, %s26, 0
      %s450 = smul.addr %s449, 4
      %s451 = scalar_lea.vmem %s9, %s450
      %p452 = pneg %p278
      %p453 = pneg %p275
      %p454 = pneg %p306
      %p455 = pneg %p303
      %p456 = scmp.lt.s32.totalorder %s25, 1
      %s457 = scalar_select %p456, %s25, 1
      %p458 = scmp.lt.s32.totalorder %s26, 0
      %s459 = scalar_select %p458, %s26, 0
      %s460 = smul.addr %s457, 8
      %s461 = sadd.s32 %s459, %s460
      %s462 = smul.addr %s461, 4
      %s463 = scalar_lea.vmem %s10, %s462
      %p464 = scmp.lt.s32.totalorder %s25, 1
      %s465 = scalar_select %p464, %s25, 1
      %s466 = smul.addr %s465, 18
      %s467 = smul.addr %s466, 4
      %s468 = scalar_lea.vmem %s0, %s467
      %p469 = scmp.lt.s32.totalorder %s25, 1
      %s470 = scalar_select %p469, %s25, 1
      %s471 = smul.addr %s470, 18
      %s472 = smul.addr %s471, 4
      %s473 = scalar_lea.vmem %s1, %s472
      %p474 = scmp.lt.s32.totalorder %s25, 1
      %s475 = scalar_select %p474, %s25, 1
      %s476 = smul.addr %s475, 18
      %s477 = smul.addr %s476, 4
      %s478 = scalar_lea.vmem %s2, %s477
      %p479 = scmp.lt.s32.totalorder %s25, 1
      %s480 = scalar_select %p479, %s25, 1
      %s481 = smul.addr %s480, 18
      %s482 = smul.addr %s481, 4
      %s483 = scalar_lea.vmem %s3, %s482
      %p484 = scmp.lt.s32.totalorder %s26, 0
      %s485 = scalar_select %p484, %s26, 0
      %s486 = smul.addr %s485, 4
      %s487 = scalar_lea.vmem %s6, %s486
      %p488 = scmp.lt.s32.totalorder %s26, 0
      %s489 = scalar_select %p488, %s26, 0
      %s490 = scalar_lea.vmem %s7, %s489
      %p491 = scmp.lt.s32.totalorder %s25, 1
      %s492 = scalar_select %p491, %s25, 1
      %s493 = smul.addr %s492, 8
      %s494 = smul.addr %s493, 4
      %s495 = scalar_lea.vmem %s8, %s494
      %p496 = scmp.lt.s32.totalorder %s26, 0
      %s497 = scalar_select %p496, %s26, 0
      %s498 = smul.addr %s497, 4
      %s499 = scalar_lea.vmem %s9, %s498
      %p500 = scmp.lt.s32.totalorder %s25, 1
      %s501 = scalar_select %p500, %s25, 1
      %p502 = scmp.lt.s32.totalorder %s26, 0
      %s503 = scalar_select %p502, %s26, 0
      %s504 = smul.addr %s501, 8
      %s505 = sadd.s32 %s503, %s504
      %s506 = smul.addr %s505, 4
      %s507 = scalar_lea.vmem %s10, %s506
      %p508 = scmp.eq.s32.totalorder %s26, 0
      // Predicated region
      $region61: #{bottleneck_forward.3} parent=59 // pred_check
        %p509 = pneg %p508
      $region62: #{bottleneck_forward.3} parent=59 // pred_check_branch
        %511 = sbr.rel (%p509) target = $region64
      $region63: #{bottleneck_forward.3} parent=59 // pred_region
        %512 = vst [vmem:[#allocation2] sm:$0xff] 0.0
        %513 = vst [vmem:[#allocation2 + $0x8] sm:$0xff] 0.0
        %514 = vst [vmem:[#allocation2 + $0x10] sm:$0xff] 0.0
        %515 = vst [vmem:[#allocation2 + $0x18] sm:$0xff] 0.0
        %516 = vst [vmem:[#allocation2 + $0x20] sm:$0xff] 0.0
        %517 = vst [vmem:[#allocation2 + $0x28] sm:$0xff] 0.0
        %518 = vst [vmem:[#allocation2 + $0x30] sm:$0xff] 0.0
        %519 = vst [vmem:[#allocation2 + $0x38] sm:$0xff] 0.0
        %v520 = vld [vmem:[%s468] sm:$0xf]
        %v521 = vld [vmem:[%s468 + $0x8] sm:$0xf]
        %v522 = vld [vmem:[%s468 + $0x10] sm:$0xf]
        %v523 = vld [vmem:[%s468 + $0x18] sm:$0xf]
        %v524 = vld [vmem:[%s468 + $0x20] sm:$0xf]
        %v525 = vld [vmem:[%s468 + $0x28] sm:$0xf]
        %v526 = vld [vmem:[%s468 + $0x30] sm:$0xf]
        %v527 = vld [vmem:[%s468 + $0x38] sm:$0xf]
        %v528 = vld [vmem:[#allocation2] sm:$0xff]
        %v529 = vld [vmem:[#allocation2 + $0x8] sm:$0xff]
        %v530 = vld [vmem:[#allocation2 + $0x10] sm:$0xff]
        %v531 = vld [vmem:[#allocation2 + $0x18] sm:$0xff]
        %v532 = vld [vmem:[#allocation2 + $0x20] sm:$0xff]
        %v533 = vld [vmem:[#allocation2 + $0x28] sm:$0xff]
        %v534 = vld [vmem:[#allocation2 + $0x30] sm:$0xff]
        %v535 = vld [vmem:[#allocation2 + $0x38] sm:$0xff]
        %v536 = vld [vmem:[%s4] sm:$0xf]
        %v537 = vld [vmem:[%s4 + $0x4] sm:$0xf]
        %v538 = vld [vmem:[%s4 + $0x8] sm:$0xf]
        %v539 = vld [vmem:[%s4 + $0xc] sm:$0xf]
        %v540 = vld [vmem:[%s4 + $0x10] sm:$0xf]
        %v541 = vld [vmem:[%s4 + $0x14] sm:$0xf]
        %v542 = vld [vmem:[%s4 + $0x18] sm:$0xf]
        %v543 = vld [vmem:[%s4 + $0x1c] sm:$0xf]
        %v544 = vld [vmem:[%s4 + $0x20] sm:$0xf]
        %v545 = vld [vmem:[%s4 + $0x24] sm:$0xf]
        %v546 = vld [vmem:[%s4 + $0x28] sm:$0xf]
        %v547 = vld [vmem:[%s4 + $0x2c] sm:$0xf]
        %v548 = vld [vmem:[%s4 + $0x30] sm:$0xf]
        %v549 = vld [vmem:[%s4 + $0x34] sm:$0xf]
        %v550 = vld [vmem:[%s4 + $0x38] sm:$0xf]
        %v551 = vld [vmem:[%s4 + $0x3c] sm:$0xf]
        %v560 = vunpack.c.l.b16 %v520
        %v561 = vunpack.c.l.b16 %v521
        %v562 = vunpack.c.l.b16 %v522
        %v563 = vunpack.c.l.b16 %v523
        %v564 = vunpack.c.l.b16 %v524
        %v565 = vunpack.c.l.b16 %v525
        %v566 = vunpack.c.l.b16 %v526
        %v567 = vunpack.c.l.b16 %v527
        %v568 = vpack.c.b16 %v561, %v560
        %v569 = vpack.c.b16 %v563, %v562
        %v570 = vpack.c.b16 %v565, %v564
        %v571 = vpack.c.b16 %v567, %v566
        %v592 = vunpack.c.l.b16 %v536
        %v593 = vunpack.c.l.b16 %v537
        %v594 = vunpack.c.l.b16 %v538
        %v595 = vunpack.c.l.b16 %v539
        %v596 = vunpack.c.l.b16 %v540
        %v597 = vunpack.c.l.b16 %v541
        %v598 = vunpack.c.l.b16 %v542
        %v599 = vunpack.c.l.b16 %v543
        %v600 = vunpack.c.l.b16 %v544
        %v601 = vunpack.c.l.b16 %v545
        %v602 = vunpack.c.l.b16 %v546
        %v603 = vunpack.c.l.b16 %v547
        %v604 = vunpack.c.l.b16 %v548
        %v605 = vunpack.c.l.b16 %v549
        %v606 = vunpack.c.l.b16 %v550
        %v607 = vunpack.c.l.b16 %v551
        %v608 = vpack.c.b16 %v593, %v592
        %v609 = vpack.c.b16 %v595, %v594
        %v610 = vpack.c.b16 %v597, %v596
        %v611 = vpack.c.b16 %v599, %v598
        %v612 = vpack.c.b16 %v601, %v600
        %v613 = vpack.c.b16 %v603, %v602
        %v614 = vpack.c.b16 %v605, %v604
        %v615 = vpack.c.b16 %v607, %v606
        %624 = vmatpush.bf16.msra.mxu0 %v615
        %625 = vmatpush.bf16.msra.mxu0 %v614
        %626 = vmatpush.bf16.msra.mxu0 %v613
        %627 = vmatpush.bf16.msra.mxu0 %v612
        %628 = vmatpush.bf16.msra.mxu0 %v611
        %629 = vmatpush.bf16.msra.mxu0 %v610
        %630 = vmatpush.bf16.msra.mxu0 %v609
        %631 = vmatpush.bf16.msra.mxu0 %v608
        %632 = vmatmul.bf16.gmra.mxu0 %v568
        %v633 = vpop.f32.mrf.mxu0
        %v634 = vadd.f32 0.0, %v633
        %v635 = vpop.f32.mrf.mxu0
        %v636 = vadd.f32 0.0, %v635
        %637 = vmatmul.bf16.gmra.mxu0 %v569
        %v638 = vpop.f32.mrf.mxu0
        %v639 = vadd.f32 0.0, %v638
        %v640 = vpop.f32.mrf.mxu0
        %v641 = vadd.f32 0.0, %v640
        %642 = vmatmul.bf16.gmra.mxu0 %v570
        %v643 = vpop.f32.mrf.mxu0
        %v644 = vadd.f32 0.0, %v643
        %v645 = vpop.f32.mrf.mxu0
        %v646 = vadd.f32 0.0, %v645
        %647 = vmatmul.bf16.gmra.mxu0 %v571
        %v648 = vpop.f32.mrf.mxu0
        %v649 = vadd.f32 0.0, %v648
        %v650 = vpop.f32.mrf.mxu0
        %v651 = vadd.f32 0.0, %v650
        %652 = vdwg.mxu0
        %v653 = vadd.f32 %v528, %v634
        %v654 = vadd.f32 %v529, %v636
        %v655 = vadd.f32 %v530, %v639
        %v656 = vadd.f32 %v531, %v641
        %v657 = vadd.f32 %v532, %v644
        %v658 = vadd.f32 %v533, %v646
        %v659 = vadd.f32 %v534, %v649
        %v660 = vadd.f32 %v535, %v651
        %661 = vst [vmem:[#allocation2] sm:$0xff] %v653
        %662 = vst [vmem:[#allocation2 + $0x8] sm:$0xff] %v654
        %663 = vst [vmem:[#allocation2 + $0x10] sm:$0xff] %v655
        %664 = vst [vmem:[#allocation2 + $0x18] sm:$0xff] %v656
        %665 = vst [vmem:[#allocation2 + $0x20] sm:$0xff] %v657
        %666 = vst [vmem:[#allocation2 + $0x28] sm:$0xff] %v658
        %667 = vst [vmem:[#allocation2 + $0x30] sm:$0xff] %v659
        %668 = vst [vmem:[#allocation2 + $0x38] sm:$0xff] %v660
        %v669 = vld [vmem:[%s473] sm:$0xf]
        %v670 = vld [vmem:[%s473 + $0x8] sm:$0xf]
        %v671 = vld [vmem:[%s473 + $0x10] sm:$0xf]
        %v672 = vld [vmem:[%s473 + $0x18] sm:$0xf]
        %v673 = vld [vmem:[%s473 + $0x20] sm:$0xf]
        %v674 = vld [vmem:[%s473 + $0x28] sm:$0xf]
        %v675 = vld [vmem:[%s473 + $0x30] sm:$0xf]
        %v676 = vld [vmem:[%s473 + $0x38] sm:$0xf]
        %v677 = vld [vmem:[#allocation2] sm:$0xff]
        %v678 = vld [vmem:[#allocation2 + $0x8] sm:$0xff]
        %v679 = vld [vmem:[#allocation2 + $0x10] sm:$0xff]
        %v680 = vld [vmem:[#allocation2 + $0x18] sm:$0xff]
        %v681 = vld [vmem:[#allocation2 + $0x20] sm:$0xff]
        %v682 = vld [vmem:[#allocation2 + $0x28] sm:$0xff]
        %v683 = vld [vmem:[#allocation2 + $0x30] sm:$0xff]
        %v684 = vld [vmem:[#allocation2 + $0x38] sm:$0xff]
        %s685 = scalar_lea.vmem %s4, 64
        %v686 = vld [vmem:[%s685] sm:$0xf]
        %v687 = vld [vmem:[%s685 + $0x4] sm:$0xf]
        %v688 = vld [vmem:[%s685 + $0x8] sm:$0xf]
        %v689 = vld [vmem:[%s685 + $0xc] sm:$0xf]
        %v690 = vld [vmem:[%s685 + $0x10] sm:$0xf]
        %v691 = vld [vmem:[%s685 + $0x14] sm:$0xf]
        %v692 = vld [vmem:[%s685 + $0x18] sm:$0xf]
        %v693 = vld [vmem:[%s685 + $0x1c] sm:$0xf]
        %v694 = vld [vmem:[%s685 + $0x20] sm:$0xf]
        %v695 = vld [vmem:[%s685 + $0x24] sm:$0xf]
        %v696 = vld [vmem:[%s685 + $0x28] sm:$0xf]
        %v697 = vld [vmem:[%s685 + $0x2c] sm:$0xf]
        %v698 = vld [vmem:[%s685 + $0x30] sm:$0xf]
        %v699 = vld [vmem:[%s685 + $0x34] sm:$0xf]
        %v700 = vld [vmem:[%s685 + $0x38] sm:$0xf]
        %v701 = vld [vmem:[%s685 + $0x3c] sm:$0xf]
        %v710 = vunpack.c.l.b16 %v669
        %v711 = vunpack.c.l.b16 %v670
        %v712 = vunpack.c.l.b16 %v671
        %v713 = vunpack.c.l.b16 %v672
        %v714 = vunpack.c.l.b16 %v673
        %v715 = vunpack.c.l.b16 %v674
        %v716 = vunpack.c.l.b16 %v675
        %v717 = vunpack.c.l.b16 %v676
        %v718 = vpack.c.b16 %v711, %v710
        %v719 = vpack.c.b16 %v713, %v712
        %v720 = vpack.c.b16 %v715, %v714
        %v721 = vpack.c.b16 %v717, %v716
        %v742 = vunpack.c.l.b16 %v686
        %v743 = vunpack.c.l.b16 %v687
        %v744 = vunpack.c.l.b16 %v688
        %v745 = vunpack.c.l.b16 %v689
        %v746 = vunpack.c.l.b16 %v690
        %v747 = vunpack.c.l.b16 %v691
        %v748 = vunpack.c.l.b16 %v692
        %v749 = vunpack.c.l.b16 %v693
        %v750 = vunpack.c.l.b16 %v694
        %v751 = vunpack.c.l.b16 %v695
        %v752 = vunpack.c.l.b16 %v696
        %v753 = vunpack.c.l.b16 %v697
        %v754 = vunpack.c.l.b16 %v698
        %v755 = vunpack.c.l.b16 %v699
        %v756 = vunpack.c.l.b16 %v700
        %v757 = vunpack.c.l.b16 %v701
        %v758 = vpack.c.b16 %v743, %v742
        %v759 = vpack.c.b16 %v745, %v744
        %v760 = vpack.c.b16 %v747, %v746
        %v761 = vpack.c.b16 %v749, %v748
        %v762 = vpack.c.b16 %v751, %v750
        %v763 = vpack.c.b16 %v753, %v752
        %v764 = vpack.c.b16 %v755, %v754
        %v765 = vpack.c.b16 %v757, %v756
        %774 = vmatpush.bf16.msra.mxu0 %v765
        %775 = vmatpush.bf16.msra.mxu0 %v764
        %776 = vmatpush.bf16.msra.mxu0 %v763
        %777 = vmatpush.bf16.msra.mxu0 %v762
        %778 = vmatpush.bf16.msra.mxu0 %v761
        %779 = vmatpush.bf16.msra.mxu0 %v760
        %780 = vmatpush.bf16.msra.mxu0 %v759
        %781 = vmatpush.bf16.msra.mxu0 %v758
        %782 = vmatmul.bf16.gmra.mxu0 %v718
        %v783 = vpop.f32.mrf.mxu0
        %v784 = vadd.f32 0.0, %v783
        %v785 = vpop.f32.mrf.mxu0
        %v786 = vadd.f32 0.0, %v785
        %787 = vmatmul.bf16.gmra.mxu0 %v719
        %v788 = vpop.f32.mrf.mxu0
        %v789 = vadd.f32 0.0, %v788
        %v790 = vpop.f32.mrf.mxu0
        %v791 = vadd.f32 0.0, %v790
        %792 = vmatmul.bf16.gmra.mxu0 %v720
        %v793 = vpop.f32.mrf.mxu0
        %v794 = vadd.f32 0.0, %v793
        %v795 = vpop.f32.mrf.mxu0
        %v796 = vadd.f32 0.0, %v795
        %797 = vmatmul.bf16.gmra.mxu0 %v721
        %v798 = vpop.f32.mrf.mxu0
        %v799 = vadd.f32 0.0, %v798
        %v800 = vpop.f32.mrf.mxu0
        %v801 = vadd.f32 0.0, %v800
        %802 = vdwg.mxu0
        %v803 = vadd.f32 %v677, %v784
        %v804 = vadd.f32 %v678, %v786
        %v805 = vadd.f32 %v679, %v789
        %v806 = vadd.f32 %v680, %v791
        %v807 = vadd.f32 %v681, %v794
        %v808 = vadd.f32 %v682, %v796
        %v809 = vadd.f32 %v683, %v799
        %v810 = vadd.f32 %v684, %v801
        %811 = vst [vmem:[#allocation2] sm:$0xff] %v803
        %812 = vst [vmem:[#allocation2 + $0x8] sm:$0xff] %v804
        %813 = vst [vmem:[#allocation2 + $0x10] sm:$0xff] %v805
        %814 = vst [vmem:[#allocation2 + $0x18] sm:$0xff] %v806
        %815 = vst [vmem:[#allocation2 + $0x20] sm:$0xff] %v807
        %816 = vst [vmem:[#allocation2 + $0x28] sm:$0xff] %v808
        %817 = vst [vmem:[#allocation2 + $0x30] sm:$0xff] %v809
        %818 = vst [vmem:[#allocation2 + $0x38] sm:$0xff] %v810
        %v819 = vld [vmem:[%s468] sm:$0xf]
        %v820 = vld [vmem:[%s468 + $0x4] sm:$0x1]
        %v821 = vld [vmem:[%s468 + $0x8] sm:$0xf]
        %v822 = vld [vmem:[%s468 + $0xc] sm:$0x1]
        %v823 = vld [vmem:[%s468 + $0x10] sm:$0xf]
        %v824 = vld [vmem:[%s468 + $0x14] sm:$0x1]
        %v825 = vld [vmem:[%s468 + $0x18] sm:$0xf]
        %v826 = vld [vmem:[%s468 + $0x1c] sm:$0x1]
        %v827 = vld [vmem:[%s468 + $0x20] sm:$0xf]
        %v828 = vld [vmem:[%s468 + $0x24] sm:$0x1]
        %v829 = vld [vmem:[%s468 + $0x28] sm:$0xf]
        %v830 = vld [vmem:[%s468 + $0x2c] sm:$0x1]
        %v831 = vld [vmem:[%s468 + $0x30] sm:$0xf]
        %v832 = vld [vmem:[%s468 + $0x34] sm:$0x1]
        %v833 = vld [vmem:[%s468 + $0x38] sm:$0xf]
        %v834 = vld [vmem:[%s468 + $0x3c] sm:$0x1]
        %vm835 = vsmask.f32 3328
        %vm836 = vsmask.f32 7440
        %vm837 = vmor %vm835, %vm836
        %v839 = vshrl.u32 %v819, 16
        %v841 = vrot.slane %v839, 4
        %v842 = vshll.u32 %v819, 16
        %v844 = vrot.slane %v842, 5
        %v845 = vor.u32 %v841, %v844
        %v846 = vrot.slane %v845, 4
        %v848 = vshll.u32 %v820, 16
        %v850 = vrot.slane %v848, 5
        %v851 = vsel %vm837, %v846, %v850
        %v853 = vshrl.u32 %v821, 16
        %v855 = vrot.slane %v853, 4
        %v856 = vshll.u32 %v821, 16
        %v858 = vrot.slane %v856, 5
        %v859 = vor.u32 %v855, %v858
        %v860 = vrot.slane %v859, 4
        %v862 = vshll.u32 %v822, 16
        %v864 = vrot.slane %v862, 5
        %v865 = vsel %vm837, %v860, %v864
        %v867 = vshrl.u32 %v823, 16
        %v869 = vrot.slane %v867, 4
        %v870 = vshll.u32 %v823, 16
        %v872 = vrot.slane %v870, 5
        %v873 = vor.u32 %v869, %v872
        %v874 = vrot.slane %v873, 4
        %v876 = vshll.u32 %v824, 16
        %v878 = vrot.slane %v876, 5
        %v879 = vsel %vm837, %v874, %v878
        %v881 = vshrl.u32 %v825, 16
        %v883 = vrot.slane %v881, 4
        %v884 = vshll.u32 %v825, 16
        %v886 = vrot.slane %v884, 5
        %v887 = vor.u32 %v883, %v886
        %v888 = vrot.slane %v887, 4
        %v890 = vshll.u32 %v826, 16
        %v892 = vrot.slane %v890, 5
        %v893 = vsel %vm837, %v888, %v892
        %v895 = vshrl.u32 %v827, 16
        %v897 = vrot.slane %v895, 4
        %v898 = vshll.u32 %v827, 16
        %v900 = vrot.slane %v898, 5
        %v901 = vor.u32 %v897, %v900
        %v902 = vrot.slane %v901, 4
        %v904 = vshll.u32 %v828, 16
        %v906 = vrot.slane %v904, 5
        %v907 = vsel %vm837, %v902, %v906
        %v909 = vshrl.u32 %v829, 16
        %v911 = vrot.slane %v909, 4
        %v912 = vshll.u32 %v829, 16
        %v914 = vrot.slane %v912, 5
        %v915 = vor.u32 %v911, %v914
        %v916 = vrot.slane %v915, 4
        %v918 = vshll.u32 %v830, 16
        %v920 = vrot.slane %v918, 5
        %v921 = vsel %vm837, %v916, %v920
        %v923 = vshrl.u32 %v831, 16
        %v925 = vrot.slane %v923, 4
        %v926 = vshll.u32 %v831, 16
        %v928 = vrot.slane %v926, 5
        %v929 = vor.u32 %v925, %v928
        %v930 = vrot.slane %v929, 4
        %v932 = vshll.u32 %v832, 16
        %v934 = vrot.slane %v932, 5
        %v935 = vsel %vm837, %v930, %v934
        %v937 = vshrl.u32 %v833, 16
        %v939 = vrot.slane %v937, 4
        %v940 = vshll.u32 %v833, 16
        %v942 = vrot.slane %v940, 5
        %v943 = vor.u32 %v939, %v942
        %v944 = vrot.slane %v943, 4
        %v946 = vshll.u32 %v834, 16
        %v948 = vrot.slane %v946, 5
        %v949 = vsel %vm837, %v944, %v948
        %v950 = vld [vmem:[#allocation2] sm:$0xff]
        %v951 = vld [vmem:[#allocation2 + $0x8] sm:$0xff]
        %v952 = vld [vmem:[#allocation2 + $0x10] sm:$0xff]
        %v953 = vld [vmem:[#allocation2 + $0x18] sm:$0xff]
        %v954 = vld [vmem:[#allocation2 + $0x20] sm:$0xff]
        %v955 = vld [vmem:[#allocation2 + $0x28] sm:$0xff]
        %v956 = vld [vmem:[#allocation2 + $0x30] sm:$0xff]
        %v957 = vld [vmem:[#allocation2 + $0x38] sm:$0xff]
        %s958 = scalar_lea.vmem %s4, 128
        %v959 = vld [vmem:[%s958] sm:$0xf]
        %v960 = vld [vmem:[%s958 + $0x4] sm:$0xf]
        %v961 = vld [vmem:[%s958 + $0x8] sm:$0xf]
        %v962 = vld [vmem:[%s958 + $0xc] sm:$0xf]
        %v963 = vld [vmem:[%s958 + $0x10] sm:$0xf]
        %v964 = vld [vmem:[%s958 + $0x14] sm:$0xf]
        %v965 = vld [vmem:[%s958 + $0x18] sm:$0xf]
        %v966 = vld [vmem:[%s958 + $0x1c] sm:$0xf]
        %v967 = vld [vmem:[%s958 + $0x20] sm:$0xf]
        %v968 = vld [vmem:[%s958 + $0x24] sm:$0xf]
        %v969 = vld [vmem:[%s958 + $0x28] sm:$0xf]
        %v970 = vld [vmem:[%s958 + $0x2c] sm:$0xf]
        %v971 = vld [vmem:[%s958 + $0x30] sm:$0xf]
        %v972 = vld [vmem:[%s958 + $0x34] sm:$0xf]
        %v973 = vld [vmem:[%s958 + $0x38] sm:$0xf]
        %v974 = vld [vmem:[%s958 + $0x3c] sm:$0xf]
        %v975 = vunpack.c.l.b16 %v851
        %v976 = vunpack.c.l.b16 %v865
        %v977 = vunpack.c.l.b16 %v879
        %v978 = vunpack.c.l.b16 %v893
        %v979 = vunpack.c.l.b16 %v907
        %v980 = vunpack.c.l.b16 %v921
        %v981 = vunpack.c.l.b16 %v935
        %v982 = vunpack.c.l.b16 %v949
        %v983 = vpack.c.b16 %v976, %v975
        %v984 = vpack.c.b16 %v978, %v977
        %v985 = vpack.c.b16 %v980, %v979
        %v986 = vpack.c.b16 %v982, %v981
        %v1007 = vunpack.c.l.b16 %v959
        %v1008 = vunpack.c.l.b16 %v960
        %v1009 = vunpack.c.l.b16 %v961
        %v1010 = vunpack.c.l.b16 %v962
        %v1011 = vunpack.c.l.b16 %v963
        %v1012 = vunpack.c.l.b16 %v964
        %v1013 = vunpack.c.l.b16 %v965
        %v1014 = vunpack.c.l.b16 %v966
        %v1015 = vunpack.c.l.b16 %v967
        %v1016 = vunpack.c.l.b16 %v968
        %v1017 = vunpack.c.l.b16 %v969
        %v1018 = vunpack.c.l.b16 %v970
        %v1019 = vunpack.c.l.b16 %v971
        %v1020 = vunpack.c.l.b16 %v972
        %v1021 = vunpack.c.l.b16 %v973
        %v1022 = vunpack.c.l.b16 %v974
        %v1023 = vpack.c.b16 %v1008, %v1007
        %v1024 = vpack.c.b16 %v1010, %v1009
        %v1025 = vpack.c.b16 %v1012, %v1011
        %v1026 = vpack.c.b16 %v1014, %v1013
        %v1027 = vpack.c.b16 %v1016, %v1015
        %v1028 = vpack.c.b16 %v1018, %v1017
        %v1029 = vpack.c.b16 %v1020, %v1019
        %v1030 = vpack.c.b16 %v1022, %v1021
        %1039 = vmatpush.bf16.msra.mxu0 %v1030
        %1040 = vmatpush.bf16.msra.mxu0 %v1029
        %1041 = vmatpush.bf16.msra.mxu0 %v1028
        %1042 = vmatpush.bf16.msra.mxu0 %v1027
        %1043 = vmatpush.bf16.msra.mxu0 %v1026
        %1044 = vmatpush.bf16.msra.mxu0 %v1025
        %1045 = vmatpush.bf16.msra.mxu0 %v1024
        %1046 = vmatpush.bf16.msra.mxu0 %v1023
        %1047 = vmatmul.bf16.gmra.mxu0 %v983
        %v1048 = vpop.f32.mrf.mxu0
        %v1049 = vadd.f32 0.0, %v1048
        %v1050 = vpop.f32.mrf.mxu0
        %v1051 = vadd.f32 0.0, %v1050
        %1052 = vmatmul.bf16.gmra.mxu0 %v984
        %v1053 = vpop.f32.mrf.mxu0
        %v1054 = vadd.f32 0.0, %v1053
        %v1055 = vpop.f32.mrf.mxu0
        %v1056 = vadd.f32 0.0, %v1055
        %1057 = vmatmul.bf16.gmra.mxu0 %v985
        %v1058 = vpop.f32.mrf.mxu0
        %v1059 = vadd.f32 0.0, %v1058
        %v1060 = vpop.f32.mrf.mxu0
        %v1061 = vadd.f32 0.0, %v1060
        %1062 = vmatmul.bf16.gmra.mxu0 %v986
        %v1063 = vpop.f32.mrf.mxu0
        %v1064 = vadd.f32 0.0, %v1063
        %v1065 = vpop.f32.mrf.mxu0
        %v1066 = vadd.f32 0.0, %v1065
        %1067 = vdwg.mxu0
        %v1068 = vadd.f32 %v950, %v1049
        %v1069 = vadd.f32 %v951, %v1051
        %v1070 = vadd.f32 %v952, %v1054
        %v1071 = vadd.f32 %v953, %v1056
        %v1072 = vadd.f32 %v954, %v1059
        %v1073 = vadd.f32 %v955, %v1061
        %v1074 = vadd.f32 %v956, %v1064
        %v1075 = vadd.f32 %v957, %v1066
        %1076 = vst [vmem:[#allocation2] sm:$0xff] %v1068
        %1077 = vst [vmem:[#allocation2 + $0x8] sm:$0xff] %v1069
        %1078 = vst [vmem:[#allocation2 + $0x10] sm:$0xff] %v1070
        %1079 = vst [vmem:[#allocation2 + $0x18] sm:$0xff] %v1071
        %1080 = vst [vmem:[#allocation2 + $0x20] sm:$0xff] %v1072
        %1081 = vst [vmem:[#allocation2 + $0x28] sm:$0xff] %v1073
        %1082 = vst [vmem:[#allocation2 + $0x30] sm:$0xff] %v1074
        %1083 = vst [vmem:[#allocation2 + $0x38] sm:$0xff] %v1075
        %v1084 = vld [vmem:[%s478] sm:$0xf]
        %v1085 = vld [vmem:[%s478 + $0x8] sm:$0xf]
        %v1086 = vld [vmem:[%s478 + $0x10] sm:$0xf]
        %v1087 = vld [vmem:[%s478 + $0x18] sm:$0xf]
        %v1088 = vld [vmem:[%s478 + $0x20] sm:$0xf]
        %v1089 = vld [vmem:[%s478 + $0x28] sm:$0xf]
        %v1090 = vld [vmem:[%s478 + $0x30] sm:$0xf]
        %v1091 = vld [vmem:[%s478 + $0x38] sm:$0xf]
        %v1092 = vld [vmem:[#allocation2] sm:$0xff]
        %v1093 = vld [vmem:[#allocation2 + $0x8] sm:$0xff]
        %v1094 = vld [vmem:[#allocation2 + $0x10] sm:$0xff]
        %v1095 = vld [vmem:[#allocation2 + $0x18] sm:$0xff]
        %v1096 = vld [vmem:[#allocation2 + $0x20] sm:$0xff]
        %v1097 = vld [vmem:[#allocation2 + $0x28] sm:$0xff]
        %v1098 = vld [vmem:[#allocation2 + $0x30] sm:$0xff]
        %v1099 = vld [vmem:[#allocation2 + $0x38] sm:$0xff]
        %s1100 = scalar_lea.vmem %s4, 192
        %v1101 = vld [vmem:[%s1100] sm:$0xf]
        %v1102 = vld [vmem:[%s1100 + $0x4] sm:$0xf]
        %v1103 = vld [vmem:[%s1100 + $0x8] sm:$0xf]
        %v1104 = vld [vmem:[%s1100 + $0xc] sm:$0xf]
        %v1105 = vld [vmem:[%s1100 + $0x10] sm:$0xf]
        %v1106 = vld [vmem:[%s1100 + $0x14] sm:$0xf]
        %v1107 = vld [vmem:[%s1100 + $0x18] sm:$0xf]
        %v1108 = vld [vmem:[%s1100 + $0x1c] sm:$0xf]
        %v1109 = vld [vmem:[%s1100 + $0x20] sm:$0xf]
        %v1110 = vld [vmem:[%s1100 + $0x24] sm:$0xf]
        %v1111 = vld [vmem:[%s1100 + $0x28] sm:$0xf]
        %v1112 = vld [vmem:[%s1100 + $0x2c] sm:$0xf]
        %v1113 = vld [vmem:[%s1100 + $0x30] sm:$0xf]
        %v1114 = vld [vmem:[%s1100 + $0x34] sm:$0xf]
        %v1115 = vld [vmem:[%s1100 + $0x38] sm:$0xf]
        %v1116 = vld [vmem:[%s1100 + $0x3c] sm:$0xf]
        %v1125 = vunpack.c.l.b16 %v1084
        %v1126 = vunpack.c.l.b16 %v1085
        %v1127 = vunpack.c.l.b16 %v1086
        %v1128 = vunpack.c.l.b16 %v1087
        %v1129 = vunpack.c.l.b16 %v1088
        %v1130 = vunpack.c.l.b16 %v1089
        %v1131 = vunpack.c.l.b16 %v1090
        %v1132 = vunpack.c.l.b16 %v1091
        %v1133 = vpack.c.b16 %v1126, %v1125
        %v1134 = vpack.c.b16 %v1128, %v1127
        %v1135 = vpack.c.b16 %v1130, %v1129
        %v1136 = vpack.c.b16 %v1132, %v1131
        %v1157 = vunpack.c.l.b16 %v1101
        %v1158 = vunpack.c.l.b16 %v1102
        %v1159 = vunpack.c.l.b16 %v1103
        %v1160 = vunpack.c.l.b16 %v1104
        %v1161 = vunpack.c.l.b16 %v1105
        %v1162 = vunpack.c.l.b16 %v1106
        %v1163 = vunpack.c.l.b16 %v1107
        %v1164 = vunpack.c.l.b16 %v1108
        %v1165 = vunpack.c.l.b16 %v1109
        %v1166 = vunpack.c.l.b16 %v1110
        %v1167 = vunpack.c.l.b16 %v1111
        %v1168 = vunpack.c.l.b16 %v1112
        %v1169 = vunpack.c.l.b16 %v1113
        %v1170 = vunpack.c.l.b16 %v1114
        %v1171 = vunpack.c.l.b16 %v1115
        %v1172 = vunpack.c.l.b16 %v1116
        %v1173 = vpack.c.b16 %v1158, %v1157
        %v1174 = vpack.c.b16 %v1160, %v1159
        %v1175 = vpack.c.b16 %v1162, %v1161
        %v1176 = vpack.c.b16 %v1164, %v1163
        %v1177 = vpack.c.b16 %v1166, %v1165
        %v1178 = vpack.c.b16 %v1168, %v1167
        %v1179 = vpack.c.b16 %v1170, %v1169
        %v1180 = vpack.c.b16 %v1172, %v1171
        %1189 = vmatpush.bf16.msra.mxu0 %v1180
        %1190 = vmatpush.bf16.msra.mxu0 %v1179
        %1191 = vmatpush.bf16.msra.mxu0 %v1178
        %1192 = vmatpush.bf16.msra.mxu0 %v1177
        %1193 = vmatpush.bf16.msra.mxu0 %v1176
        %1194 = vmatpush.bf16.msra.mxu0 %v1175
        %1195 = vmatpush.bf16.msra.mxu0 %v1174
        %1196 = vmatpush.bf16.msra.mxu0 %v1173
        %1197 = vmatmul.bf16.gmra.mxu0 %v1133
        %v1198 = vpop.f32.mrf.mxu0
        %v1199 = vadd.f32 0.0, %v1198
        %v1200 = vpop.f32.mrf.mxu0
        %v1201 = vadd.f32 0.0, %v1200
        %1202 = vmatmul.bf16.gmra.mxu0 %v1134
        %v1203 = vpop.f32.mrf.mxu0
        %v1204 = vadd.f32 0.0, %v1203
        %v1205 = vpop.f32.mrf.mxu0
        %v1206 = vadd.f32 0.0, %v1205
        %1207 = vmatmul.bf16.gmra.mxu0 %v1135
        %v1208 = vpop.f32.mrf.mxu0
        %v1209 = vadd.f32 0.0, %v1208
        %v1210 = vpop.f32.mrf.mxu0
        %v1211 = vadd.f32 0.0, %v1210
        %1212 = vmatmul.bf16.gmra.mxu0 %v1136
        %v1213 = vpop.f32.mrf.mxu0
        %v1214 = vadd.f32 0.0, %v1213
        %v1215 = vpop.f32.mrf.mxu0
        %v1216 = vadd.f32 0.0, %v1215
        %1217 = vdwg.mxu0
        %v1218 = vadd.f32 %v1092, %v1199
        %v1219 = vadd.f32 %v1093, %v1201
        %v1220 = vadd.f32 %v1094, %v1204
        %v1221 = vadd.f32 %v1095, %v1206
        %v1222 = vadd.f32 %v1096, %v1209
        %v1223 = vadd.f32 %v1097, %v1211
        %v1224 = vadd.f32 %v1098, %v1214
        %v1225 = vadd.f32 %v1099, %v1216
        %1226 = vst [vmem:[#allocation2] sm:$0xff] %v1218
        %1227 = vst [vmem:[#allocation2 + $0x8] sm:$0xff] %v1219
        %1228 = vst [vmem:[#allocation2 + $0x10] sm:$0xff] %v1220
        %1229 = vst [vmem:[#allocation2 + $0x18] sm:$0xff] %v1221
        %1230 = vst [vmem:[#allocation2 + $0x20] sm:$0xff] %v1222
        %1231 = vst [vmem:[#allocation2 + $0x28] sm:$0xff] %v1223
        %1232 = vst [vmem:[#allocation2 + $0x30] sm:$0xff] %v1224
        %1233 = vst [vmem:[#allocation2 + $0x38] sm:$0xff] %v1225
        %v1234 = vld [vmem:[%s483] sm:$0xf]
        %v1235 = vld [vmem:[%s483 + $0x8] sm:$0xf]
        %v1236 = vld [vmem:[%s483 + $0x10] sm:$0xf]
        %v1237 = vld [vmem:[%s483 + $0x18] sm:$0xf]
        %v1238 = vld [vmem:[%s483 + $0x20] sm:$0xf]
        %v1239 = vld [vmem:[%s483 + $0x28] sm:$0xf]
        %v1240 = vld [vmem:[%s483 + $0x30] sm:$0xf]
        %v1241 = vld [vmem:[%s483 + $0x38] sm:$0xf]
        %v1242 = vld [vmem:[#allocation2] sm:$0xff]
        %v1243 = vld [vmem:[#allocation2 + $0x8] sm:$0xff]
        %v1244 = vld [vmem:[#allocation2 + $0x10] sm:$0xff]
        %v1245 = vld [vmem:[#allocation2 + $0x18] sm:$0xff]
        %v1246 = vld [vmem:[#allocation2 + $0x20] sm:$0xff]
        %v1247 = vld [vmem:[#allocation2 + $0x28] sm:$0xff]
        %v1248 = vld [vmem:[#allocation2 + $0x30] sm:$0xff]
        %v1249 = vld [vmem:[#allocation2 + $0x38] sm:$0xff]
        %s1250 = scalar_lea.vmem %s4, 256
        %v1251 = vld [vmem:[%s1250] sm:$0xf]
        %v1252 = vld [vmem:[%s1250 + $0x4] sm:$0xf]
        %v1253 = vld [vmem:[%s1250 + $0x8] sm:$0xf]
        %v1254 = vld [vmem:[%s1250 + $0xc] sm:$0xf]
        %v1255 = vld [vmem:[%s1250 + $0x10] sm:$0xf]
        %v1256 = vld [vmem:[%s1250 + $0x14] sm:$0xf]
        %v1257 = vld [vmem:[%s1250 + $0x18] sm:$0xf]
        %v1258 = vld [vmem:[%s1250 + $0x1c] sm:$0xf]
        %v1259 = vld [vmem:[%s1250 + $0x20] sm:$0xf]
        %v1260 = vld [vmem:[%s1250 + $0x24] sm:$0xf]
        %v1261 = vld [vmem:[%s1250 + $0x28] sm:$0xf]
        %v1262 = vld [vmem:[%s1250 + $0x2c] sm:$0xf]
        %v1263 = vld [vmem:[%s1250 + $0x30] sm:$0xf]
        %v1264 = vld [vmem:[%s1250 + $0x34] sm:$0xf]
        %v1265 = vld [vmem:[%s1250 + $0x38] sm:$0xf]
        %v1266 = vld [vmem:[%s1250 + $0x3c] sm:$0xf]
        %v1275 = vunpack.c.l.b16 %v1234
        %v1276 = vunpack.c.l.b16 %v1235
        %v1277 = vunpack.c.l.b16 %v1236
        %v1278 = vunpack.c.l.b16 %v1237
        %v1279 = vunpack.c.l.b16 %v1238
        %v1280 = vunpack.c.l.b16 %v1239
        %v1281 = vunpack.c.l.b16 %v1240
        %v1282 = vunpack.c.l.b16 %v1241
        %v1283 = vpack.c.b16 %v1276, %v1275
        %v1284 = vpack.c.b16 %v1278, %v1277
        %v1285 = vpack.c.b16 %v1280, %v1279
        %v1286 = vpack.c.b16 %v1282, %v1281
        %v1307 = vunpack.c.l.b16 %v1251
        %v1308 = vunpack.c.l.b16 %v1252
        %v1309 = vunpack.c.l.b16 %v1253
        %v1310 = vunpack.c.l.b16 %v1254
        %v1311 = vunpack.c.l.b16 %v1255
        %v1312 = vunpack.c.l.b16 %v1256
        %v1313 = vunpack.c.l.b16 %v1257
        %v1314 = vunpack.c.l.b16 %v1258
        %v1315 = vunpack.c.l.b16 %v1259
        %v1316 = vunpack.c.l.b16 %v1260
        %v1317 = vunpack.c.l.b16 %v1261
        %v1318 = vunpack.c.l.b16 %v1262
        %v1319 = vunpack.c.l.b16 %v1263
        %v1320 = vunpack.c.l.b16 %v1264
        %v1321 = vunpack.c.l.b16 %v1265
        %v1322 = vunpack.c.l.b16 %v1266
        %v1323 = vpack.c.b16 %v1308, %v1307
        %v1324 = vpack.c.b16 %v1310, %v1309
        %v1325 = vpack.c.b16 %v1312, %v1311
        %v1326 = vpack.c.b16 %v1314, %v1313
        %v1327 = vpack.c.b16 %v1316, %v1315
        %v1328 = vpack.c.b16 %v1318, %v1317
        %v1329 = vpack.c.b16 %v1320, %v1319
        %v1330 = vpack.c.b16 %v1322, %v1321
        %1339 = vmatpush.bf16.msra.mxu0 %v1330
        %1340 = vmatpush.bf16.msra.mxu0 %v1329
        %1341 = vmatpush.bf16.msra.mxu0 %v1328
        %1342 = vmatpush.bf16.msra.mxu0 %v1327
        %1343 = vmatpush.bf16.msra.mxu0 %v1326
        %1344 = vmatpush.bf16.msra.mxu0 %v1325
        %1345 = vmatpush.bf16.msra.mxu0 %v1324
        %1346 = vmatpush.bf16.msra.mxu0 %v1323
        %1347 = vmatmul.bf16.gmra.mxu0 %v1283
        %v1348 = vpop.f32.mrf.mxu0
        %v1349 = vadd.f32 0.0, %v1348
        %v1350 = vpop.f32.mrf.mxu0
        %v1351 = vadd.f32 0.0, %v1350
        %1352 = vmatmul.bf16.gmra.mxu0 %v1284
        %v1353 = vpop.f32.mrf.mxu0
        %v1354 = vadd.f32 0.0, %v1353
        %v1355 = vpop.f32.mrf.mxu0
        %v1356 = vadd.f32 0.0, %v1355
        %1357 = vmatmul.bf16.gmra.mxu0 %v1285
        %v1358 = vpop.f32.mrf.mxu0
        %v1359 = vadd.f32 0.0, %v1358
        %v1360 = vpop.f32.mrf.mxu0
        %v1361 = vadd.f32 0.0, %v1360
        %1362 = vmatmul.bf16.gmra.mxu0 %v1286
        %v1363 = vpop.f32.mrf.mxu0
        %v1364 = vadd.f32 0.0, %v1363
        %v1365 = vpop.f32.mrf.mxu0
        %v1366 = vadd.f32 0.0, %v1365
        %1367 = vdwg.mxu0
        %v1368 = vadd.f32 %v1242, %v1349
        %v1369 = vadd.f32 %v1243, %v1351
        %v1370 = vadd.f32 %v1244, %v1354
        %v1371 = vadd.f32 %v1245, %v1356
        %v1372 = vadd.f32 %v1246, %v1359
        %v1373 = vadd.f32 %v1247, %v1361
        %v1374 = vadd.f32 %v1248, %v1364
        %v1375 = vadd.f32 %v1249, %v1366
        %1376 = vst [vmem:[#allocation2] sm:$0xff] %v1368
        %1377 = vst [vmem:[#allocation2 + $0x8] sm:$0xff] %v1369
        %1378 = vst [vmem:[#allocation2 + $0x10] sm:$0xff] %v1370
        %1379 = vst [vmem:[#allocation2 + $0x18] sm:$0xff] %v1371
        %1380 = vst [vmem:[#allocation2 + $0x20] sm:$0xff] %v1372
        %1381 = vst [vmem:[#allocation2 + $0x28] sm:$0xff] %v1373
        %1382 = vst [vmem:[#allocation2 + $0x30] sm:$0xff] %v1374
        %1383 = vst [vmem:[#allocation2 + $0x38] sm:$0xff] %v1375
        %v1384 = vld [vmem:[%s478] sm:$0xf]
        %v1385 = vld [vmem:[%s478 + $0x4] sm:$0x1]
        %v1386 = vld [vmem:[%s478 + $0x8] sm:$0xf]
        %v1387 = vld [vmem:[%s478 + $0xc] sm:$0x1]
        %v1388 = vld [vmem:[%s478 + $0x10] sm:$0xf]
        %v1389 = vld [vmem:[%s478 + $0x14] sm:$0x1]
        %v1390 = vld [vmem:[%s478 + $0x18] sm:$0xf]
        %v1391 = vld [vmem:[%s478 + $0x1c] sm:$0x1]
        %v1392 = vld [vmem:[%s478 + $0x20] sm:$0xf]
        %v1393 = vld [vmem:[%s478 + $0x24] sm:$0x1]
        %v1394 = vld [vmem:[%s478 + $0x28] sm:$0xf]
        %v1395 = vld [vmem:[%s478 + $0x2c] sm:$0x1]
        %v1396 = vld [vmem:[%s478 + $0x30] sm:$0xf]
        %v1397 = vld [vmem:[%s478 + $0x34] sm:$0x1]
        %v1398 = vld [vmem:[%s478 + $0x38] sm:$0xf]
        %v1399 = vld [vmem:[%s478 + $0x3c] sm:$0x1]
        %v1401 = vshrl.u32 %v1384, 16
        %v1403 = vrot.slane %v1401, 4
        %v1404 = vshll.u32 %v1384, 16
        %v1406 = vrot.slane %v1404, 5
        %v1407 = vor.u32 %v1403, %v1406
        %v1408 = vrot.slane %v1407, 4
        %v1410 = vshll.u32 %v1385, 16
        %v1412 = vrot.slane %v1410, 5
        %v1413 = vsel %vm837, %v1408, %v1412
        %v1415 = vshrl.u32 %v1386, 16
        %v1417 = vrot.slane %v1415, 4
        %v1418 = vshll.u32 %v1386, 16
        %v1420 = vrot.slane %v1418, 5
        %v1421 = vor.u32 %v1417, %v1420
        %v1422 = vrot.slane %v1421, 4
        %v1424 = vshll.u32 %v1387, 16
        %v1426 = vrot.slane %v1424, 5
        %v1427 = vsel %vm837, %v1422, %v1426
        %v1429 = vshrl.u32 %v1388, 16
        %v1431 = vrot.slane %v1429, 4
        %v1432 = vshll.u32 %v1388, 16
        %v1434 = vrot.slane %v1432, 5
        %v1435 = vor.u32 %v1431, %v1434
        %v1436 = vrot.slane %v1435, 4
        %v1438 = vshll.u32 %v1389, 16
        %v1440 = vrot.slane %v1438, 5
        %v1441 = vsel %vm837, %v1436, %v1440
        %v1443 = vshrl.u32 %v1390, 16
        %v1445 = vrot.slane %v1443, 4
        %v1446 = vshll.u32 %v1390, 16
        %v1448 = vrot.slane %v1446, 5
        %v1449 = vor.u32 %v1445, %v1448
        %v1450 = vrot.slane %v1449, 4
        %v1452 = vshll.u32 %v1391, 16
        %v1454 = vrot.slane %v1452, 5
        %v1455 = vsel %vm837, %v1450, %v1454
        %v1457 = vshrl.u32 %v1392, 16
        %v1459 = vrot.slane %v1457, 4
        %v1460 = vshll.u32 %v1392, 16
        %v1462 = vrot.slane %v1460, 5
        %v1463 = vor.u32 %v1459, %v1462
        %v1464 = vrot.slane %v1463, 4
        %v1466 = vshll.u32 %v1393, 16
        %v1468 = vrot.slane %v1466, 5
        %v1469 = vsel %vm837, %v1464, %v1468
        %v1471 = vshrl.u32 %v1394, 16
        %v1473 = vrot.slane %v1471, 4
        %v1474 = vshll.u32 %v1394, 16
        %v1476 = vrot.slane %v1474, 5
        %v1477 = vor.u32 %v1473, %v1476
        %v1478 = vrot.slane %v1477, 4
        %v1480 = vshll.u32 %v1395, 16
        %v1482 = vrot.slane %v1480, 5
        %v1483 = vsel %vm837, %v1478, %v1482
        %v1485 = vshrl.u32 %v1396, 16
        %v1487 = vrot.slane %v1485, 4
        %v1488 = vshll.u32 %v1396, 16
        %v1490 = vrot.slane %v1488, 5
        %v1491 = vor.u32 %v1487, %v1490
        %v1492 = vrot.slane %v1491, 4
        %v1494 = vshll.u32 %v1397, 16
        %v1496 = vrot.slane %v1494, 5
        %v1497 = vsel %vm837, %v1492, %v1496
        %v1499 = vshrl.u32 %v1398, 16
        %v1501 = vrot.slane %v1499, 4
        %v1502 = vshll.u32 %v1398, 16
        %v1504 = vrot.slane %v1502, 5
        %v1505 = vor.u32 %v1501, %v1504
        %v1506 = vrot.slane %v1505, 4
        %v1508 = vshll.u32 %v1399, 16
        %v1510 = vrot.slane %v1508, 5
        %v1511 = vsel %vm837, %v1506, %v1510
        %v1512 = vld [vmem:[#allocation2] sm:$0xff]
        %v1513 = vld [vmem:[#allocation2 + $0x8] sm:$0xff]
        %v1514 = vld [vmem:[#allocation2 + $0x10] sm:$0xff]
        %v1515 = vld [vmem:[#allocation2 + $0x18] sm:$0xff]
        %v1516 = vld [vmem:[#allocation2 + $0x20] sm:$0xff]
        %v1517 = vld [vmem:[#allocation2 + $0x28] sm:$0xff]
        %v1518 = vld [vmem:[#allocation2 + $0x30] sm:$0xff]
        %v1519 = vld [vmem:[#allocation2 + $0x38] sm:$0xff]
        %s1520 = scalar_lea.vmem %s4, 320
        %v1521 = vld [vmem:[%s1520] sm:$0xf]
        %v1522 = vld [vmem:[%s1520 + $0x4] sm:$0xf]
        %v1523 = vld [vmem:[%s1520 + $0x8] sm:$0xf]
        %v1524 = vld [vmem:[%s1520 + $0xc] sm:$0xf]
        %v1525 = vld [vmem:[%s1520 + $0x10] sm:$0xf]
        %v1526 = vld [vmem:[%s1520 + $0x14] sm:$0xf]
        %v1527 = vld [vmem:[%s1520 + $0x18] sm:$0xf]
        %v1528 = vld [vmem:[%s1520 + $0x1c] sm:$0xf]
        %v1529 = vld [vmem:[%s1520 + $0x20] sm:$0xf]
        %v1530 = vld [vmem:[%s1520 + $0x24] sm:$0xf]
        %v1531 = vld [vmem:[%s1520 + $0x28] sm:$0xf]
        %v1532 = vld [vmem:[%s1520 + $0x2c] sm:$0xf]
        %v1533 = vld [vmem:[%s1520 + $0x30] sm:$0xf]
        %v1534 = vld [vmem:[%s1520 + $0x34] sm:$0xf]
        %v1535 = vld [vmem:[%s1520 + $0x38] sm:$0xf]
        %v1536 = vld [vmem:[%s1520 + $0x3c] sm:$0xf]
        %v1537 = vunpack.c.l.b16 %v1413
        %v1538 = vunpack.c.l.b16 %v1427
        %v1539 = vunpack.c.l.b16 %v1441
        %v1540 = vunpack.c.l.b16 %v1455
        %v1541 = vunpack.c.l.b16 %v1469
        %v1542 = vunpack.c.l.b16 %v1483
        %v1543 = vunpack.c.l.b16 %v1497
        %v1544 = vunpack.c.l.b16 %v1511
        %v1545 = vpack.c.b16 %v1538, %v1537
        %v1546 = vpack.c.b16 %v1540, %v1539
        %v1547 = vpack.c.b16 %v1542, %v1541
        %v1548 = vpack.c.b16 %v1544, %v1543
        %v1569 = vunpack.c.l.b16 %v1521
        %v1570 = vunpack.c.l.b16 %v1522
        %v1571 = vunpack.c.l.b16 %v1523
        %v1572 = vunpack.c.l.b16 %v1524
        %v1573 = vunpack.c.l.b16 %v1525
        %v1574 = vunpack.c.l.b16 %v1526
        %v1575 = vunpack.c.l.b16 %v1527
        %v1576 = vunpack.c.l.b16 %v1528
        %v1577 = vunpack.c.l.b16 %v1529
        %v1578 = vunpack.c.l.b16 %v1530
        %v1579 = vunpack.c.l.b16 %v1531
        %v1580 = vunpack.c.l.b16 %v1532
        %v1581 = vunpack.c.l.b16 %v1533
        %v1582 = vunpack.c.l.b16 %v1534
        %v1583 = vunpack.c.l.b16 %v1535
        %v1584 = vunpack.c.l.b16 %v1536
        %v1585 = vpack.c.b16 %v1570, %v1569
        %v1586 = vpack.c.b16 %v1572, %v1571
        %v1587 = vpack.c.b16 %v1574, %v1573
        %v1588 = vpack.c.b16 %v1576, %v1575
        %v1589 = vpack.c.b16 %v1578, %v1577
        %v1590 = vpack.c.b16 %v1580, %v1579
        %v1591 = vpack.c.b16 %v1582, %v1581
        %v1592 = vpack.c.b16 %v1584, %v1583
        %1601 = vmatpush.bf16.msra.mxu0 %v1592
        %1602 = vmatpush.bf16.msra.mxu0 %v1591
        %1603 = vmatpush.bf16.msra.mxu0 %v1590
        %1604 = vmatpush.bf16.msra.mxu0 %v1589
        %1605 = vmatpush.bf16.msra.mxu0 %v1588
        %1606 = vmatpush.bf16.msra.mxu0 %v1587
        %1607 = vmatpush.bf16.msra.mxu0 %v1586
        %1608 = vmatpush.bf16.msra.mxu0 %v1585
        %1609 = vmatmul.bf16.gmra.mxu0 %v1545
        %v1610 = vpop.f32.mrf.mxu0
        %v1611 = vadd.f32 0.0, %v1610
        %v1612 = vpop.f32.mrf.mxu0
        %v1613 = vadd.f32 0.0, %v1612
        %1614 = vmatmul.bf16.gmra.mxu0 %v1546
        %v1615 = vpop.f32.mrf.mxu0
        %v1616 = vadd.f32 0.0, %v1615
        %v1617 = vpop.f32.mrf.mxu0
        %v1618 = vadd.f32 0.0, %v1617
        %1619 = vmatmul.bf16.gmra.mxu0 %v1547
        %v1620 = vpop.f32.mrf.mxu0
        %v1621 = vadd.f32 0.0, %v1620
        %v1622 = vpop.f32.mrf.mxu0
        %v1623 = vadd.f32 0.0, %v1622
        %1624 = vmatmul.bf16.gmra.mxu0 %v1548
        %v1625 = vpop.f32.mrf.mxu0
        %v1626 = vadd.f32 0.0, %v1625
        %v1627 = vpop.f32.mrf.mxu0
        %v1628 = vadd.f32 0.0, %v1627
        %1629 = vdwg.mxu0
        %v1630 = vadd.f32 %v1512, %v1611
        %v1631 = vadd.f32 %v1513, %v1613
        %v1632 = vadd.f32 %v1514, %v1616
        %v1633 = vadd.f32 %v1515, %v1618
        %v1634 = vadd.f32 %v1516, %v1621
        %v1635 = vadd.f32 %v1517, %v1623
        %v1636 = vadd.f32 %v1518, %v1626
        %v1637 = vadd.f32 %v1519, %v1628
        %1638 = vst [vmem:[#allocation2] sm:$0xff] %v1630
        %1639 = vst [vmem:[#allocation2 + $0x8] sm:$0xff] %v1631
        %1640 = vst [vmem:[#allocation2 + $0x10] sm:$0xff] %v1632
        %1641 = vst [vmem:[#allocation2 + $0x18] sm:$0xff] %v1633
        %1642 = vst [vmem:[#allocation2 + $0x20] sm:$0xff] %v1634
        %1643 = vst [vmem:[#allocation2 + $0x28] sm:$0xff] %v1635
        %1644 = vst [vmem:[#allocation2 + $0x30] sm:$0xff] %v1636
        %1645 = vst [vmem:[#allocation2 + $0x38] sm:$0xff] %v1637
        %s1646 = scalar_lea.vmem %s468, 8
        %v1647 = vld [vmem:[%s1646] sm:$0xf]
        %v1648 = vld [vmem:[%s1646 + $0x8] sm:$0xf]
        %v1649 = vld [vmem:[%s1646 + $0x10] sm:$0xf]
        %v1650 = vld [vmem:[%s1646 + $0x18] sm:$0xf]
        %v1651 = vld [vmem:[%s1646 + $0x20] sm:$0xf]
        %v1652 = vld [vmem:[%s1646 + $0x28] sm:$0xf]
        %v1653 = vld [vmem:[%s1646 + $0x30] sm:$0xf]
        %v1654 = vld [vmem:[%s1646 + $0x38] sm:$0xf]
        %v1655 = vld [vmem:[#allocation2] sm:$0xff]
        %v1656 = vld [vmem:[#allocation2 + $0x8] sm:$0xff]
        %v1657 = vld [vmem:[#allocation2 + $0x10] sm:$0xff]
        %v1658 = vld [vmem:[#allocation2 + $0x18] sm:$0xff]
        %v1659 = vld [vmem:[#allocation2 + $0x20] sm:$0xff]
        %v1660 = vld [vmem:[#allocation2 + $0x28] sm:$0xff]
        %v1661 = vld [vmem:[#allocation2 + $0x30] sm:$0xff]
        %v1662 = vld [vmem:[#allocation2 + $0x38] sm:$0xff]
        %s1663 = scalar_lea.vmem %s4, 384
        %v1664 = vld [vmem:[%s1663] sm:$0xf]
        %v1665 = vld [vmem:[%s1663 + $0x4] sm:$0xf]
        %v1666 = vld [vmem:[%s1663 + $0x8] sm:$0xf]
        %v1667 = vld [vmem:[%s1663 + $0xc] sm:$0xf]
        %v1668 = vld [vmem:[%s1663 + $0x10] sm:$0xf]
        %v1669 = vld [vmem:[%s1663 + $0x14] sm:$0xf]
        %v1670 = vld [vmem:[%s1663 + $0x18] sm:$0xf]
        %v1671 = vld [vmem:[%s1663 + $0x1c] sm:$0xf]
        %v1672 = vld [vmem:[%s1663 + $0x20] sm:$0xf]
        %v1673 = vld [vmem:[%s1663 + $0x24] sm:$0xf]
        %v1674 = vld [vmem:[%s1663 + $0x28] sm:$0xf]
        %v1675 = vld [vmem:[%s1663 + $0x2c] sm:$0xf]
        %v1676 = vld [vmem:[%s1663 + $0x30] sm:$0xf]
        %v1677 = vld [vmem:[%s1663 + $0x34] sm:$0xf]
        %v1678 = vld [vmem:[%s1663 + $0x38] sm:$0xf]
        %v1679 = vld [vmem:[%s1663 + $0x3c] sm:$0xf]
        %v1688 = vunpack.c.l.b16 %v1647
        %v1689 = vunpack.c.l.b16 %v1648
        %v1690 = vunpack.c.l.b16 %v1649
        %v1691 = vunpack.c.l.b16 %v1650
        %v1692 = vunpack.c.l.b16 %v1651
        %v1693 = vunpack.c.l.b16 %v1652
        %v1694 = vunpack.c.l.b16 %v1653
        %v1695 = vunpack.c.l.b16 %v1654
        %v1696 = vpack.c.b16 %v1689, %v1688
        %v1697 = vpack.c.b16 %v1691, %v1690
        %v1698 = vpack.c.b16 %v1693, %v1692
        %v1699 = vpack.c.b16 %v1695, %v1694
        %v1720 = vunpack.c.l.b16 %v1664
        %v1721 = vunpack.c.l.b16 %v1665
        %v1722 = vunpack.c.l.b16 %v1666
        %v1723 = vunpack.c.l.b16 %v1667
        %v1724 = vunpack.c.l.b16 %v1668
        %v1725 = vunpack.c.l.b16 %v1669
        %v1726 = vunpack.c.l.b16 %v1670
        %v1727 = vunpack.c.l.b16 %v1671
        %v1728 = vunpack.c.l.b16 %v1672
        %v1729 = vunpack.c.l.b16 %v1673
        %v1730 = vunpack.c.l.b16 %v1674
        %v1731 = vunpack.c.l.b16 %v1675
        %v1732 = vunpack.c.l.b16 %v1676
        %v1733 = vunpack.c.l.b16 %v1677
        %v1734 = vunpack.c.l.b16 %v1678
        %v1735 = vunpack.c.l.b16 %v1679
        %v1736 = vpack.c.b16 %v1721, %v1720
        %v1737 = vpack.c.b16 %v1723, %v1722
        %v1738 = vpack.c.b16 %v1725, %v1724
        %v1739 = vpack.c.b16 %v1727, %v1726
        %v1740 = vpack.c.b16 %v1729, %v1728
        %v1741 = vpack.c.b16 %v1731, %v1730
        %v1742 = vpack.c.b16 %v1733, %v1732
        %v1743 = vpack.c.b16 %v1735, %v1734
        %1752 = vmatpush.bf16.msra.mxu0 %v1743
        %1753 = vmatpush.bf16.msra.mxu0 %v1742
        %1754 = vmatpush.bf16.msra.mxu0 %v1741
        %1755 = vmatpush.bf16.msra.mxu0 %v1740
        %1756 = vmatpush.bf16.msra.mxu0 %v1739
        %1757 = vmatpush.bf16.msra.mxu0 %v1738
        %1758 = vmatpush.bf16.msra.mxu0 %v1737
        %1759 = vmatpush.bf16.msra.mxu0 %v1736
        %1760 = vmatmul.bf16.gmra.mxu0 %v1696
        %v1761 = vpop.f32.mrf.mxu0
        %v1762 = vadd.f32 0.0, %v1761
        %v1763 = vpop.f32.mrf.mxu0
        %v1764 = vadd.f32 0.0, %v1763
        %1765 = vmatmul.bf16.gmra.mxu0 %v1697
        %v1766 = vpop.f32.mrf.mxu0
        %v1767 = vadd.f32 0.0, %v1766
        %v1768 = vpop.f32.mrf.mxu0
        %v1769 = vadd.f32 0.0, %v1768
        %1770 = vmatmul.bf16.gmra.mxu0 %v1698
        %v1771 = vpop.f32.mrf.mxu0
        %v1772 = vadd.f32 0.0, %v1771
        %v1773 = vpop.f32.mrf.mxu0
        %v1774 = vadd.f32 0.0, %v1773
        %1775 = vmatmul.bf16.gmra.mxu0 %v1699
        %v1776 = vpop.f32.mrf.mxu0
        %v1777 = vadd.f32 0.0, %v1776
        %v1778 = vpop.f32.mrf.mxu0
        %v1779 = vadd.f32 0.0, %v1778
        %1780 = vdwg.mxu0
        %v1781 = vadd.f32 %v1655, %v1762
        %v1782 = vadd.f32 %v1656, %v1764
        %v1783 = vadd.f32 %v1657, %v1767
        %v1784 = vadd.f32 %v1658, %v1769
        %v1785 = vadd.f32 %v1659, %v1772
        %v1786 = vadd.f32 %v1660, %v1774
        %v1787 = vadd.f32 %v1661, %v1777
        %v1788 = vadd.f32 %v1662, %v1779
        %1789 = vst [vmem:[#allocation2] sm:$0xff] %v1781
        %1790 = vst [vmem:[#allocation2 + $0x8] sm:$0xff] %v1782
        %1791 = vst [vmem:[#allocation2 + $0x10] sm:$0xff] %v1783
        %1792 = vst [vmem:[#allocation2 + $0x18] sm:$0xff] %v1784
        %1793 = vst [vmem:[#allocation2 + $0x20] sm:$0xff] %v1785
        %1794 = vst [vmem:[#allocation2 + $0x28] sm:$0xff] %v1786
        %1795 = vst [vmem:[#allocation2 + $0x30] sm:$0xff] %v1787
        %1796 = vst [vmem:[#allocation2 + $0x38] sm:$0xff] %v1788
        %s1797 = scalar_lea.vmem %s473, 8
        %v1798 = vld [vmem:[%s1797] sm:$0xf]
        %v1799 = vld [vmem:[%s1797 + $0x8] sm:$0xf]
        %v1800 = vld [vmem:[%s1797 + $0x10] sm:$0xf]
        %v1801 = vld [vmem:[%s1797 + $0x18] sm:$0xf]
        %v1802 = vld [vmem:[%s1797 + $0x20] sm:$0xf]
        %v1803 = vld [vmem:[%s1797 + $0x28] sm:$0xf]
        %v1804 = vld [vmem:[%s1797 + $0x30] sm:$0xf]
        %v1805 = vld [vmem:[%s1797 + $0x38] sm:$0xf]
        %v1806 = vld [vmem:[#allocation2] sm:$0xff]
        %v1807 = vld [vmem:[#allocation2 + $0x8] sm:$0xff]
        %v1808 = vld [vmem:[#allocation2 + $0x10] sm:$0xff]
        %v1809 = vld [vmem:[#allocation2 + $0x18] sm:$0xff]
        %v1810 = vld [vmem:[#allocation2 + $0x20] sm:$0xff]
        %v1811 = vld [vmem:[#allocation2 + $0x28] sm:$0xff]
        %v1812 = vld [vmem:[#allocation2 + $0x30] sm:$0xff]
        %v1813 = vld [vmem:[#allocation2 + $0x38] sm:$0xff]
        %s1814 = scalar_lea.vmem %s4, 448
        %v1815 = vld [vmem:[%s1814] sm:$0xf]
        %v1816 = vld [vmem:[%s1814 + $0x4] sm:$0xf]
        %v1817 = vld [vmem:[%s1814 + $0x8] sm:$0xf]
        %v1818 = vld [vmem:[%s1814 + $0xc] sm:$0xf]
        %v1819 = vld [vmem:[%s1814 + $0x10] sm:$0xf]
        %v1820 = vld [vmem:[%s1814 + $0x14] sm:$0xf]
        %v1821 = vld [vmem:[%s1814 + $0x18] sm:$0xf]
        %v1822 = vld [vmem:[%s1814 + $0x1c] sm:$0xf]
        %v1823 = vld [vmem:[%s1814 + $0x20] sm:$0xf]
        %v1824 = vld [vmem:[%s1814 + $0x24] sm:$0xf]
        %v1825 = vld [vmem:[%s1814 + $0x28] sm:$0xf]
        %v1826 = vld [vmem:[%s1814 + $0x2c] sm:$0xf]
        %v1827 = vld [vmem:[%s1814 + $0x30] sm:$0xf]
        %v1828 = vld [vmem:[%s1814 + $0x34] sm:$0xf]
        %v1829 = vld [vmem:[%s1814 + $0x38] sm:$0xf]
        %v1830 = vld [vmem:[%s1814 + $0x3c] sm:$0xf]
        %v1839 = vunpack.c.l.b16 %v1798
        %v1840 = vunpack.c.l.b16 %v1799
        %v1841 = vunpack.c.l.b16 %v1800
        %v1842 = vunpack.c.l.b16 %v1801
        %v1843 = vunpack.c.l.b16 %v1802
        %v1844 = vunpack.c.l.b16 %v1803
        %v1845 = vunpack.c.l.b16 %v1804
        %v1846 = vunpack.c.l.b16 %v1805
        %v1847 = vpack.c.b16 %v1840, %v1839
        %v1848 = vpack.c.b16 %v1842, %v1841
        %v1849 = vpack.c.b16 %v1844, %v1843
        %v1850 = vpack.c.b16 %v1846, %v1845
        %v1871 = vunpack.c.l.b16 %v1815
        %v1872 = vunpack.c.l.b16 %v1816
        %v1873 = vunpack.c.l.b16 %v1817
        %v1874 = vunpack.c.l.b16 %v1818
        %v1875 = vunpack.c.l.b16 %v1819
        %v1876 = vunpack.c.l.b16 %v1820
        %v1877 = vunpack.c.l.b16 %v1821
        %v1878 = vunpack.c.l.b16 %v1822
        %v1879 = vunpack.c.l.b16 %v1823
        %v1880 = vunpack.c.l.b16 %v1824
        %v1881 = vunpack.c.l.b16 %v1825
        %v1882 = vunpack.c.l.b16 %v1826
        %v1883 = vunpack.c.l.b16 %v1827
        %v1884 = vunpack.c.l.b16 %v1828
        %v1885 = vunpack.c.l.b16 %v1829
        %v1886 = vunpack.c.l.b16 %v1830
        %v1887 = vpack.c.b16 %v1872, %v1871
        %v1888 = vpack.c.b16 %v1874, %v1873
        %v1889 = vpack.c.b16 %v1876, %v1875
        %v1890 = vpack.c.b16 %v1878, %v1877
        %v1891 = vpack.c.b16 %v1880, %v1879
        %v1892 = vpack.c.b16 %v1882, %v1881
        %v1893 = vpack.c.b16 %v1884, %v1883
        %v1894 = vpack.c.b16 %v1886, %v1885
        %1903 = vmatpush.bf16.msra.mxu0 %v1894
        %1904 = vmatpush.bf16.msra.mxu0 %v1893
        %1905 = vmatpush.bf16.msra.mxu0 %v1892
        %1906 = vmatpush.bf16.msra.mxu0 %v1891
        %1907 = vmatpush.bf16.msra.mxu0 %v1890
        %1908 = vmatpush.bf16.msra.mxu0 %v1889
        %1909 = vmatpush.bf16.msra.mxu0 %v1888
        %1910 = vmatpush.bf16.msra.mxu0 %v1887
        %1911 = vmatmul.bf16.gmra.mxu0 %v1847
        %v1912 = vpop.f32.mrf.mxu0
        %v1913 = vadd.f32 0.0, %v1912
        %v1914 = vpop.f32.mrf.mxu0
        %v1915 = vadd.f32 0.0, %v1914
        %1916 = vmatmul.bf16.gmra.mxu0 %v1848
        %v1917 = vpop.f32.mrf.mxu0
        %v1918 = vadd.f32 0.0, %v1917
        %v1919 = vpop.f32.mrf.mxu0
        %v1920 = vadd.f32 0.0, %v1919
        %1921 = vmatmul.bf16.gmra.mxu0 %v1849
        %v1922 = vpop.f32.mrf.mxu0
        %v1923 = vadd.f32 0.0, %v1922
        %v1924 = vpop.f32.mrf.mxu0
        %v1925 = vadd.f32 0.0, %v1924
        %1926 = vmatmul.bf16.gmra.mxu0 %v1850
        %v1927 = vpop.f32.mrf.mxu0
        %v1928 = vadd.f32 0.0, %v1927
        %v1929 = vpop.f32.mrf.mxu0
        %v1930 = vadd.f32 0.0, %v1929
        %1931 = vdwg.mxu0
        %v1932 = vadd.f32 %v1806, %v1913
        %v1933 = vadd.f32 %v1807, %v1915
        %v1934 = vadd.f32 %v1808, %v1918
        %v1935 = vadd.f32 %v1809, %v1920
        %v1936 = vadd.f32 %v1810, %v1923
        %v1937 = vadd.f32 %v1811, %v1925
        %v1938 = vadd.f32 %v1812, %v1928
        %v1939 = vadd.f32 %v1813, %v1930
        %1940 = vst [vmem:[#allocation2] sm:$0xff] %v1932
        %1941 = vst [vmem:[#allocation2 + $0x8] sm:$0xff] %v1933
        %1942 = vst [vmem:[#allocation2 + $0x10] sm:$0xff] %v1934
        %1943 = vst [vmem:[#allocation2 + $0x18] sm:$0xff] %v1935
        %1944 = vst [vmem:[#allocation2 + $0x20] sm:$0xff] %v1936
        %1945 = vst [vmem:[#allocation2 + $0x28] sm:$0xff] %v1937
        %1946 = vst [vmem:[#allocation2 + $0x30] sm:$0xff] %v1938
        %1947 = vst [vmem:[#allocation2 + $0x38] sm:$0xff] %v1939
        %v1948 = vld [vmem:[%s1646] sm:$0xf]
        %v1949 = vld [vmem:[%s1646 + $0x4] sm:$0x1]
        %v1950 = vld [vmem:[%s1646 + $0x8] sm:$0xf]
        %v1951 = vld [vmem:[%s1646 + $0xc] sm:$0x1]
        %v1952 = vld [vmem:[%s1646 + $0x10] sm:$0xf]
        %v1953 = vld [vmem:[%s1646 + $0x14] sm:$0x1]
        %v1954 = vld [vmem:[%s1646 + $0x18] sm:$0xf]
        %v1955 = vld [vmem:[%s1646 + $0x1c] sm:$0x1]
        %v1956 = vld [vmem:[%s1646 + $0x20] sm:$0xf]
        %v1957 = vld [vmem:[%s1646 + $0x24] sm:$0x1]
        %v1958 = vld [vmem:[%s1646 + $0x28] sm:$0xf]
        %v1959 = vld [vmem:[%s1646 + $0x2c] sm:$0x1]
        %v1960 = vld [vmem:[%s1646 + $0x30] sm:$0xf]
        %v1961 = vld [vmem:[%s1646 + $0x34] sm:$0x1]
        %v1962 = vld [vmem:[%s1646 + $0x38] sm:$0xf]
        %v1963 = vld [vmem:[%s1646 + $0x3c] sm:$0x1]
        %v1965 = vshrl.u32 %v1948, 16
        %v1967 = vrot.slane %v1965, 4
        %v1968 = vshll.u32 %v1948, 16
        %v1970 = vrot.slane %v1968, 5
        %v1971 = vor.u32 %v1967, %v1970
        %v1972 = vrot.slane %v1971, 4
        %v1974 = vshll.u32 %v1949, 16
        %v1976 = vrot.slane %v1974, 5
        %v1977 = vsel %vm837, %v1972, %v1976
        %v1979 = vshrl.u32 %v1950, 16
        %v1981 = vrot.slane %v1979, 4
        %v1982 = vshll.u32 %v1950, 16
        %v1984 = vrot.slane %v1982, 5
        %v1985 = vor.u32 %v1981, %v1984
        %v1986 = vrot.slane %v1985, 4
        %v1988 = vshll.u32 %v1951, 16
        %v1990 = vrot.slane %v1988, 5
        %v1991 = vsel %vm837, %v1986, %v1990
        %v1993 = vshrl.u32 %v1952, 16
        %v1995 = vrot.slane %v1993, 4
        %v1996 = vshll.u32 %v1952, 16
        %v1998 = vrot.slane %v1996, 5
        %v1999 = vor.u32 %v1995, %v1998
        %v2000 = vrot.slane %v1999, 4
        %v2002 = vshll.u32 %v1953, 16
        %v2004 = vrot.slane %v2002, 5
        %v2005 = vsel %vm837, %v2000, %v2004
        %v2007 = vshrl.u32 %v1954, 16
        %v2009 = vrot.slane %v2007, 4
        %v2010 = vshll.u32 %v1954, 16
        %v2012 = vrot.slane %v2010, 5
        %v2013 = vor.u32 %v2009, %v2012
        %v2014 = vrot.slane %v2013, 4
        %v2016 = vshll.u32 %v1955, 16
        %v2018 = vrot.slane %v2016, 5
        %v2019 = vsel %vm837, %v2014, %v2018
        %v2021 = vshrl.u32 %v1956, 16
        %v2023 = vrot.slane %v2021, 4
        %v2024 = vshll.u32 %v1956, 16
        %v2026 = vrot.slane %v2024, 5
        %v2027 = vor.u32 %v2023, %v2026
        %v2028 = vrot.slane %v2027, 4
        %v2030 = vshll.u32 %v1957, 16
        %v2032 = vrot.slane %v2030, 5
        %v2033 = vsel %vm837, %v2028, %v2032
        %v2035 = vshrl.u32 %v1958, 16
        %v2037 = vrot.slane %v2035, 4
        %v2038 = vshll.u32 %v1958, 16
        %v2040 = vrot.slane %v2038, 5
        %v2041 = vor.u32 %v2037, %v2040
        %v2042 = vrot.slane %v2041, 4
        %v2044 = vshll.u32 %v1959, 16
        %v2046 = vrot.slane %v2044, 5
        %v2047 = vsel %vm837, %v2042, %v2046
        %v2049 = vshrl.u32 %v1960, 16
        %v2051 = vrot.slane %v2049, 4
        %v2052 = vshll.u32 %v1960, 16
        %v2054 = vrot.slane %v2052, 5
        %v2055 = vor.u32 %v2051, %v2054
        %v2056 = vrot.slane %v2055, 4
        %v2058 = vshll.u32 %v1961, 16
        %v2060 = vrot.slane %v2058, 5
        %v2061 = vsel %vm837, %v2056, %v2060
        %v2063 = vshrl.u32 %v1962, 16
        %v2065 = vrot.slane %v2063, 4
        %v2066 = vshll.u32 %v1962, 16
        %v2068 = vrot.slane %v2066, 5
        %v2069 = vor.u32 %v2065, %v2068
        %v2070 = vrot.slane %v2069, 4
        %v2072 = vshll.u32 %v1963, 16
        %v2074 = vrot.slane %v2072, 5
        %v2075 = vsel %vm837, %v2070, %v2074
        %v2076 = vld [vmem:[#allocation2] sm:$0xff]
        %v2077 = vld [vmem:[#allocation2 + $0x8] sm:$0xff]
        %v2078 = vld [vmem:[#allocation2 + $0x10] sm:$0xff]
        %v2079 = vld [vmem:[#allocation2 + $0x18] sm:$0xff]
        %v2080 = vld [vmem:[#allocation2 + $0x20] sm:$0xff]
        %v2081 = vld [vmem:[#allocation2 + $0x28] sm:$0xff]
        %v2082 = vld [vmem:[#allocation2 + $0x30] sm:$0xff]
        %v2083 = vld [vmem:[#allocation2 + $0x38] sm:$0xff]
        %s2084 = scalar_lea.vmem %s4, 512
        %v2085 = vld [vmem:[%s2084] sm:$0xf]
        %v2086 = vld [vmem:[%s2084 + $0x4] sm:$0xf]
        %v2087 = vld [vmem:[%s2084 + $0x8] sm:$0xf]
        %v2088 = vld [vmem:[%s2084 + $0xc] sm:$0xf]
        %v2089 = vld [vmem:[%s2084 + $0x10] sm:$0xf]
        %v2090 = vld [vmem:[%s2084 + $0x14] sm:$0xf]
        %v2091 = vld [vmem:[%s2084 + $0x18] sm:$0xf]
        %v2092 = vld [vmem:[%s2084 + $0x1c] sm:$0xf]
        %v2093 = vld [vmem:[%s2084 + $0x20] sm:$0xf]
        %v2094 = vld [vmem:[%s2084 + $0x24] sm:$0xf]
        %v2095 = vld [vmem:[%s2084 + $0x28] sm:$0xf]
        %v2096 = vld [vmem:[%s2084 + $0x2c] sm:$0xf]
        %v2097 = vld [vmem:[%s2084 + $0x30] sm:$0xf]
        %v2098 = vld [vmem:[%s2084 + $0x34] sm:$0xf]
        %v2099 = vld [vmem:[%s2084 + $0x38] sm:$0xf]
        %v2100 = vld [vmem:[%s2084 + $0x3c] sm:$0xf]
        %v2101 = vunpack.c.l.b16 %v1977
        %v2102 = vunpack.c.l.b16 %v1991
        %v2103 = vunpack.c.l.b16 %v2005
        %v2104 = vunpack.c.l.b16 %v2019
        %v2105 = vunpack.c.l.b16 %v2033
        %v2106 = vunpack.c.l.b16 %v2047
        %v2107 = vunpack.c.l.b16 %v2061
        %v2108 = vunpack.c.l.b16 %v2075
        %v2109 = vpack.c.b16 %v2102, %v2101
        %v2110 = vpack.c.b16 %v2104, %v2103
        %v2111 = vpack.c.b16 %v2106, %v2105
        %v2112 = vpack.c.b16 %v2108, %v2107
        %v2133 = vunpack.c.l.b16 %v2085
        %v2134 = vunpack.c.l.b16 %v2086
        %v2135 = vunpack.c.l.b16 %v2087
        %v2136 = vunpack.c.l.b16 %v2088
        %v2137 = vunpack.c.l.b16 %v2089
        %v2138 = vunpack.c.l.b16 %v2090
        %v2139 = vunpack.c.l.b16 %v2091
        %v2140 = vunpack.c.l.b16 %v2092
        %v2141 = vunpack.c.l.b16 %v2093
        %v2142 = vunpack.c.l.b16 %v2094
        %v2143 = vunpack.c.l.b16 %v2095
        %v2144 = vunpack.c.l.b16 %v2096
        %v2145 = vunpack.c.l.b16 %v2097
        %v2146 = vunpack.c.l.b16 %v2098
        %v2147 = vunpack.c.l.b16 %v2099
        %v2148 = vunpack.c.l.b16 %v2100
        %v2149 = vpack.c.b16 %v2134, %v2133
        %v2150 = vpack.c.b16 %v2136, %v2135
        %v2151 = vpack.c.b16 %v2138, %v2137
        %v2152 = vpack.c.b16 %v2140, %v2139
        %v2153 = vpack.c.b16 %v2142, %v2141
        %v2154 = vpack.c.b16 %v2144, %v2143
        %v2155 = vpack.c.b16 %v2146, %v2145
        %v2156 = vpack.c.b16 %v2148, %v2147
        %2165 = vmatpush.bf16.msra.mxu0 %v2156
        %2166 = vmatpush.bf16.msra.mxu0 %v2155
        %2167 = vmatpush.bf16.msra.mxu0 %v2154
        %2168 = vmatpush.bf16.msra.mxu0 %v2153
        %2169 = vmatpush.bf16.msra.mxu0 %v2152
        %2170 = vmatpush.bf16.msra.mxu0 %v2151
        %2171 = vmatpush.bf16.msra.mxu0 %v2150
        %2172 = vmatpush.bf16.msra.mxu0 %v2149
        %2173 = vmatmul.bf16.gmra.mxu0 %v2109
        %v2174 = vpop.f32.mrf.mxu0
        %v2175 = vadd.f32 0.0, %v2174
        %v2176 = vpop.f32.mrf.mxu0
        %v2177 = vadd.f32 0.0, %v2176
        %2178 = vmatmul.bf16.gmra.mxu0 %v2110
        %v2179 = vpop.f32.mrf.mxu0
        %v2180 = vadd.f32 0.0, %v2179
        %v2181 = vpop.f32.mrf.mxu0
        %v2182 = vadd.f32 0.0, %v2181
        %2183 = vmatmul.bf16.gmra.mxu0 %v2111
        %v2184 = vpop.f32.mrf.mxu0
        %v2185 = vadd.f32 0.0, %v2184
        %v2186 = vpop.f32.mrf.mxu0
        %v2187 = vadd.f32 0.0, %v2186
        %2188 = vmatmul.bf16.gmra.mxu0 %v2112
        %v2189 = vpop.f32.mrf.mxu0
        %v2190 = vadd.f32 0.0, %v2189
        %v2191 = vpop.f32.mrf.mxu0
        %v2192 = vadd.f32 0.0, %v2191
        %2193 = vdwg.mxu0
        %v2194 = vadd.f32 %v2076, %v2175
        %v2195 = vadd.f32 %v2077, %v2177
        %v2196 = vadd.f32 %v2078, %v2180
        %v2197 = vadd.f32 %v2079, %v2182
        %v2198 = vadd.f32 %v2080, %v2185
        %v2199 = vadd.f32 %v2081, %v2187
        %v2200 = vadd.f32 %v2082, %v2190
        %v2201 = vadd.f32 %v2083, %v2192
        %2202 = vst [vmem:[#allocation2] sm:$0xff] %v2194
        %2203 = vst [vmem:[#allocation2 + $0x8] sm:$0xff] %v2195
        %2204 = vst [vmem:[#allocation2 + $0x10] sm:$0xff] %v2196
        %2205 = vst [vmem:[#allocation2 + $0x18] sm:$0xff] %v2197
        %2206 = vst [vmem:[#allocation2 + $0x20] sm:$0xff] %v2198
        %2207 = vst [vmem:[#allocation2 + $0x28] sm:$0xff] %v2199
        %2208 = vst [vmem:[#allocation2 + $0x30] sm:$0xff] %v2200
        %2209 = vst [vmem:[#allocation2 + $0x38] sm:$0xff] %v2201
        %v2210 = vld [vmem:[#allocation2] sm:$0xff]
        %v2211 = vld [vmem:[#allocation2 + $0x8] sm:$0xff]
        %v2212 = vld [vmem:[#allocation2 + $0x10] sm:$0xff]
        %v2213 = vld [vmem:[#allocation2 + $0x18] sm:$0xff]
        %v2214 = vld [vmem:[#allocation2 + $0x20] sm:$0xff]
        %v2215 = vld [vmem:[#allocation2 + $0x28] sm:$0xff]
        %v2216 = vld [vmem:[#allocation2 + $0x30] sm:$0xff]
        %v2217 = vld [vmem:[#allocation2 + $0x38] sm:$0xff]
        %v2218 = vld [vmem:[%s5] sm:$0x1]
        %v2220 = vperm.slane %v2218, 0
        %v2222 = vadd.f32 %v2210, %v2220
        %v2223 = vadd.f32 %v2211, %v2220
        %v2224 = vadd.f32 %v2212, %v2220
        %v2225 = vadd.f32 %v2213, %v2220
        %v2226 = vadd.f32 %v2214, %v2220
        %v2227 = vadd.f32 %v2215, %v2220
        %v2228 = vadd.f32 %v2216, %v2220
        %v2229 = vadd.f32 %v2217, %v2220
        %v2230 = vmax.f32 %v2222, 0.0
        %v2231 = vmax.f32 %v2223, 0.0
        %v2232 = vmax.f32 %v2224, 0.0
        %v2233 = vmax.f32 %v2225, 0.0
        %v2234 = vmax.f32 %v2226, 0.0
        %v2235 = vmax.f32 %v2227, 0.0
        %v2236 = vmax.f32 %v2228, 0.0
        %v2237 = vmax.f32 %v2229, 0.0
        %2238 = vst [vmem:[#allocation2] sm:$0xff] %v2230
        %2239 = vst [vmem:[#allocation2 + $0x8] sm:$0xff] %v2231
        %2240 = vst [vmem:[#allocation2 + $0x10] sm:$0xff] %v2232
        %2241 = vst [vmem:[#allocation2 + $0x18] sm:$0xff] %v2233
        %2242 = vst [vmem:[#allocation2 + $0x20] sm:$0xff] %v2234
        %2243 = vst [vmem:[#allocation2 + $0x28] sm:$0xff] %v2235
        %2244 = vst [vmem:[#allocation2 + $0x30] sm:$0xff] %v2236
        %2245 = vst [vmem:[#allocation2 + $0x38] sm:$0xff] %v2237
      $region64: #{bottleneck_forward.3} parent=59 // pred_fallthru
        _
      %v2246 = vld [vmem:[#allocation2] sm:$0xff]
      %v2247 = vld [vmem:[#allocation2 + $0x8] sm:$0xff]
      %v2248 = vld [vmem:[#allocation2 + $0x10] sm:$0xff]
      %v2249 = vld [vmem:[#allocation2 + $0x18] sm:$0xff]
      %v2250 = vld [vmem:[#allocation2 + $0x20] sm:$0xff]
      %v2251 = vld [vmem:[#allocation2 + $0x28] sm:$0xff]
      %v2252 = vld [vmem:[#allocation2 + $0x30] sm:$0xff]
      %v2253 = vld [vmem:[#allocation2 + $0x38] sm:$0xff]
      %v2254 = vpack.c.bf16 %v2247, %v2246
      %v2255 = vpack.c.bf16 %v2249, %v2248
      %v2256 = vpack.c.bf16 %v2251, %v2250
      %v2257 = vpack.c.bf16 %v2253, %v2252
      %v2258 = vld [vmem:[%s487] sm:$0xf]
      %v2259 = vld [vmem:[%s487 + $0x4] sm:$0xf]
      %v2260 = vld [vmem:[%s487 + $0x8] sm:$0xf]
      %v2261 = vld [vmem:[%s487 + $0xc] sm:$0xf]
      %v2262 = vld [vmem:[%s487 + $0x10] sm:$0xf]
      %v2263 = vld [vmem:[%s487 + $0x14] sm:$0xf]
      %v2264 = vld [vmem:[%s487 + $0x18] sm:$0xf]
      %v2265 = vld [vmem:[%s487 + $0x1c] sm:$0xf]
      %v2266 = vld [vmem:[%s487 + $0x20] sm:$0xf]
      %v2267 = vld [vmem:[%s487 + $0x24] sm:$0xf]
      %v2268 = vld [vmem:[%s487 + $0x28] sm:$0xf]
      %v2269 = vld [vmem:[%s487 + $0x2c] sm:$0xf]
      %v2270 = vld [vmem:[%s487 + $0x30] sm:$0xf]
      %v2271 = vld [vmem:[%s487 + $0x34] sm:$0xf]
      %v2272 = vld [vmem:[%s487 + $0x38] sm:$0xf]
      %v2273 = vld [vmem:[%s487 + $0x3c] sm:$0xf]
      %v2274 = vld [vmem:[%s490] sm:$0x1]
      %v2276 = vperm.slane %v2274, 0
      %v2294 = vunpack.c.l.b16 %v2258
      %v2295 = vunpack.c.l.b16 %v2259
      %v2296 = vunpack.c.l.b16 %v2260
      %v2297 = vunpack.c.l.b16 %v2261
      %v2298 = vunpack.c.l.b16 %v2262
      %v2299 = vunpack.c.l.b16 %v2263
      %v2300 = vunpack.c.l.b16 %v2264
      %v2301 = vunpack.c.l.b16 %v2265
      %v2302 = vunpack.c.l.b16 %v2266
      %v2303 = vunpack.c.l.b16 %v2267
      %v2304 = vunpack.c.l.b16 %v2268
      %v2305 = vunpack.c.l.b16 %v2269
      %v2306 = vunpack.c.l.b16 %v2270
      %v2307 = vunpack.c.l.b16 %v2271
      %v2308 = vunpack.c.l.b16 %v2272
      %v2309 = vunpack.c.l.b16 %v2273
      %v2310 = vpack.c.b16 %v2295, %v2294
      %v2311 = vpack.c.b16 %v2297, %v2296
      %v2312 = vpack.c.b16 %v2299, %v2298
      %v2313 = vpack.c.b16 %v2301, %v2300
      %v2314 = vpack.c.b16 %v2303, %v2302
      %v2315 = vpack.c.b16 %v2305, %v2304
      %v2316 = vpack.c.b16 %v2307, %v2306
      %v2317 = vpack.c.b16 %v2309, %v2308
      %2326 = vmatpush.bf16.msra.mxu0 %v2317
      %2327 = vmatpush.bf16.msra.mxu0 %v2316
      %2328 = vmatpush.bf16.msra.mxu0 %v2315
      %2329 = vmatpush.bf16.msra.mxu0 %v2314
      %2330 = vmatpush.bf16.msra.mxu0 %v2313
      %2331 = vmatpush.bf16.msra.mxu0 %v2312
      %2332 = vmatpush.bf16.msra.mxu0 %v2311
      %2333 = vmatpush.bf16.msra.mxu0 %v2310
      %2334 = vmatmul.bf16.gmra.mxu0 %v2254
      %v2335 = vpop.f32.mrf.mxu0
      %v2336 = vadd.f32 %v2276, %v2335
      %v2337 = vpop.f32.mrf.mxu0
      %v2338 = vadd.f32 %v2276, %v2337
      %2339 = vmatmul.bf16.gmra.mxu0 %v2255
      %v2340 = vpop.f32.mrf.mxu0
      %v2341 = vadd.f32 %v2276, %v2340
      %v2342 = vpop.f32.mrf.mxu0
      %v2343 = vadd.f32 %v2276, %v2342
      %2344 = vmatmul.bf16.gmra.mxu0 %v2256
      %v2345 = vpop.f32.mrf.mxu0
      %v2346 = vadd.f32 %v2276, %v2345
      %v2347 = vpop.f32.mrf.mxu0
      %v2348 = vadd.f32 %v2276, %v2347
      %2349 = vmatmul.bf16.gmra.mxu0 %v2257
      %v2350 = vpop.f32.mrf.mxu0
      %v2351 = vadd.f32 %v2276, %v2350
      %v2352 = vpop.f32.mrf.mxu0
      %v2353 = vadd.f32 %v2276, %v2352
      %2354 = vdwg.mxu0
      %v2355 = vld [vmem:[%s495] sm:$0xf]
      %v2356 = vld [vmem:[%s495 + $0x4] sm:$0xf]
      %v2357 = vld [vmem:[%s495 + $0x8] sm:$0xf]
      %v2358 = vld [vmem:[%s495 + $0xc] sm:$0xf]
      %v2359 = vld [vmem:[%s495 + $0x10] sm:$0xf]
      %v2360 = vld [vmem:[%s495 + $0x14] sm:$0xf]
      %v2361 = vld [vmem:[%s495 + $0x18] sm:$0xf]
      %v2362 = vld [vmem:[%s495 + $0x1c] sm:$0xf]
      %v2363 = vld [vmem:[%s499] sm:$0xf]
      %v2364 = vld [vmem:[%s499 + $0x4] sm:$0xf]
      %v2365 = vld [vmem:[%s499 + $0x8] sm:$0xf]
      %v2366 = vld [vmem:[%s499 + $0xc] sm:$0xf]
      %v2367 = vld [vmem:[%s499 + $0x10] sm:$0xf]
      %v2368 = vld [vmem:[%s499 + $0x14] sm:$0xf]
      %v2369 = vld [vmem:[%s499 + $0x18] sm:$0xf]
      %v2370 = vld [vmem:[%s499 + $0x1c] sm:$0xf]
      %v2371 = vld [vmem:[%s499 + $0x20] sm:$0xf]
      %v2372 = vld [vmem:[%s499 + $0x24] sm:$0xf]
      %v2373 = vld [vmem:[%s499 + $0x28] sm:$0xf]
      %v2374 = vld [vmem:[%s499 + $0x2c] sm:$0xf]
      %v2375 = vld [vmem:[%s499 + $0x30] sm:$0xf]
      %v2376 = vld [vmem:[%s499 + $0x34] sm:$0xf]
      %v2377 = vld [vmem:[%s499 + $0x38] sm:$0xf]
      %v2378 = vld [vmem:[%s499 + $0x3c] sm:$0xf]
      %v2387 = vunpack.c.l.b16 %v2355
      %v2388 = vunpack.c.l.b16 %v2356
      %v2389 = vunpack.c.l.b16 %v2357
      %v2390 = vunpack.c.l.b16 %v2358
      %v2391 = vunpack.c.l.b16 %v2359
      %v2392 = vunpack.c.l.b16 %v2360
      %v2393 = vunpack.c.l.b16 %v2361
      %v2394 = vunpack.c.l.b16 %v2362
      %v2395 = vpack.c.b16 %v2388, %v2387
      %v2396 = vpack.c.b16 %v2390, %v2389
      %v2397 = vpack.c.b16 %v2392, %v2391
      %v2398 = vpack.c.b16 %v2394, %v2393
      %v2419 = vunpack.c.l.b16 %v2363
      %v2420 = vunpack.c.l.b16 %v2364
      %v2421 = vunpack.c.l.b16 %v2365
      %v2422 = vunpack.c.l.b16 %v2366
      %v2423 = vunpack.c.l.b16 %v2367
      %v2424 = vunpack.c.l.b16 %v2368
      %v2425 = vunpack.c.l.b16 %v2369
      %v2426 = vunpack.c.l.b16 %v2370
      %v2427 = vunpack.c.l.b16 %v2371
      %v2428 = vunpack.c.l.b16 %v2372
      %v2429 = vunpack.c.l.b16 %v2373
      %v2430 = vunpack.c.l.b16 %v2374
      %v2431 = vunpack.c.l.b16 %v2375
      %v2432 = vunpack.c.l.b16 %v2376
      %v2433 = vunpack.c.l.b16 %v2377
      %v2434 = vunpack.c.l.b16 %v2378
      %v2435 = vpack.c.b16 %v2420, %v2419
      %v2436 = vpack.c.b16 %v2422, %v2421
      %v2437 = vpack.c.b16 %v2424, %v2423
      %v2438 = vpack.c.b16 %v2426, %v2425
      %v2439 = vpack.c.b16 %v2428, %v2427
      %v2440 = vpack.c.b16 %v2430, %v2429
      %v2441 = vpack.c.b16 %v2432, %v2431
      %v2442 = vpack.c.b16 %v2434, %v2433
      %2451 = vmatpush.bf16.msra.mxu0 %v2442
      %2452 = vmatpush.bf16.msra.mxu0 %v2441
      %2453 = vmatpush.bf16.msra.mxu0 %v2440
      %2454 = vmatpush.bf16.msra.mxu0 %v2439
      %2455 = vmatpush.bf16.msra.mxu0 %v2438
      %2456 = vmatpush.bf16.msra.mxu0 %v2437
      %2457 = vmatpush.bf16.msra.mxu0 %v2436
      %2458 = vmatpush.bf16.msra.mxu0 %v2435
      %2459 = vmatmul.bf16.gmra.mxu0 %v2395
      %v2460 = vpop.f32.mrf.mxu0
      %v2461 = vadd.f32 0.0, %v2460
      %v2462 = vpop.f32.mrf.mxu0
      %v2463 = vadd.f32 0.0, %v2462
      %2464 = vmatmul.bf16.gmra.mxu0 %v2396
      %v2465 = vpop.f32.mrf.mxu0
      %v2466 = vadd.f32 0.0, %v2465
      %v2467 = vpop.f32.mrf.mxu0
      %v2468 = vadd.f32 0.0, %v2467
      %2469 = vmatmul.bf16.gmra.mxu0 %v2397
      %v2470 = vpop.f32.mrf.mxu0
      %v2471 = vadd.f32 0.0, %v2470
      %v2472 = vpop.f32.mrf.mxu0
      %v2473 = vadd.f32 0.0, %v2472
      %2474 = vmatmul.bf16.gmra.mxu0 %v2398
      %v2475 = vpop.f32.mrf.mxu0
      %v2476 = vadd.f32 0.0, %v2475
      %v2477 = vpop.f32.mrf.mxu0
      %v2478 = vadd.f32 0.0, %v2477
      %2479 = vdwg.mxu0
      %v2480 = vadd.f32 %v2336, %v2461
      %v2481 = vadd.f32 %v2338, %v2463
      %v2482 = vadd.f32 %v2341, %v2466
      %v2483 = vadd.f32 %v2343, %v2468
      %v2484 = vadd.f32 %v2346, %v2471
      %v2485 = vadd.f32 %v2348, %v2473
      %v2486 = vadd.f32 %v2351, %v2476
      %v2487 = vadd.f32 %v2353, %v2478
      %v2488 = vmax.f32 %v2480, 0.0
      %v2489 = vmax.f32 %v2481, 0.0
      %v2490 = vmax.f32 %v2482, 0.0
      %v2491 = vmax.f32 %v2483, 0.0
      %v2492 = vmax.f32 %v2484, 0.0
      %v2493 = vmax.f32 %v2485, 0.0
      %v2494 = vmax.f32 %v2486, 0.0
      %v2495 = vmax.f32 %v2487, 0.0
      %v2496 = vpack.c.bf16 %v2488, %v2488
      %v2497 = vpack.c.bf16 %v2489, %v2489
      %v2498 = vpack.c.bf16 %v2490, %v2490
      %v2499 = vpack.c.bf16 %v2491, %v2491
      %v2500 = vpack.c.bf16 %v2492, %v2492
      %v2501 = vpack.c.bf16 %v2493, %v2493
      %v2502 = vpack.c.bf16 %v2494, %v2494
      %v2503 = vpack.c.bf16 %v2495, %v2495
      %2504 = vst [vmem:[%s507] sm:$0xf] %v2496
      %2505 = vst [vmem:[%s507 + $0x4] sm:$0xf] %v2497
      %2506 = vst [vmem:[%s507 + $0x8] sm:$0xf] %v2498
      %2507 = vst [vmem:[%s507 + $0xc] sm:$0xf] %v2499
      %2508 = vst [vmem:[%s507 + $0x10] sm:$0xf] %v2500
      %2509 = vst [vmem:[%s507 + $0x14] sm:$0xf] %v2501
      %2510 = vst [vmem:[%s507 + $0x18] sm:$0xf] %v2502
      %2511 = vst [vmem:[%s507 + $0x1c] sm:$0xf] %v2503
      %p2512 = scmp.lt.s32.totalorder %s25, 1
      %s2513 = scalar_select %p2512, %s25, 1
      %p2514 = scmp.lt.s32.totalorder %s26, 0
      %s2515 = scalar_select %p2514, %s26, 0
      %s2516 = smul.addr %s2513, 8
      %s2517 = sadd.s32 %s2515, %s2516
      %s2518 = smul.addr %s2517, 4
      %s2519 = scalar_lea.vmem %s10, %s2518
      // Predicated region
      $region65: #{bottleneck_forward.3} parent=59 // pred_check
        %p2520 = pneg %p303
      $region66: #{bottleneck_forward.3} parent=59 // pred_check_branch
        %2522 = sbr.rel (%p2520) target = $region68
      $region67: #{bottleneck_forward.3} parent=59 // pred_region
        _
      $region68: #{bottleneck_forward.3} parent=59 // pred_fallthru
        _
    $region60: #{bottleneck_forward.3} parent=5 // pred_fallthru
      _
    %p2523 = scmp.le.s32.totalorder 2, %s16
    // Predicated region
    $region69: #{bottleneck_forward.3} parent=5 // pred_check
      %p2524 = pneg %p2523
    $region70: #{bottleneck_forward.3} parent=5 // pred_check_branch
      %2526 = sbr.rel (%p2524) target = $region72
    $region71: #{bottleneck_forward.3} parent=5 // pred_region
      %s2527 = ssub.s32 %s16, 2
      // Predicated region
      $region73: #{bottleneck_forward.3} parent=71 // pred_check
        %p2528 = pneg %p309
      $region74: #{bottleneck_forward.3} parent=71 // pred_check_branch
        %2530 = sbr.rel (%p2528) target = $region76
      $region75: #{bottleneck_forward.3} parent=71 // pred_region
        %p2531 = scmp.lt.s32.totalorder %s27, 1
        %s2532 = scalar_select %p2531, %s27, 1
        %p2533 = scmp.lt.s32.totalorder %s28, 0
        %s2534 = scalar_select %p2533, %s28, 0
        %s2535 = smul.addr %s2532, 8
        %s2536 = sadd.s32 %s2534, %s2535
        %s2537 = smul.addr %s2536, 4
        %s2538 = scalar_lea.vmem %s10, %s2537
      $region76: #{bottleneck_forward.3} parent=71 // pred_fallthru
        _
    $region72: #{bottleneck_forward.3} parent=5 // pred_fallthru
      _
  $region6: #{bottleneck_forward.3} parent=0 // loop_footer
    %s20 = sadd.s32 1, %s16
  $region7: #{bottleneck_forward.3} parent=0 // loop_footer_branch
    %15 = sbr.rel target = $region3
  $region8: #{bottleneck_forward.3} parent=0 // loop_exit
    _

</llo_original>
